<compile_context>
chip_gen: v5e
topology: v5e:2x2
jax: 0.10.0
libtpu: 0.0.40
codegen_flags: <defaults>
</compile_context>

<pallas_src>
import jax
import jax.numpy as jnp
from jax import lax
from jax.experimental import pallas as pl
from jax.experimental.pallas import tpu as pltpu

SLOPE = 0.2  # LeakyReLU negative slope


def _lrelu(v):
    return jnp.where(v >= 0, v, SLOPE * v)


def _round_up(v, m):
    return (v + m - 1) // m * m


def _make_kernel(NB, CinP, CoutP, Cout, H, W, RS, cdt):
    """Fused Subspace forward for one batch tile of NB images."""
    HP1 = H + 1                     # image slot: H data rows + 1 zero gap row
    LCR = NB * HP1 - 1              # compute-region rows (covers all data rows)
    LC = LCR * RS                   # compute-region lanes (multiple of 128)
    NROWS = NB * HP1 + 3            # 2 head rows + NB slots + 1 tail row
    L = NROWS * RS                  # total flat buffer lanes
    HEADL = 2 * RS                  # lane offset of the compute region
    M1 = CoutP + Cout               # conv_1 matmul rows: conv_1 taps + folded 1x1
    f32 = jnp.float32

    def zero_gap_rows(buf, C):
        # Rows never covered by the data stores (head / inter-image / tail);
        # re-zeroed every step -> cheap and megacore-safe.
        z2 = jnp.zeros((C, 2 * RS), cdt)
        buf[:, 0:2 * RS] = z2                              # head rows
        buf[:, (NROWS - 2) * RS:NROWS * RS] = z2           # last gap + tail row
        z1 = jnp.zeros((C, RS), cdt)
        for n in range(NB - 1):                            # inter-image gap rows
            g = (2 + n * HP1 + H) * RS
            buf[:, g:g + RS] = z1

    def conv3x3(buf, op, w_ref, b_ref, C):
        # Single MXU matmul: stack the 9 shifted source slices along K.
        src = buf[...]                                     # (C, L) in cdt
        if RS == W:
            # W is a multiple of 128: dx=+-1 taps wrap into the neighbouring row,
            # so zero the wrapped column on copies of the source (once per conv).
            col = lax.broadcasted_iota(jnp.int32, (1, NROWS, RS), 2).reshape(1, L)
            src_m1 = src * (col != RS - 1).astype(cdt)     # used by dx = -1 taps
            src_p1 = src * (col != 0).astype(cdt)          # used by dx = +1 taps
        else:
            # RS > W: the zero pad columns already act as horizontal conv padding.
            src_m1 = src_p1 = src
        t = 0
        for dy in (-1, 0, 1):
            for dx in (-1, 0, 1):
                s = HEADL + dy * RS + dx                   # dy part is 128-aligned
                f = src_m1 if dx == -1 else (src_p1 if dx == 1 else src)
                op[t * C:(t + 1) * C, :] = f[:, s:s + LC]
                t += 1
        acc = jnp.dot(w_ref[...], op[...], preferred_element_type=f32)
        return acc + b_ref[...]                            # (M, LC) f32

    def kernel(x_ref, w1_ref, b1_ref, w2_ref, b2_ref, out_ref,
               xbuf, o1buf, op1, op2):
        # ---- gapped input buffer: zero gaps + 128-aligned per-image data slabs
        zero_gap_rows(xbuf, CinP)
        xv = x_ref[...]                                    # (NB, CinP, H, RS)
        for n in range(NB):
            r0 = (2 + n * HP1) * RS
            xbuf[:, r0:r0 + H * RS] = xv[n].reshape(CinP, H * RS).astype(cdt)

        # ---- conv_1 (3x3) fused with the folded identity+shortcut 1x1 ---------
        acc1 = conv3x3(xbuf, op1, w1_ref, b1_ref, CinP)    # (CoutP+Cout, LC) f32
        out1 = _lrelu(acc1[:CoutP])                        # padded rows stay zero
        res11 = acc1[CoutP:M1]                             # 1x1 residual, (Cout, LC)

        # ---- conv_2 source buffer ----------------------------------------------
        zero_gap_rows(o1buf, CoutP)
        if RS > W:
            # zero conv_1 garbage in the pad columns (they are conv_2's padding)
            col = lax.broadcasted_iota(jnp.int32, (1, LCR, RS), 2).reshape(1, LC)
            out1 = out1 * (col < W).astype(jnp.float32)
        for n in range(NB):
            q0 = n * HP1 * RS
            r0 = (2 + n * HP1) * RS
            o1buf[:, r0:r0 + H * RS] = out1[:, q0:q0 + H * RS].astype(cdt)

        # ---- conv_2 (3x3) -> relu -> + residual ---------------------------------
        acc2 = conv3x3(o1buf, op2, w2_ref, b2_ref, CoutP)  # (Cout, LC) f32
        res = _lrelu(acc2) + res11

        # ---- lane-dense (128-wide rows) output stores ---------------------------
        for n in range(NB):
            q0 = n * HP1 * RS
            out_ref[n] = (res[:, q0:q0 + H * RS]
                          .reshape(Cout, H, RS).astype(out_ref.dtype))

    return kernel


def subspace_forward(x, params, *, batch_tile=1, compute_dtype=jnp.bfloat16,
                     vmem_limit_bytes=32 * 1024 * 1024):
    """x: (N, Cin, H, W) float32 NCHW (PyTorch layout) -> (N, Cout, H, W)."""
    N, Cin, H, W = x.shape
    Cout = params["w1"].shape[0]
    NB = batch_tile
    assert N % NB == 0, "batch_tile must divide N"

    # 128-aligned per-image row stride (== W at UNet scale, padded for small W).
    RS = W if W % 128 == 0 else _round_up(W, 128)
    # channel padding keeps every sublane offset aligned for both f32 and bf16
    CinP, CoutP = _round_up(Cin, 16), _round_up(Cout, 16)
    cdt = compute_dtype

    HP1 = H + 1
    LC = (NB * HP1 - 1) * RS
    NROWS = NB * HP1 + 3
    L = NROWS * RS

    # ---- one-time parameter packing (wrapper side) ---------------------------
    def pack3x3(w, ipad):                          # (O, I, 3, 3) -> (O, 9*ipad)
        o, i = w.shape[:2]
        wt = jnp.transpose(w, (0, 2, 3, 1))        # tap-major: (O, kh, kw, I)
        wt = jnp.pad(wt, ((0, 0), (0, 0), (0, 0), (0, ipad - i)))
        return wt.reshape(o, 9 * ipad)

    w1p = jnp.pad(pack3x3(params["w1"], CinP), ((0, CoutP - Cout), (0, 0)))
    w11 = (params["wid"] + params["wsc"]).reshape(Cout, Cin)   # folded 1x1
    w11w = jnp.zeros((Cout, 9 * CinP), jnp.float32)
    w11w = w11w.at[:, 4 * CinP:4 * CinP + Cin].set(w11)        # centre-tap columns
    w1_big = jnp.concatenate([w1p, w11w], axis=0).astype(cdt)  # (CoutP+Cout, 9*CinP)
    b1_big = jnp.concatenate(
        [params["b1"], jnp.zeros((CoutP - Cout,), jnp.float32),
         params["bid"] + params["bsc"]]).reshape(CoutP + Cout, 1)
    w2p = pack3x3(params["w2"], CoutP).astype(cdt)             # (Cout, 9*CoutP)
    b2 = params["b2"].reshape(Cout, 1)

    # zero-pad channels / row width (both no-ops at UNet scale where
    # Cin % 16 == 0 and W % 128 == 0)
    xk = x
    if CinP != Cin or RS != W:
        xk = jnp.pad(x, ((0, 0), (0, CinP - Cin), (0, 0), (0, RS - W)))

    kernel = _make_kernel(NB, CinP, CoutP, Cout, H, W, RS, cdt)

    out = pl.pallas_call(
        kernel,
        out_shape=jax.ShapeDtypeStruct((N, Cout, H, RS), x.dtype),
        grid_spec=pltpu.PrefetchScalarGridSpec(
            num_scalar_prefetch=0,
            grid=(N // NB,),
            in_specs=[
                pl.BlockSpec((NB, CinP, H, RS), lambda b: (b, 0, 0, 0)),   # x
                pl.BlockSpec((CoutP + Cout, 9 * CinP), lambda b: (0, 0)),  # conv1+1x1 W
                pl.BlockSpec((CoutP + Cout, 1), lambda b: (0, 0)),         # conv1+1x1 b
                pl.BlockSpec((Cout, 9 * CoutP), lambda b: (0, 0)),         # conv2 W
                pl.BlockSpec((Cout, 1), lambda b: (0, 0)),                 # conv2 b
            ],
            out_specs=pl.BlockSpec((NB, Cout, H, RS), lambda b: (b, 0, 0, 0)),
            scratch_shapes=[
                pltpu.VMEM((CinP, L), cdt),         # gapped input buffer
                pltpu.VMEM((CoutP, L), cdt),        # gapped conv_1 output buffer
                pltpu.VMEM((9 * CinP, LC), cdt),    # conv_1 stacked-K operand
                pltpu.VMEM((9 * CoutP, LC), cdt),   # conv_2 stacked-K operand
            ],
        ),
        compiler_params=pltpu.CompilerParams(
            dimension_semantics=("parallel",),      # batch tiles -> both v7x cores
            vmem_limit_bytes=vmem_limit_bytes,      # raise to ~64-100 MB on v6e/v5e
        ),
    )(xk, w1_big, b1_big, w2p, b2)

    return out if RS == W else out[..., :W]


# ----------------------------- references -----------------------------------
def _conv_nchw(x, w, b, pad, dt):
    y = lax.conv_general_dilated(
        x.astype(dt), w.astype(dt), window_strides=(1, 1),
        padding=[(pad, pad), (pad, pad)],
        dimension_numbers=("NCHW", "OIHW", "NCHW"),
        preferred_element_type=jnp.float32)
    return y + b.reshape(1, -1, 1, 1)


def ref_forward(x, p):
    """Pure-JAX f32 reference with the exact PyTorch-module semantics."""
    out = _lrelu(_conv_nchw(x, p["w1"], p["b1"], 1, jnp.float32))
    out = _lrelu(_conv_nchw(out, p["w2"], p["b2"], 1, jnp.float32))
    out = out + _conv_nchw(x, p["wid"], p["bid"], 0, jnp.float32)
    out = out + _conv_nchw(x, p["wsc"], p["bsc"], 0, jnp.float32)
    return out


def ref_forward_cast(x, p, dt):
    """Reference mirroring the kernel's numerics: matmul operands rounded to
    `dt`, f32 accumulation / bias / LeakyReLU, identity+shortcut folded."""
    out = _lrelu(_conv_nchw(x, p["w1"], p["b1"], 1, dt))
    out = _lrelu(_conv_nchw(out, p["w2"], p["b2"], 1, dt))
    return out + _conv_nchw(x, p["wid"] + p["wsc"], p["bid"] + p["bsc"], 0, dt)


def init_params(key, in_size, out_size):
    ks = jax.random.split(key, 8)
    s3a = 1.0 / (9.0 * in_size) ** 0.5
    s3b = 1.0 / (9.0 * out_size) ** 0.5
    s1 = 1.0 / in_size ** 0.5
    return {
        "w1": jax.random.normal(ks[0], (out_size, in_size, 3, 3), jnp.float32) * s3a,
        "b1": jax.random.normal(ks[1], (out_size,), jnp.float32) * s3a,
        "w2": jax.random.normal(ks[2], (out_size, out_size, 3, 3), jnp.float32) * s3b,
        "b2": jax.random.normal(ks[3], (out_size,), jnp.float32) * s3b,
        "wid": jax.random.normal(ks[4], (out_size, in_size, 1, 1), jnp.float32) * s1,
        "bid": jax.random.normal(ks[5], (out_size,), jnp.float32) * s1,
        "wsc": jax.random.normal(ks[6], (out_size, in_size, 1, 1), jnp.float32) * s1,
        "bsc": jax.random.normal(ks[7], (out_size,), jnp.float32) * s1,
    }


if __name__ == "__main__":
    N, Cin, H, W = 2, 4, 16, 16
    Cout = 8

    key = jax.random.PRNGKey(0)
    kx, kp = jax.random.split(key)
    x = jax.random.normal(kx, (N, Cin, H, W), jnp.float32)   # PyTorch NCHW input
    params = init_params(kp, Cin, Cout)

    ref32 = jax.block_until_ready(ref_forward(x, params))

    # exact-precision run: must match the f32 reference tightly
    out32 = jax.block_until_ready(
        subspace_forward(x, params, compute_dtype=jnp.float32))
    assert out32.shape == (N, Cout, H, W)
    err32 = float(jnp.max(jnp.abs(out32 - ref32)))
    assert jnp.allclose(out32, ref32, rtol=1e-4, atol=1e-4), err32

    # default bf16-operand run: tight vs a bf16-rounded reference, loose vs f32
    outbf = jax.block_until_ready(subspace_forward(x, params))
    assert outbf.shape == (N, Cout, H, W)
    refbf = jax.block_until_ready(ref_forward_cast(x, params, jnp.bfloat16))
    errbf = float(jnp.max(jnp.abs(outbf - refbf)))
    assert jnp.allclose(outbf, refbf, rtol=1e-2, atol=1e-2), errbf
    assert jnp.allclose(outbf, ref32, rtol=1e-1, atol=1e-1)

    print("KERNEL_OK")
</pallas_src>

<mosaic_0001>
module attributes {stable_mosaic.version = 11 : i64} {
  func.func @kernel(%arg0: i32, %arg1: memref<1x16x16x128xf32, #tpu.memory_space<vmem>>, %arg2: memref<24x144xf32, #tpu.memory_space<vmem>>, %arg3: memref<24x1xf32, #tpu.memory_space<vmem>>, %arg4: memref<8x144xf32, #tpu.memory_space<vmem>>, %arg5: memref<8x1xf32, #tpu.memory_space<vmem>>, %arg6: memref<1x8x16x128xf32, #tpu.memory_space<vmem>>, %arg7: memref<16x2560xf32, #tpu.memory_space<vmem>>, %arg8: memref<16x2560xf32, #tpu.memory_space<vmem>>, %arg9: memref<144x2048xf32, #tpu.memory_space<vmem>>, %arg10: memref<144x2048xf32, #tpu.memory_space<vmem>>) attributes {dimension_semantics = [#tpu.dimension_semantics<parallel>], iteration_bounds = array<i64: 2>, scalar_prefetch = 0 : i64, scratch_operands = 4 : i64, tpu.core_type = #tpu.core_type<tc>, window_params = [{transform_indices = @transform_0, window_bounds = array<i64: 1, 16, 16, 128>}, {pipeline_mode = #tpu.pipeline_mode<synchronous>, transform_indices = @transform_1, window_bounds = array<i64: 24, 144>}, {pipeline_mode = #tpu.pipeline_mode<synchronous>, transform_indices = @transform_2, window_bounds = array<i64: 24, 1>}, {pipeline_mode = #tpu.pipeline_mode<synchronous>, transform_indices = @transform_3, window_bounds = array<i64: 8, 144>}, {pipeline_mode = #tpu.pipeline_mode<synchronous>, transform_indices = @transform_4, window_bounds = array<i64: 8, 1>}, {transform_indices = @transform_5, window_bounds = array<i64: 1, 8, 16, 128>}]} {
    %cst = arith.constant 0.000000e+00 : f32
    %0 = vector.broadcast %cst : f32 to vector<16x256xf32>
    %c0 = arith.constant 0 : index
    %c0_0 = arith.constant 0 : index
    %1 = vector.load %arg7[%c0, %c0_0] : memref<16x2560xf32, #tpu.memory_space<vmem>>, vector<16x256xf32>
    tpu.vector_store %arg7[%c0, %c0_0], %0 {strides = array<i32>} : memref<16x2560xf32, #tpu.memory_space<vmem>>, vector<16x256xf32>,
    %c0_1 = arith.constant 0 : index
    %c2304 = arith.constant 2304 : index
    %2 = vector.load %arg7[%c0_1, %c2304] : memref<16x2560xf32, #tpu.memory_space<vmem>>, vector<16x256xf32>
    tpu.vector_store %arg7[%c0_1, %c2304], %0 {strides = array<i32>} : memref<16x2560xf32, #tpu.memory_space<vmem>>, vector<16x256xf32>,
    %c0_2 = arith.constant 0 : index
    %c0_3 = arith.constant 0 : index
    %c0_4 = arith.constant 0 : index
    %c0_5 = arith.constant 0 : index
    %3 = vector.load %arg1[%c0_2, %c0_3, %c0_4, %c0_5] : memref<1x16x16x128xf32, #tpu.memory_space<vmem>>, vector<1x16x16x128xf32>
    %4 = vector.shape_cast %3 : vector<1x16x16x128xf32> to vector<16x16x128xf32>
    %5 = vector.shape_cast %4 : vector<16x16x128xf32> to vector<16x2048xf32>
    %c0_6 = arith.constant 0 : index
    %c256 = arith.constant 256 : index
    %6 = vector.load %arg7[%c0_6, %c256] : memref<16x2560xf32, #tpu.memory_space<vmem>>, vector<16x2048xf32>
    tpu.vector_store %arg7[%c0_6, %c256], %5 {strides = array<i32>} : memref<16x2560xf32, #tpu.memory_space<vmem>>, vector<16x2048xf32>,
    %c0_7 = arith.constant 0 : index
    %c0_8 = arith.constant 0 : index
    %7 = vector.load %arg7[%c0_7, %c0_8] : memref<16x2560xf32, #tpu.memory_space<vmem>>, vector<16x2560xf32>
    %8 = vector.extract_strided_slice %7 {offsets = [0, 127], sizes = [16, 2048], strides = [1, 1]} : vector<16x2560xf32> to vector<16x2048xf32>
    %c0_9 = arith.constant 0 : index
    %c0_10 = arith.constant 0 : index
    %9 = vector.load %arg9[%c0_9, %c0_10] : memref<144x2048xf32, #tpu.memory_space<vmem>>, vector<16x2048xf32>
    tpu.vector_store %arg9[%c0_9, %c0_10], %8 {strides = array<i32>} : memref<144x2048xf32, #tpu.memory_space<vmem>>, vector<16x2048xf32>,
    %10 = vector.extract_strided_slice %7 {offsets = [0, 128], sizes = [16, 2048], strides = [1, 1]} : vector<16x2560xf32> to vector<16x2048xf32>
    %c16 = arith.constant 16 : index
    %c0_11 = arith.constant 0 : index
    %11 = vector.load %arg9[%c16, %c0_11] : memref<144x2048xf32, #tpu.memory_space<vmem>>, vector<16x2048xf32>
    tpu.vector_store %arg9[%c16, %c0_11], %10 {strides = array<i32>} : memref<144x2048xf32, #tpu.memory_space<vmem>>, vector<16x2048xf32>,
    %12 = vector.extract_strided_slice %7 {offsets = [0, 129], sizes = [16, 2048], strides = [1, 1]} : vector<16x2560xf32> to vector<16x2048xf32>
    %c32 = arith.constant 32 : index
    %c0_12 = arith.constant 0 : index
    %13 = vector.load %arg9[%c32, %c0_12] : memref<144x2048xf32, #tpu.memory_space<vmem>>, vector<16x2048xf32>
    tpu.vector_store %arg9[%c32, %c0_12], %12 {strides = array<i32>} : memref<144x2048xf32, #tpu.memory_space<vmem>>, vector<16x2048xf32>,
    %14 = vector.extract_strided_slice %7 {offsets = [0, 255], sizes = [16, 2048], strides = [1, 1]} : vector<16x2560xf32> to vector<16x2048xf32>
    %c48 = arith.constant 48 : index
    %c0_13 = arith.constant 0 : index
    %15 = vector.load %arg9[%c48, %c0_13] : memref<144x2048xf32, #tpu.memory_space<vmem>>, vector<16x2048xf32>
    tpu.vector_store %arg9[%c48, %c0_13], %14 {strides = array<i32>} : memref<144x2048xf32, #tpu.memory_space<vmem>>, vector<16x2048xf32>,
    %16 = vector.extract_strided_slice %7 {offsets = [0, 256], sizes = [16, 2048], strides = [1, 1]} : vector<16x2560xf32> to vector<16x2048xf32>
    %c64 = arith.constant 64 : index
    %c0_14 = arith.constant 0 : index
    %17 = vector.load %arg9[%c64, %c0_14] : memref<144x2048xf32, #tpu.memory_space<vmem>>, vector<16x2048xf32>
    tpu.vector_store %arg9[%c64, %c0_14], %16 {strides = array<i32>} : memref<144x2048xf32, #tpu.memory_space<vmem>>, vector<16x2048xf32>,
    %18 = vector.extract_strided_slice %7 {offsets = [0, 257], sizes = [16, 2048], strides = [1, 1]} : vector<16x2560xf32> to vector<16x2048xf32>
    %c80 = arith.constant 80 : index
    %c0_15 = arith.constant 0 : index
    %19 = vector.load %arg9[%c80, %c0_15] : memref<144x2048xf32, #tpu.memory_space<vmem>>, vector<16x2048xf32>
    tpu.vector_store %arg9[%c80, %c0_15], %18 {strides = array<i32>} : memref<144x2048xf32, #tpu.memory_space<vmem>>, vector<16x2048xf32>,
    %20 = vector.extract_strided_slice %7 {offsets = [0, 383], sizes = [16, 2048], strides = [1, 1]} : vector<16x2560xf32> to vector<16x2048xf32>
    %c96 = arith.constant 96 : index
    %c0_16 = arith.constant 0 : index
    %21 = vector.load %arg9[%c96, %c0_16] : memref<144x2048xf32, #tpu.memory_space<vmem>>, vector<16x2048xf32>
    tpu.vector_store %arg9[%c96, %c0_16], %20 {strides = array<i32>} : memref<144x2048xf32, #tpu.memory_space<vmem>>, vector<16x2048xf32>,
    %22 = vector.extract_strided_slice %7 {offsets = [0, 384], sizes = [16, 2048], strides = [1, 1]} : vector<16x2560xf32> to vector<16x2048xf32>
    %c112 = arith.constant 112 : index
    %c0_17 = arith.constant 0 : index
    %23 = vector.load %arg9[%c112, %c0_17] : memref<144x2048xf32, #tpu.memory_space<vmem>>, vector<16x2048xf32>
    tpu.vector_store %arg9[%c112, %c0_17], %22 {strides = array<i32>} : memref<144x2048xf32, #tpu.memory_space<vmem>>, vector<16x2048xf32>,
    %24 = vector.extract_strided_slice %7 {offsets = [0, 385], sizes = [16, 2048], strides = [1, 1]} : vector<16x2560xf32> to vector<16x2048xf32>
    %c128 = arith.constant 128 : index
    %c0_18 = arith.constant 0 : index
    %25 = vector.load %arg9[%c128, %c0_18] : memref<144x2048xf32, #tpu.memory_space<vmem>>, vector<16x2048xf32>
    tpu.vector_store %arg9[%c128, %c0_18], %24 {strides = array<i32>} : memref<144x2048xf32, #tpu.memory_space<vmem>>, vector<16x2048xf32>,
    %c0_19 = arith.constant 0 : index
    %c0_20 = arith.constant 0 : index
    %26 = vector.load %arg2[%c0_19, %c0_20] : memref<24x144xf32, #tpu.memory_space<vmem>>, vector<24x144xf32>
    %c0_21 = arith.constant 0 : index
    %c0_22 = arith.constant 0 : index
    %27 = vector.load %arg9[%c0_21, %c0_22] : memref<144x2048xf32, #tpu.memory_space<vmem>>, vector<144x2048xf32>
    %cst_23 = arith.constant dense<0.000000e+00> : vector<24x2048xf32>
    %28 = tpu.matmul %26, %27, %cst_23 {dimension_numbers = #tpu.dot_dimension_numbers<[1], [0], [0], [1], [0, 0, 1, 1], [], []>} : vector<24x144xf32>, vector<144x2048xf32>, vector<24x2048xf32> -> vector<24x2048xf32>
    %c0_24 = arith.constant 0 : index
    %c0_25 = arith.constant 0 : index
    %29 = vector.load %arg3[%c0_24, %c0_25] : memref<24x1xf32, #tpu.memory_space<vmem>>, vector<24x1xf32>
    %30 = vector.broadcast %29 : vector<24x1xf32> to vector<24x2048xf32>
    %31 = arith.addf %28, %30 : vector<24x2048xf32>
    %32 = vector.extract_strided_slice %31 {offsets = [0, 0], sizes = [16, 2048], strides = [1, 1]} : vector<24x2048xf32> to vector<16x2048xf32>
    %cst_26 = arith.constant 0.000000e+00 : f32
    %33 = vector.broadcast %cst_26 : f32 to vector<16x2048xf32>
    %34 = arith.cmpf oge, %32, %33 : vector<16x2048xf32>
    %cst_27 = arith.constant 2.000000e-01 : f32
    %35 = vector.broadcast %cst_27 : f32 to vector<16x2048xf32>
    %36 = arith.mulf %35, %32 : vector<16x2048xf32>
    %37 = arith.select %34, %32, %36 : vector<16x2048xi1>, vector<16x2048xf32>
    %38 = vector.extract_strided_slice %31 {offsets = [16, 0], sizes = [8, 2048], strides = [1, 1]} : vector<24x2048xf32> to vector<8x2048xf32>
    %cst_28 = arith.constant 0.000000e+00 : f32
    %39 = vector.broadcast %cst_28 : f32 to vector<16x256xf32>
    %c0_29 = arith.constant 0 : index
    %c0_30 = arith.constant 0 : index
    %40 = vector.load %arg8[%c0_29, %c0_30] : memref<16x2560xf32, #tpu.memory_space<vmem>>, vector<16x256xf32>
    tpu.vector_store %arg8[%c0_29, %c0_30], %39 {strides = array<i32>} : memref<16x2560xf32, #tpu.memory_space<vmem>>, vector<16x256xf32>,
    %c0_31 = arith.constant 0 : index
    %c2304_32 = arith.constant 2304 : index
    %41 = vector.load %arg8[%c0_31, %c2304_32] : memref<16x2560xf32, #tpu.memory_space<vmem>>, vector<16x256xf32>
    tpu.vector_store %arg8[%c0_31, %c2304_32], %39 {strides = array<i32>} : memref<16x2560xf32, #tpu.memory_space<vmem>>, vector<16x256xf32>,
    %42 = tpu.iota {dimensions = array<i32: 2>} : vector<1x16x128xi32>
    %43 = vector.shape_cast %42 : vector<1x16x128xi32> to vector<1x2048xi32>
    %c16_i32 = arith.constant 16 : i32
    %44 = vector.broadcast %c16_i32 : i32 to vector<1x2048xi32>
    %45 = arith.cmpi slt, %43, %44 : vector<1x2048xi32>
    %46 = arith.extui %45 : vector<1x2048xi1> to vector<1x2048xi32>
    %47 = arith.sitofp %46 : vector<1x2048xi32> to vector<1x2048xf32>
    %48 = vector.broadcast %47 : vector<1x2048xf32> to vector<16x2048xf32>
    %49 = arith.mulf %37, %48 : vector<16x2048xf32>
    %c0_33 = arith.constant 0 : index
    %c256_34 = arith.constant 256 : index
    %50 = vector.load %arg8[%c0_33, %c256_34] : memref<16x2560xf32, #tpu.memory_space<vmem>>, vector<16x2048xf32>
    tpu.vector_store %arg8[%c0_33, %c256_34], %49 {strides = array<i32>} : memref<16x2560xf32, #tpu.memory_space<vmem>>, vector<16x2048xf32>,
    %c0_35 = arith.constant 0 : index
    %c0_36 = arith.constant 0 : index
    %51 = vector.load %arg8[%c0_35, %c0_36] : memref<16x2560xf32, #tpu.memory_space<vmem>>, vector<16x2560xf32>
    %52 = vector.extract_strided_slice %51 {offsets = [0, 127], sizes = [16, 2048], strides = [1, 1]} : vector<16x2560xf32> to vector<16x2048xf32>
    %c0_37 = arith.constant 0 : index
    %c0_38 = arith.constant 0 : index
    %53 = vector.load %arg10[%c0_37, %c0_38] : memref<144x2048xf32, #tpu.memory_space<vmem>>, vector<16x2048xf32>
    tpu.vector_store %arg10[%c0_37, %c0_38], %52 {strides = array<i32>} : memref<144x2048xf32, #tpu.memory_space<vmem>>, vector<16x2048xf32>,
    %54 = vector.extract_strided_slice %51 {offsets = [0, 128], sizes = [16, 2048], strides = [1, 1]} : vector<16x2560xf32> to vector<16x2048xf32>
    %c16_39 = arith.constant 16 : index
    %c0_40 = arith.constant 0 : index
    %55 = vector.load %arg10[%c16_39, %c0_40] : memref<144x2048xf32, #tpu.memory_space<vmem>>, vector<16x2048xf32>
    tpu.vector_store %arg10[%c16_39, %c0_40], %54 {strides = array<i32>} : memref<144x2048xf32, #tpu.memory_space<vmem>>, vector<16x2048xf32>,
    %56 = vector.extract_strided_slice %51 {offsets = [0, 129], sizes = [16, 2048], strides = [1, 1]} : vector<16x2560xf32> to vector<16x2048xf32>
    %c32_41 = arith.constant 32 : index
    %c0_42 = arith.constant 0 : index
    %57 = vector.load %arg10[%c32_41, %c0_42] : memref<144x2048xf32, #tpu.memory_space<vmem>>, vector<16x2048xf32>
    tpu.vector_store %arg10[%c32_41, %c0_42], %56 {strides = array<i32>} : memref<144x2048xf32, #tpu.memory_space<vmem>>, vector<16x2048xf32>,
    %58 = vector.extract_strided_slice %51 {offsets = [0, 255], sizes = [16, 2048], strides = [1, 1]} : vector<16x2560xf32> to vector<16x2048xf32>
    %c48_43 = arith.constant 48 : index
    %c0_44 = arith.constant 0 : index
    %59 = vector.load %arg10[%c48_43, %c0_44] : memref<144x2048xf32, #tpu.memory_space<vmem>>, vector<16x2048xf32>
    tpu.vector_store %arg10[%c48_43, %c0_44], %58 {strides = array<i32>} : memref<144x2048xf32, #tpu.memory_space<vmem>>, vector<16x2048xf32>,
    %60 = vector.extract_strided_slice %51 {offsets = [0, 256], sizes = [16, 2048], strides = [1, 1]} : vector<16x2560xf32> to vector<16x2048xf32>
    %c64_45 = arith.constant 64 : index
    %c0_46 = arith.constant 0 : index
    %61 = vector.load %arg10[%c64_45, %c0_46] : memref<144x2048xf32, #tpu.memory_space<vmem>>, vector<16x2048xf32>
    tpu.vector_store %arg10[%c64_45, %c0_46], %60 {strides = array<i32>} : memref<144x2048xf32, #tpu.memory_space<vmem>>, vector<16x2048xf32>,
    %62 = vector.extract_strided_slice %51 {offsets = [0, 257], sizes = [16, 2048], strides = [1, 1]} : vector<16x2560xf32> to vector<16x2048xf32>
    %c80_47 = arith.constant 80 : index
    %c0_48 = arith.constant 0 : index
    %63 = vector.load %arg10[%c80_47, %c0_48] : memref<144x2048xf32, #tpu.memory_space<vmem>>, vector<16x2048xf32>
    tpu.vector_store %arg10[%c80_47, %c0_48], %62 {strides = array<i32>} : memref<144x2048xf32, #tpu.memory_space<vmem>>, vector<16x2048xf32>,
    %64 = vector.extract_strided_slice %51 {offsets = [0, 383], sizes = [16, 2048], strides = [1, 1]} : vector<16x2560xf32> to vector<16x2048xf32>
    %c96_49 = arith.constant 96 : index
    %c0_50 = arith.constant 0 : index
    %65 = vector.load %arg10[%c96_49, %c0_50] : memref<144x2048xf32, #tpu.memory_space<vmem>>, vector<16x2048xf32>
    tpu.vector_store %arg10[%c96_49, %c0_50], %64 {strides = array<i32>} : memref<144x2048xf32, #tpu.memory_space<vmem>>, vector<16x2048xf32>,
    %66 = vector.extract_strided_slice %51 {offsets = [0, 384], sizes = [16, 2048], strides = [1, 1]} : vector<16x2560xf32> to vector<16x2048xf32>
    %c112_51 = arith.constant 112 : index
    %c0_52 = arith.constant 0 : index
    %67 = vector.load %arg10[%c112_51, %c0_52] : memref<144x2048xf32, #tpu.memory_space<vmem>>, vector<16x2048xf32>
    tpu.vector_store %arg10[%c112_51, %c0_52], %66 {strides = array<i32>} : memref<144x2048xf32, #tpu.memory_space<vmem>>, vector<16x2048xf32>,
    %68 = vector.extract_strided_slice %51 {offsets = [0, 385], sizes = [16, 2048], strides = [1, 1]} : vector<16x2560xf32> to vector<16x2048xf32>
    %c128_53 = arith.constant 128 : index
    %c0_54 = arith.constant 0 : index
    %69 = vector.load %arg10[%c128_53, %c0_54] : memref<144x2048xf32, #tpu.memory_space<vmem>>, vector<16x2048xf32>
    tpu.vector_store %arg10[%c128_53, %c0_54], %68 {strides = array<i32>} : memref<144x2048xf32, #tpu.memory_space<vmem>>, vector<16x2048xf32>,
    %c0_55 = arith.constant 0 : index
    %c0_56 = arith.constant 0 : index
    %70 = vector.load %arg4[%c0_55, %c0_56] : memref<8x144xf32, #tpu.memory_space<vmem>>, vector<8x144xf32>
    %c0_57 = arith.constant 0 : index
    %c0_58 = arith.constant 0 : index
    %71 = vector.load %arg10[%c0_57, %c0_58] : memref<144x2048xf32, #tpu.memory_space<vmem>>, vector<144x2048xf32>
    %cst_59 = arith.constant dense<0.000000e+00> : vector<8x2048xf32>
    %72 = tpu.matmul %70, %71, %cst_59 {dimension_numbers = #tpu.dot_dimension_numbers<[1], [0], [0], [1], [0, 0, 1, 1], [], []>} : vector<8x144xf32>, vector<144x2048xf32>, vector<8x2048xf32> -> vector<8x2048xf32>
    %c0_60 = arith.constant 0 : index
    %c0_61 = arith.constant 0 : index
    %73 = vector.load %arg5[%c0_60, %c0_61] : memref<8x1xf32, #tpu.memory_space<vmem>>, vector<8x1xf32>
    %74 = vector.broadcast %73 : vector<8x1xf32> to vector<8x2048xf32>
    %75 = arith.addf %72, %74 : vector<8x2048xf32>
    %cst_62 = arith.constant 0.000000e+00 : f32
    %76 = vector.broadcast %cst_62 : f32 to vector<8x2048xf32>
    %77 = arith.cmpf oge, %75, %76 : vector<8x2048xf32>
    %cst_63 = arith.constant 2.000000e-01 : f32
    %78 = vector.broadcast %cst_63 : f32 to vector<8x2048xf32>
    %79 = arith.mulf %78, %75 : vector<8x2048xf32>
    %80 = arith.select %77, %75, %79 : vector<8x2048xi1>, vector<8x2048xf32>
    %81 = arith.addf %80, %38 : vector<8x2048xf32>
    %82 = vector.shape_cast %81 : vector<8x2048xf32> to vector<8x16x128xf32>
    %c0_64 = arith.constant 0 : index
    %c0_65 = arith.constant 0 : index
    %c0_66 = arith.constant 0 : index
    %c0_67 = arith.constant 0 : index
    %83 = vector.load %arg6[%c0_64, %c0_65, %c0_66, %c0_67] : memref<1x8x16x128xf32, #tpu.memory_space<vmem>>, vector<1x8x16x128xf32>
    %84 = vector.shape_cast %83 : vector<1x8x16x128xf32> to vector<8x16x128xf32>
    %85 = vector.shape_cast %82 : vector<8x16x128xf32> to vector<1x8x16x128xf32>
    tpu.vector_store %arg6[%c0_64, %c0_65, %c0_66, %c0_67], %85 {strides = array<i32>} : memref<1x8x16x128xf32, #tpu.memory_space<vmem>>, vector<1x8x16x128xf32>,
    return
  }
  func.func @transform_0(%arg0: i32) -> (i32, i32, i32, i32) {
    %c0_i32 = arith.constant 0 : i32
    %c0_i32_0 = arith.constant 0 : i32
    %c0_i32_1 = arith.constant 0 : i32
    %c0_i32_2 = arith.constant 0 : i32
    return %arg0, %c0_i32, %c0_i32_0, %c0_i32_1 : i32, i32, i32, i32
  }
  func.func @transform_1(%arg0: i32) -> (i32, i32) {
    %c0_i32 = arith.constant 0 : i32
    %c0_i32_0 = arith.constant 0 : i32
    %c0_i32_1 = arith.constant 0 : i32
    return %c0_i32, %c0_i32_0 : i32, i32
  }
  func.func @transform_2(%arg0: i32) -> (i32, i32) {
    %c0_i32 = arith.constant 0 : i32
    %c0_i32_0 = arith.constant 0 : i32
    %c0_i32_1 = arith.constant 0 : i32
    return %c0_i32, %c0_i32_0 : i32, i32
  }
  func.func @transform_3(%arg0: i32) -> (i32, i32) {
    %c0_i32 = arith.constant 0 : i32
    %c0_i32_0 = arith.constant 0 : i32
    %c0_i32_1 = arith.constant 0 : i32
    return %c0_i32, %c0_i32_0 : i32, i32
  }
  func.func @transform_4(%arg0: i32) -> (i32, i32) {
    %c0_i32 = arith.constant 0 : i32
    %c0_i32_0 = arith.constant 0 : i32
    %c0_i32_1 = arith.constant 0 : i32
    return %c0_i32, %c0_i32_0 : i32, i32
  }
  func.func @transform_5(%arg0: i32) -> (i32, i32, i32, i32) {
    %c0_i32 = arith.constant 0 : i32
    %c0_i32_0 = arith.constant 0 : i32
    %c0_i32_1 = arith.constant 0 : i32
    %c0_i32_2 = arith.constant 0 : i32
    return %arg0, %c0_i32, %c0_i32_0, %c0_i32_1 : i32, i32, i32, i32
  }
}

</mosaic_0001>

<llo_original>
// kernel: tpu_custom_call.1
$region0: #{tpu_custom_call.1}
  #allocation0 [shape = 'u32[]', space=smem, size = 0x4, offset = 0x4, fixed_abs, tag = 'smem constant byte address 0x4 - core index']
  #allocation1 [shape = 'u32[72,128]{1,0:T(1,128)}', space=vmem, size = 0x9000, scoped, tag = 'internal scratch']
  #allocation2 [shape = 'f32[16,2560]{1,0:T(8,128)}', space=vmem, size = 0x28000, scoped, tag = 'scratch operand']
  #allocation3 [shape = 'f32[16,2560]{1,0:T(8,128)}', space=vmem, size = 0x28000, scoped, tag = 'scratch operand']
  #allocation4 [shape = 'f32[144,2048]{1,0:T(8,128)}', space=vmem, size = 0x120000, scoped, tag = 'scratch operand']
  #allocation5 [shape = 'f32[144,2048]{1,0:T(8,128)}', space=vmem, size = 0x120000, scoped, tag = 'scratch operand']
  %s0 = inlined_call_operand.hbm [shape: f32[2,16,16,128], index: 0, kind: input, shape index: {}]
  %s1 = inlined_call_operand.hbm [shape: f32[24,144], index: 1, kind: input, shape index: {}]
  %s2 = inlined_call_operand.vmem [shape: f32[24,1], index: 2, kind: input, shape index: {}]
  %s3 = inlined_call_operand.vmem [shape: f32[8,144], index: 3, kind: input, shape index: {}]
  %s4 = inlined_call_operand.vmem [shape: f32[8,1], index: 4, kind: input, shape index: {}]
  %s5 = inlined_call_operand.hbm [shape: f32[2,8,16,128], index: 5, kind: output, shape index: {}]
  %s6 = sld [smem:[#allocation0]]
  $region61: #{tpu_custom_call.1} parent=0
    _
  %s8 = ssub.s32 1, %s6
  %s9 = scalar_select 0, %s8, %s6
  $region1: #{tpu_custom_call.1} parent=0
    #allocation6 [shape = 'u8[262144]{0}', space=vmem, size = 0x40000, scoped, tag = 'input window, operand 0']
    #allocation7 [shape = 's32[2]{0}', space=sflag, size = 0x8, scoped, tag = 'scoped memory for tpu_custom_call.1']
    #allocation8 [shape = 's32[2]{0}', space=sflag, size = 0x8, scoped, tag = 'scoped memory for tpu_custom_call.1']
    #allocation9 [shape = 'u8[24576]{0}', space=vmem, size = 0x6000, scoped, tag = 'input window, operand 1, single buffered']
    #allocation10 [shape = 's32[1]{0}', space=sflag, size = 0x4, scoped, tag = 'scoped memory for tpu_custom_call.1']
    #allocation11 [shape = 'u8[131072]{0}', space=vmem, size = 0x20000, scoped, tag = 'output window, operand 0']
    %10 = vsyncpa [#allocation7], 0
    %s11 = scalar_lea.sflag [#allocation7], 1
    %12 = vsyncpa %s11, 0
    %13 = vsyncpa [#allocation10], 0
    %14 = vsyncpa [#allocation8], 0
    %s15 = scalar_lea.sflag [#allocation8], 1
    %16 = vsyncpa %s15, 0
    loop: start=0, step=1, limit=4
    $region2: #{tpu_custom_call.1} parent=1 // loop_pre_header
      _
    $region3: #{tpu_custom_call.1} parent=1 // loop_header
      %s18 = sphi 0, %s22
      %p19 = scmp.ge.s32.totalorder %s18, 4
      %s28 = sphi 0, %s30
      %s31 = sphi 0, %s28
      %s32 = sphi 0, %s31
      %s48 = sphi 0, %s32
      %s52 = sphi 0, %s52
      %s54 = sphi 0, %s52
      %s55 = sphi 0, %s54
      %s69 = sphi 0, %s55
      %s73 = sphi 0, %s73
      %s75 = sphi 0, %s73
      %s76 = sphi 0, %s75
      %s90 = sphi 0, %s76
      %s94 = sphi 0, %s94
      %s96 = sphi 0, %s94
      %s97 = sphi 0, %s96
      %s111 = sphi 0, %s97
      %s115 = sphi 0, %s115
      %s117 = sphi 0, %s115
      %s118 = sphi 0, %s117
      %s132 = sphi 0, %s118
      %s138 = sphi 0, %s140
      %s141 = sphi 0, %s138
      %s142 = sphi 0, %s141
      %s158 = sphi 0, %s142
    $region4: #{tpu_custom_call.1} parent=1 // loop_header_branch
      %21 = sbr.rel (%p19) target = $region8
    $region5: #{tpu_custom_call.1} parent=1 // loop_body
      %s23 = ssub.s32 %s18, 1
      %s24 = ssub.s32 %s18, 2
      %s25 = sadd.s32 %s18, 1
      %s26 = ssub.s32 %s18, %s25
      %p27 = scmp.eq.s32.totalorder %s26, 0
      %s29 = sadd.s32 %s28, 1
      %s30 = scalar_select %p27, %s28, %s29
      %p33 = pneg %p27
      %p34 = scmp.eq.s32.totalorder %s18, 1
      %p35 = por %p33, %p34
      %p36 = scmp.ne.s32.totalorder %s28, %s31
      %p37 = scmp.eq.s32.totalorder %s18, 0
      %p38 = por %p36, %p37
      %p39 = scmp.ne.s32.totalorder %s28, %s31
      %p40 = scmp.eq.s32.totalorder %s23, 1
      %p41 = por %p39, %p40
      %p42 = scmp.ne.s32.totalorder %s31, %s32
      %p43 = scmp.eq.s32.totalorder %s23, 0
      %p44 = por %p42, %p43
      %p45 = scmp.ne.s32.totalorder %s31, %s32
      %p46 = scmp.eq.s32.totalorder %s24, 1
      %p47 = por %p45, %p46
      %p49 = scmp.ne.s32.totalorder %s32, %s48
      %p50 = scmp.eq.s32.totalorder %s24, 0
      %p51 = por %p49, %p50
      %s53 = sadd.s32 %s52, 1
      %p56 = scmp.eq.s32.totalorder %s18, 1
      %p57 = scmp.ne.s32.totalorder %s52, %s54
      %p58 = scmp.eq.s32.totalorder %s18, 0
      %p59 = por %p57, %p58
      %p60 = scmp.ne.s32.totalorder %s52, %s54
      %p61 = scmp.eq.s32.totalorder %s23, 1
      %p62 = por %p60, %p61
      %p63 = scmp.ne.s32.totalorder %s54, %s55
      %p64 = scmp.eq.s32.totalorder %s23, 0
      %p65 = por %p63, %p64
      %p66 = scmp.ne.s32.totalorder %s54, %s55
      %p67 = scmp.eq.s32.totalorder %s24, 1
      %p68 = por %p66, %p67
      %p70 = scmp.ne.s32.totalorder %s55, %s69
      %p71 = scmp.eq.s32.totalorder %s24, 0
      %p72 = por %p70, %p71
      %s74 = sadd.s32 %s73, 1
      %p77 = scmp.eq.s32.totalorder %s18, 1
      %p78 = scmp.ne.s32.totalorder %s73, %s75
      %p79 = scmp.eq.s32.totalorder %s18, 0
      %p80 = por %p78, %p79
      %p81 = scmp.ne.s32.totalorder %s73, %s75
      %p82 = scmp.eq.s32.totalorder %s23, 1
      %p83 = por %p81, %p82
      %p84 = scmp.ne.s32.totalorder %s75, %s76
      %p85 = scmp.eq.s32.totalorder %s23, 0
      %p86 = por %p84, %p85
      %p87 = scmp.ne.s32.totalorder %s75, %s76
      %p88 = scmp.eq.s32.totalorder %s24, 1
      %p89 = por %p87, %p88
      %p91 = scmp.ne.s32.totalorder %s76, %s90
      %p92 = scmp.eq.s32.totalorder %s24, 0
      %p93 = por %p91, %p92
      %s95 = sadd.s32 %s94, 1
      %p98 = scmp.eq.s32.totalorder %s18, 1
      %p99 = scmp.ne.s32.totalorder %s94, %s96
      %p100 = scmp.eq.s32.totalorder %s18, 0
      %p101 = por %p99, %p100
      %p102 = scmp.ne.s32.totalorder %s94, %s96
      %p103 = scmp.eq.s32.totalorder %s23, 1
      %p104 = por %p102, %p103
      %p105 = scmp.ne.s32.totalorder %s96, %s97
      %p106 = scmp.eq.s32.totalorder %s23, 0
      %p107 = por %p105, %p106
      %p108 = scmp.ne.s32.totalorder %s96, %s97
      %p109 = scmp.eq.s32.totalorder %s24, 1
      %p110 = por %p108, %p109
      %p112 = scmp.ne.s32.totalorder %s97, %s111
      %p113 = scmp.eq.s32.totalorder %s24, 0
      %p114 = por %p112, %p113
      %s116 = sadd.s32 %s115, 1
      %p119 = scmp.eq.s32.totalorder %s18, 1
      %p120 = scmp.ne.s32.totalorder %s115, %s117
      %p121 = scmp.eq.s32.totalorder %s18, 0
      %p122 = por %p120, %p121
      %p123 = scmp.ne.s32.totalorder %s115, %s117
      %p124 = scmp.eq.s32.totalorder %s23, 1
      %p125 = por %p123, %p124
      %p126 = scmp.ne.s32.totalorder %s117, %s118
      %p127 = scmp.eq.s32.totalorder %s23, 0
      %p128 = por %p126, %p127
      %p129 = scmp.ne.s32.totalorder %s117, %s118
      %p130 = scmp.eq.s32.totalorder %s24, 1
      %p131 = por %p129, %p130
      %p133 = scmp.ne.s32.totalorder %s118, %s132
      %p134 = scmp.eq.s32.totalorder %s24, 0
      %p135 = por %p133, %p134
      %s136 = ssub.s32 %s18, %s25
      %p137 = scmp.eq.s32.totalorder %s136, 0
      %s139 = sadd.s32 %s138, 1
      %s140 = scalar_select %p137, %s138, %s139
      %p143 = pneg %p137
      %p144 = scmp.eq.s32.totalorder %s18, 1
      %p145 = por %p143, %p144
      %p146 = scmp.ne.s32.totalorder %s138, %s141
      %p147 = scmp.eq.s32.totalorder %s18, 0
      %p148 = por %p146, %p147
      %p149 = scmp.ne.s32.totalorder %s138, %s141
      %p150 = scmp.eq.s32.totalorder %s23, 1
      %p151 = por %p149, %p150
      %p152 = scmp.ne.s32.totalorder %s141, %s142
      %p153 = scmp.eq.s32.totalorder %s23, 0
      %p154 = por %p152, %p153
      %p155 = scmp.ne.s32.totalorder %s141, %s142
      %p156 = scmp.eq.s32.totalorder %s24, 1
      %p157 = por %p155, %p156
      %p159 = scmp.ne.s32.totalorder %s142, %s158
      %p160 = scmp.eq.s32.totalorder %s24, 0
      %p161 = por %p159, %p160
      %p162 = scmp.le.s32.totalorder 1, %s18
      %p163 = scmp.lt.s32.totalorder %s18, 3
      %p164 = pnand %p162, %p163
      %p165 = pneg %p164
      // Predicated region
      $region9: #{tpu_custom_call.1} parent=5 // pred_check
        _
      $region10: #{tpu_custom_call.1} parent=5 // pred_check_branch
        %167 = sbr.rel (%p164) target = $region12
      $region11: #{tpu_custom_call.1} parent=5 // pred_region
        %s168 = ssub.s32 %s18, 1
        // Predicated region
        $region13: #{tpu_custom_call.1} parent=11 // pred_check
          %p169 = pneg %p65
        $region14: #{tpu_custom_call.1} parent=11 // pred_check_branch
          %171 = sbr.rel (%p169) target = $region16
        $region15: #{tpu_custom_call.1} parent=11 // pred_region
          %173 = vsyncadd [#allocation10], 0
          %s174 = sshll.u32 %s1, 4
          %s175 = int_to_ptr.hbm [resolvable:$true] %s174
          %s176 = sshll.u32 [#allocation9], 4
          %s177 = int_to_ptr.vmem [resolvable:$true] %s176
          %182 = dma.hbm_to_vmem [thread:$0]  %s175, 768, %s177, [#allocation10], 256, 256, 16
        $region16: #{tpu_custom_call.1} parent=11 // pred_fallthru
          _
        // Predicated region
        $region17: #{tpu_custom_call.1} parent=11 // pred_check
          %p183 = pneg %p86
        $region18: #{tpu_custom_call.1} parent=11 // pred_check_branch
          %185 = sbr.rel (%p183) target = $region20
        $region19: #{tpu_custom_call.1} parent=11 // pred_region
          _
        $region20: #{tpu_custom_call.1} parent=11 // pred_fallthru
          _
        // Predicated region
        $region21: #{tpu_custom_call.1} parent=11 // pred_check
          %p186 = pneg %p107
        $region22: #{tpu_custom_call.1} parent=11 // pred_check_branch
          %188 = sbr.rel (%p186) target = $region24
        $region23: #{tpu_custom_call.1} parent=11 // pred_region
          _
        $region24: #{tpu_custom_call.1} parent=11 // pred_fallthru
          _
        // Predicated region
        $region25: #{tpu_custom_call.1} parent=11 // pred_check
          %p189 = pneg %p128
        $region26: #{tpu_custom_call.1} parent=11 // pred_check_branch
          %191 = sbr.rel (%p189) target = $region28
        $region27: #{tpu_custom_call.1} parent=11 // pred_region
          _
        $region28: #{tpu_custom_call.1} parent=11 // pred_fallthru
          _
      $region12: #{tpu_custom_call.1} parent=5 // pred_fallthru
        _
      %p192 = scmp.lt.s32.totalorder %s18, 2
      // Predicated region
      $region29: #{tpu_custom_call.1} parent=5 // pred_check
        %p193 = pneg %p192
      $region30: #{tpu_custom_call.1} parent=5 // pred_check_branch
        %195 = sbr.rel (%p193) target = $region32
      $region31: #{tpu_custom_call.1} parent=5 // pred_region
        // Predicated region
        $region33: #{tpu_custom_call.1} parent=31 // pred_check
          %p196 = pneg %p38
        $region34: #{tpu_custom_call.1} parent=31 // pred_check_branch
          %198 = sbr.rel (%p196) target = $region36
        $region35: #{tpu_custom_call.1} parent=31 // pred_region
          %s199 = sand.u32 %s28, 1
          %s200 = scalar_lea.sflag [#allocation7], %s199
          %s201 = sand.u32 %s28, 1
          %s202 = smul.addr %s201, 256
          %s203 = scalar_lea.vmem [#allocation6], %s202
          %205 = vsyncadd %s200, 0
          %s206 = smul.addr %s18, 32
          %s207 = smul.addr %s206, 8
          %s208 = scalar_lea.hbm %s0, %s207
          %s209 = sshll.u32 %s208, 4
          %s210 = int_to_ptr.hbm [resolvable:$true] %s209
          %s211 = sshll.u32 %s203, 4
          %s212 = int_to_ptr.vmem [resolvable:$true] %s211
          %217 = dma.hbm_to_vmem [thread:$0]  %s210, 4096, %s212, %s200, 128, 128, 8
        $region36: #{tpu_custom_call.1} parent=31 // pred_fallthru
          _
      $region32: #{tpu_custom_call.1} parent=5 // pred_fallthru
        _
      %p218 = scmp.le.s32.totalorder 1, %s18
      %p219 = scmp.lt.s32.totalorder %s18, 3
      %p220 = pnand %p218, %p219
      %p221 = pneg %p220
      // Predicated region
      $region37: #{tpu_custom_call.1} parent=5 // pred_check
        _
      $region38: #{tpu_custom_call.1} parent=5 // pred_check_branch
        %223 = sbr.rel (%p220) target = $region40
      $region39: #{tpu_custom_call.1} parent=5 // pred_region
        %s224 = ssub.s32 %s18, 1
        %s225 = sand.u32 %s31, 1
        %s226 = scalar_lea.sflag [#allocation7], %s225
        %s227 = sand.u32 %s31, 1
        %s228 = smul.addr %s227, 256
        %s229 = scalar_lea.vmem [#allocation6], %s228
        // Predicated region
        $region41: #{tpu_custom_call.1} parent=39 // pred_check
          %p230 = pneg %p44
        $region42: #{tpu_custom_call.1} parent=39 // pred_check_branch
          %232 = sbr.rel (%p230) target = $region44
        $region43: #{tpu_custom_call.1} parent=39 // pred_region
          %234 = dma.done %s226, 4096
        $region44: #{tpu_custom_call.1} parent=39 // pred_fallthru
          _
        // Predicated region
        $region45: #{tpu_custom_call.1} parent=39 // pred_check
          %p235 = pneg %p65
        $region46: #{tpu_custom_call.1} parent=39 // pred_check_branch
          %237 = sbr.rel (%p235) target = $region48
        $region47: #{tpu_custom_call.1} parent=39 // pred_region
          %239 = dma.done [#allocation10], 768
        $region48: #{tpu_custom_call.1} parent=39 // pred_fallthru
          _
        %s240 = sand.u32 %s31, 1
        %s241 = scalar_lea.sflag [#allocation7], %s240
        %s242 = sand.u32 %s31, 1
        %s243 = smul.addr %s242, 256
        %s244 = scalar_lea.vmem [#allocation6], %s243
        %p245 = pneg %p44
        %p246 = pneg %p41
        %p247 = pneg %p65
        %p248 = pneg %p62
        %p249 = pneg %p86
        %p250 = pneg %p83
        %p251 = pneg %p107
        %p252 = pneg %p104
        %p253 = pneg %p128
        %p254 = pneg %p125
        %p255 = pneg %p154
        %p256 = pneg %p151
        %s257 = sand.u32 %s141, 1
        %s258 = scalar_lea.sflag [#allocation8], %s257
        %s259 = sand.u32 %s141, 1
        %s260 = smul.addr %s259, 128
        %s261 = scalar_lea.vmem [#allocation11], %s260
        %262 = vst [vmem:[#allocation2] sm:$0xff] 0.0
        %263 = vst [vmem:[#allocation2 + $0x8] sm:$0xff] 0.0
        %264 = vst [vmem:[#allocation2 + $0xa0] sm:$0xff] 0.0
        %265 = vst [vmem:[#allocation2 + $0xa8] sm:$0xff] 0.0
        %266 = vst [vmem:[#allocation2 + $0x90] sm:$0xff] 0.0
        %267 = vst [vmem:[#allocation2 + $0x98] sm:$0xff] 0.0
        %268 = vst [vmem:[#allocation2 + $0x130] sm:$0xff] 0.0
        %269 = vst [vmem:[#allocation2 + $0x138] sm:$0xff] 0.0
        %v270 = vld [vmem:[%s229] ss:$16 sm:$0x3]
        %v271 = vld [vmem:[%s229] ss:$16 sm:$0xc]
        %v272 = vor.u32 %v270, %v271
        %v273 = vld [vmem:[%s229] ss:$16 sm:$0x30]
        %v274 = vor.u32 %v272, %v273
        %v275 = vld [vmem:[%s229] ss:$16 sm:$0xc0]
        %v276 = vor.u32 %v274, %v275
        %s277 = scalar_lea.vmem %s229, 128 [#allocation6]
        %v278 = vld [vmem:[%s277] ss:$16 sm:$0x3]
        %v279 = vld [vmem:[%s277] ss:$16 sm:$0xc]
        %v280 = vor.u32 %v278, %v279
        %v281 = vld [vmem:[%s277] ss:$16 sm:$0x30]
        %v282 = vor.u32 %v280, %v281
        %v283 = vld [vmem:[%s277] ss:$16 sm:$0xc0]
        %v284 = vor.u32 %v282, %v283
        %s285 = scalar_lea.vmem %s229, 1 [#allocation6]
        %v286 = vld [vmem:[%s285] ss:$16 sm:$0x3]
        %v287 = vld [vmem:[%s285] ss:$16 sm:$0xc]
        %v288 = vor.u32 %v286, %v287
        %v289 = vld [vmem:[%s285] ss:$16 sm:$0x30]
        %v290 = vor.u32 %v288, %v289
        %v291 = vld [vmem:[%s285] ss:$16 sm:$0xc0]
        %v292 = vor.u32 %v290, %v291
        %s293 = scalar_lea.vmem %s229, 129 [#allocation6]
        %v294 = vld [vmem:[%s293] ss:$16 sm:$0x3]
        %v295 = vld [vmem:[%s293] ss:$16 sm:$0xc]
        %v296 = vor.u32 %v294, %v295
        %v297 = vld [vmem:[%s293] ss:$16 sm:$0x30]
        %v298 = vor.u32 %v296, %v297
        %v299 = vld [vmem:[%s293] ss:$16 sm:$0xc0]
        %v300 = vor.u32 %v298, %v299
        %s301 = scalar_lea.vmem %s229, 2 [#allocation6]
        %v302 = vld [vmem:[%s301] ss:$16 sm:$0x3]
        %v303 = vld [vmem:[%s301] ss:$16 sm:$0xc]
        %v304 = vor.u32 %v302, %v303
        %v305 = vld [vmem:[%s301] ss:$16 sm:$0x30]
        %v306 = vor.u32 %v304, %v305
        %v307 = vld [vmem:[%s301] ss:$16 sm:$0xc0]
        %v308 = vor.u32 %v306, %v307
        %s309 = scalar_lea.vmem %s229, 130 [#allocation6]
        %v310 = vld [vmem:[%s309] ss:$16 sm:$0x3]
        %v311 = vld [vmem:[%s309] ss:$16 sm:$0xc]
        %v312 = vor.u32 %v310, %v311
        %v313 = vld [vmem:[%s309] ss:$16 sm:$0x30]
        %v314 = vor.u32 %v312, %v313
        %v315 = vld [vmem:[%s309] ss:$16 sm:$0xc0]
        %v316 = vor.u32 %v314, %v315
        %s317 = scalar_lea.vmem %s229, 3 [#allocation6]
        %v318 = vld [vmem:[%s317] ss:$16 sm:$0x3]
        %v319 = vld [vmem:[%s317] ss:$16 sm:$0xc]
        %v320 = vor.u32 %v318, %v319
        %v321 = vld [vmem:[%s317] ss:$16 sm:$0x30]
        %v322 = vor.u32 %v320, %v321
        %v323 = vld [vmem:[%s317] ss:$16 sm:$0xc0]
        %v324 = vor.u32 %v322, %v323
        %s325 = scalar_lea.vmem %s229, 131 [#allocation6]
        %v326 = vld [vmem:[%s325] ss:$16 sm:$0x3]
        %v327 = vld [vmem:[%s325] ss:$16 sm:$0xc]
        %v328 = vor.u32 %v326, %v327
        %v329 = vld [vmem:[%s325] ss:$16 sm:$0x30]
        %v330 = vor.u32 %v328, %v329
        %v331 = vld [vmem:[%s325] ss:$16 sm:$0xc0]
        %v332 = vor.u32 %v330, %v331
        %s333 = scalar_lea.vmem %s229, 4 [#allocation6]
        %v334 = vld [vmem:[%s333] ss:$16 sm:$0x3]
        %v335 = vld [vmem:[%s333] ss:$16 sm:$0xc]
        %v336 = vor.u32 %v334, %v335
        %v337 = vld [vmem:[%s333] ss:$16 sm:$0x30]
        %v338 = vor.u32 %v336, %v337
        %v339 = vld [vmem:[%s333] ss:$16 sm:$0xc0]
        %v340 = vor.u32 %v338, %v339
        %s341 = scalar_lea.vmem %s229, 132 [#allocation6]
        %v342 = vld [vmem:[%s341] ss:$16 sm:$0x3]
        %v343 = vld [vmem:[%s341] ss:$16 sm:$0xc]
        %v344 = vor.u32 %v342, %v343
        %v345 = vld [vmem:[%s341] ss:$16 sm:$0x30]
        %v346 = vor.u32 %v344, %v345
        %v347 = vld [vmem:[%s341] ss:$16 sm:$0xc0]
        %v348 = vor.u32 %v346, %v347
        %s349 = scalar_lea.vmem %s229, 5 [#allocation6]
        %v350 = vld [vmem:[%s349] ss:$16 sm:$0x3]
        %v351 = vld [vmem:[%s349] ss:$16 sm:$0xc]
        %v352 = vor.u32 %v350, %v351
        %v353 = vld [vmem:[%s349] ss:$16 sm:$0x30]
        %v354 = vor.u32 %v352, %v353
        %v355 = vld [vmem:[%s349] ss:$16 sm:$0xc0]
        %v356 = vor.u32 %v354, %v355
        %s357 = scalar_lea.vmem %s229, 133 [#allocation6]
        %v358 = vld [vmem:[%s357] ss:$16 sm:$0x3]
        %v359 = vld [vmem:[%s357] ss:$16 sm:$0xc]
        %v360 = vor.u32 %v358, %v359
        %v361 = vld [vmem:[%s357] ss:$16 sm:$0x30]
        %v362 = vor.u32 %v360, %v361
        %v363 = vld [vmem:[%s357] ss:$16 sm:$0xc0]
        %v364 = vor.u32 %v362, %v363
        %s365 = scalar_lea.vmem %s229, 6 [#allocation6]
        %v366 = vld [vmem:[%s365] ss:$16 sm:$0x3]
        %v367 = vld [vmem:[%s365] ss:$16 sm:$0xc]
        %v368 = vor.u32 %v366, %v367
        %v369 = vld [vmem:[%s365] ss:$16 sm:$0x30]
        %v370 = vor.u32 %v368, %v369
        %v371 = vld [vmem:[%s365] ss:$16 sm:$0xc0]
        %v372 = vor.u32 %v370, %v371
        %s373 = scalar_lea.vmem %s229, 134 [#allocation6]
        %v374 = vld [vmem:[%s373] ss:$16 sm:$0x3]
        %v375 = vld [vmem:[%s373] ss:$16 sm:$0xc]
        %v376 = vor.u32 %v374, %v375
        %v377 = vld [vmem:[%s373] ss:$16 sm:$0x30]
        %v378 = vor.u32 %v376, %v377
        %v379 = vld [vmem:[%s373] ss:$16 sm:$0xc0]
        %v380 = vor.u32 %v378, %v379
        %s381 = scalar_lea.vmem %s229, 7 [#allocation6]
        %v382 = vld [vmem:[%s381] ss:$16 sm:$0x3]
        %v383 = vld [vmem:[%s381] ss:$16 sm:$0xc]
        %v384 = vor.u32 %v382, %v383
        %v385 = vld [vmem:[%s381] ss:$16 sm:$0x30]
        %v386 = vor.u32 %v384, %v385
        %v387 = vld [vmem:[%s381] ss:$16 sm:$0xc0]
        %v388 = vor.u32 %v386, %v387
        %s389 = scalar_lea.vmem %s229, 135 [#allocation6]
        %v390 = vld [vmem:[%s389] ss:$16 sm:$0x3]
        %v391 = vld [vmem:[%s389] ss:$16 sm:$0xc]
        %v392 = vor.u32 %v390, %v391
        %v393 = vld [vmem:[%s389] ss:$16 sm:$0x30]
        %v394 = vor.u32 %v392, %v393
        %v395 = vld [vmem:[%s389] ss:$16 sm:$0xc0]
        %v396 = vor.u32 %v394, %v395
        %s397 = scalar_lea.vmem %s229, 8 [#allocation6]
        %v398 = vld [vmem:[%s397] ss:$16 sm:$0x3]
        %v399 = vld [vmem:[%s397] ss:$16 sm:$0xc]
        %v400 = vor.u32 %v398, %v399
        %v401 = vld [vmem:[%s397] ss:$16 sm:$0x30]
        %v402 = vor.u32 %v400, %v401
        %v403 = vld [vmem:[%s397] ss:$16 sm:$0xc0]
        %v404 = vor.u32 %v402, %v403
        %s405 = scalar_lea.vmem %s229, 136 [#allocation6]
        %v406 = vld [vmem:[%s405] ss:$16 sm:$0x3]
        %v407 = vld [vmem:[%s405] ss:$16 sm:$0xc]
        %v408 = vor.u32 %v406, %v407
        %v409 = vld [vmem:[%s405] ss:$16 sm:$0x30]
        %v410 = vor.u32 %v408, %v409
        %v411 = vld [vmem:[%s405] ss:$16 sm:$0xc0]
        %v412 = vor.u32 %v410, %v411
        %s413 = scalar_lea.vmem %s229, 9 [#allocation6]
        %v414 = vld [vmem:[%s413] ss:$16 sm:$0x3]
        %v415 = vld [vmem:[%s413] ss:$16 sm:$0xc]
        %v416 = vor.u32 %v414, %v415
        %v417 = vld [vmem:[%s413] ss:$16 sm:$0x30]
        %v418 = vor.u32 %v416, %v417
        %v419 = vld [vmem:[%s413] ss:$16 sm:$0xc0]
        %v420 = vor.u32 %v418, %v419
        %s421 = scalar_lea.vmem %s229, 137 [#allocation6]
        %v422 = vld [vmem:[%s421] ss:$16 sm:$0x3]
        %v423 = vld [vmem:[%s421] ss:$16 sm:$0xc]
        %v424 = vor.u32 %v422, %v423
        %v425 = vld [vmem:[%s421] ss:$16 sm:$0x30]
        %v426 = vor.u32 %v424, %v425
        %v427 = vld [vmem:[%s421] ss:$16 sm:$0xc0]
        %v428 = vor.u32 %v426, %v427
        %s429 = scalar_lea.vmem %s229, 10 [#allocation6]
        %v430 = vld [vmem:[%s429] ss:$16 sm:$0x3]
        %v431 = vld [vmem:[%s429] ss:$16 sm:$0xc]
        %v432 = vor.u32 %v430, %v431
        %v433 = vld [vmem:[%s429] ss:$16 sm:$0x30]
        %v434 = vor.u32 %v432, %v433
        %v435 = vld [vmem:[%s429] ss:$16 sm:$0xc0]
        %v436 = vor.u32 %v434, %v435
        %s437 = scalar_lea.vmem %s229, 138 [#allocation6]
        %v438 = vld [vmem:[%s437] ss:$16 sm:$0x3]
        %v439 = vld [vmem:[%s437] ss:$16 sm:$0xc]
        %v440 = vor.u32 %v438, %v439
        %v441 = vld [vmem:[%s437] ss:$16 sm:$0x30]
        %v442 = vor.u32 %v440, %v441
        %v443 = vld [vmem:[%s437] ss:$16 sm:$0xc0]
        %v444 = vor.u32 %v442, %v443
        %s445 = scalar_lea.vmem %s229, 11 [#allocation6]
        %v446 = vld [vmem:[%s445] ss:$16 sm:$0x3]
        %v447 = vld [vmem:[%s445] ss:$16 sm:$0xc]
        %v448 = vor.u32 %v446, %v447
        %v449 = vld [vmem:[%s445] ss:$16 sm:$0x30]
        %v450 = vor.u32 %v448, %v449
        %v451 = vld [vmem:[%s445] ss:$16 sm:$0xc0]
        %v452 = vor.u32 %v450, %v451
        %s453 = scalar_lea.vmem %s229, 139 [#allocation6]
        %v454 = vld [vmem:[%s453] ss:$16 sm:$0x3]
        %v455 = vld [vmem:[%s453] ss:$16 sm:$0xc]
        %v456 = vor.u32 %v454, %v455
        %v457 = vld [vmem:[%s453] ss:$16 sm:$0x30]
        %v458 = vor.u32 %v456, %v457
        %v459 = vld [vmem:[%s453] ss:$16 sm:$0xc0]
        %v460 = vor.u32 %v458, %v459
        %s461 = scalar_lea.vmem %s229, 12 [#allocation6]
        %v462 = vld [vmem:[%s461] ss:$16 sm:$0x3]
        %v463 = vld [vmem:[%s461] ss:$16 sm:$0xc]
        %v464 = vor.u32 %v462, %v463
        %v465 = vld [vmem:[%s461] ss:$16 sm:$0x30]
        %v466 = vor.u32 %v464, %v465
        %v467 = vld [vmem:[%s461] ss:$16 sm:$0xc0]
        %v468 = vor.u32 %v466, %v467
        %s469 = scalar_lea.vmem %s229, 140 [#allocation6]
        %v470 = vld [vmem:[%s469] ss:$16 sm:$0x3]
        %v471 = vld [vmem:[%s469] ss:$16 sm:$0xc]
        %v472 = vor.u32 %v470, %v471
        %v473 = vld [vmem:[%s469] ss:$16 sm:$0x30]
        %v474 = vor.u32 %v472, %v473
        %v475 = vld [vmem:[%s469] ss:$16 sm:$0xc0]
        %v476 = vor.u32 %v474, %v475
        %s477 = scalar_lea.vmem %s229, 13 [#allocation6]
        %v478 = vld [vmem:[%s477] ss:$16 sm:$0x3]
        %v479 = vld [vmem:[%s477] ss:$16 sm:$0xc]
        %v480 = vor.u32 %v478, %v479
        %v481 = vld [vmem:[%s477] ss:$16 sm:$0x30]
        %v482 = vor.u32 %v480, %v481
        %v483 = vld [vmem:[%s477] ss:$16 sm:$0xc0]
        %v484 = vor.u32 %v482, %v483
        %s485 = scalar_lea.vmem %s229, 141 [#allocation6]
        %v486 = vld [vmem:[%s485] ss:$16 sm:$0x3]
        %v487 = vld [vmem:[%s485] ss:$16 sm:$0xc]
        %v488 = vor.u32 %v486, %v487
        %v489 = vld [vmem:[%s485] ss:$16 sm:$0x30]
        %v490 = vor.u32 %v488, %v489
        %v491 = vld [vmem:[%s485] ss:$16 sm:$0xc0]
        %v492 = vor.u32 %v490, %v491
        %s493 = scalar_lea.vmem %s229, 14 [#allocation6]
        %v494 = vld [vmem:[%s493] ss:$16 sm:$0x3]
        %v495 = vld [vmem:[%s493] ss:$16 sm:$0xc]
        %v496 = vor.u32 %v494, %v495
        %v497 = vld [vmem:[%s493] ss:$16 sm:$0x30]
        %v498 = vor.u32 %v496, %v497
        %v499 = vld [vmem:[%s493] ss:$16 sm:$0xc0]
        %v500 = vor.u32 %v498, %v499
        %s501 = scalar_lea.vmem %s229, 142 [#allocation6]
        %v502 = vld [vmem:[%s501] ss:$16 sm:$0x3]
        %v503 = vld [vmem:[%s501] ss:$16 sm:$0xc]
        %v504 = vor.u32 %v502, %v503
        %v505 = vld [vmem:[%s501] ss:$16 sm:$0x30]
        %v506 = vor.u32 %v504, %v505
        %v507 = vld [vmem:[%s501] ss:$16 sm:$0xc0]
        %v508 = vor.u32 %v506, %v507
        %s509 = scalar_lea.vmem %s229, 15 [#allocation6]
        %v510 = vld [vmem:[%s509] ss:$16 sm:$0x3]
        %v511 = vld [vmem:[%s509] ss:$16 sm:$0xc]
        %v512 = vor.u32 %v510, %v511
        %v513 = vld [vmem:[%s509] ss:$16 sm:$0x30]
        %v514 = vor.u32 %v512, %v513
        %v515 = vld [vmem:[%s509] ss:$16 sm:$0xc0]
        %v516 = vor.u32 %v514, %v515
        %s517 = scalar_lea.vmem %s229, 143 [#allocation6]
        %v518 = vld [vmem:[%s517] ss:$16 sm:$0x3]
        %v519 = vld [vmem:[%s517] ss:$16 sm:$0xc]
        %v520 = vor.u32 %v518, %v519
        %v521 = vld [vmem:[%s517] ss:$16 sm:$0x30]
        %v522 = vor.u32 %v520, %v521
        %v523 = vld [vmem:[%s517] ss:$16 sm:$0xc0]
        %v524 = vor.u32 %v522, %v523
        %557 = vst [vmem:[#allocation2 + $0x10] sm:$0xff] %v276
        %558 = vst [vmem:[#allocation2 + $0x18] sm:$0xff] %v292
        %559 = vst [vmem:[#allocation2 + $0x20] sm:$0xff] %v308
        %560 = vst [vmem:[#allocation2 + $0x28] sm:$0xff] %v324
        %561 = vst [vmem:[#allocation2 + $0x30] sm:$0xff] %v340
        %562 = vst [vmem:[#allocation2 + $0x38] sm:$0xff] %v356
        %563 = vst [vmem:[#allocation2 + $0x40] sm:$0xff] %v372
        %564 = vst [vmem:[#allocation2 + $0x48] sm:$0xff] %v388
        %565 = vst [vmem:[#allocation2 + $0x50] sm:$0xff] %v404
        %566 = vst [vmem:[#allocation2 + $0x58] sm:$0xff] %v420
        %567 = vst [vmem:[#allocation2 + $0x60] sm:$0xff] %v436
        %568 = vst [vmem:[#allocation2 + $0x68] sm:$0xff] %v452
        %569 = vst [vmem:[#allocation2 + $0x70] sm:$0xff] %v468
        %570 = vst [vmem:[#allocation2 + $0x78] sm:$0xff] %v484
        %571 = vst [vmem:[#allocation2 + $0x80] sm:$0xff] %v500
        %572 = vst [vmem:[#allocation2 + $0x88] sm:$0xff] %v516
        %573 = vst [vmem:[#allocation2 + $0xb0] sm:$0xff] %v284
        %574 = vst [vmem:[#allocation2 + $0xb8] sm:$0xff] %v300
        %575 = vst [vmem:[#allocation2 + $0xc0] sm:$0xff] %v316
        %576 = vst [vmem:[#allocation2 + $0xc8] sm:$0xff] %v332
        %577 = vst [vmem:[#allocation2 + $0xd0] sm:$0xff] %v348
        %578 = vst [vmem:[#allocation2 + $0xd8] sm:$0xff] %v364
        %579 = vst [vmem:[#allocation2 + $0xe0] sm:$0xff] %v380
        %580 = vst [vmem:[#allocation2 + $0xe8] sm:$0xff] %v396
        %581 = vst [vmem:[#allocation2 + $0xf0] sm:$0xff] %v412
        %582 = vst [vmem:[#allocation2 + $0xf8] sm:$0xff] %v428
        %583 = vst [vmem:[#allocation2 + $0x100] sm:$0xff] %v444
        %584 = vst [vmem:[#allocation2 + $0x108] sm:$0xff] %v460
        %585 = vst [vmem:[#allocation2 + $0x110] sm:$0xff] %v476
        %586 = vst [vmem:[#allocation2 + $0x118] sm:$0xff] %v492
        %587 = vst [vmem:[#allocation2 + $0x120] sm:$0xff] %v508
        %588 = vst [vmem:[#allocation2 + $0x128] sm:$0xff] %v524
        %v589 = vld [vmem:[#allocation2] sm:$0xff]
        %v590 = vld [vmem:[#allocation2 + $0x8] sm:$0xff]
        %v591 = vld [vmem:[#allocation2 + $0x10] sm:$0xff]
        %v592 = vld [vmem:[#allocation2 + $0x18] sm:$0xff]
        %v593 = vld [vmem:[#allocation2 + $0x20] sm:$0xff]
        %v594 = vld [vmem:[#allocation2 + $0x28] sm:$0xff]
        %v595 = vld [vmem:[#allocation2 + $0x30] sm:$0xff]
        %v596 = vld [vmem:[#allocation2 + $0x38] sm:$0xff]
        %v597 = vld [vmem:[#allocation2 + $0x40] sm:$0xff]
        %v598 = vld [vmem:[#allocation2 + $0x48] sm:$0xff]
        %v599 = vld [vmem:[#allocation2 + $0x50] sm:$0xff]
        %v600 = vld [vmem:[#allocation2 + $0x58] sm:$0xff]
        %v601 = vld [vmem:[#allocation2 + $0x60] sm:$0xff]
        %v602 = vld [vmem:[#allocation2 + $0x68] sm:$0xff]
        %v603 = vld [vmem:[#allocation2 + $0x70] sm:$0xff]
        %v604 = vld [vmem:[#allocation2 + $0x78] sm:$0xff]
        %v605 = vld [vmem:[#allocation2 + $0x80] sm:$0xff]
        %v606 = vld [vmem:[#allocation2 + $0x88] sm:$0xff]
        %v607 = vld [vmem:[#allocation2 + $0x90] sm:$0xff]
        %v608 = vld [vmem:[#allocation2 + $0x98] sm:$0xff]
        %v609 = vld [vmem:[#allocation2 + $0xa0] sm:$0xff]
        %v610 = vld [vmem:[#allocation2 + $0xa8] sm:$0xff]
        %v611 = vld [vmem:[#allocation2 + $0xb0] sm:$0xff]
        %v612 = vld [vmem:[#allocation2 + $0xb8] sm:$0xff]
        %v613 = vld [vmem:[#allocation2 + $0xc0] sm:$0xff]
        %v614 = vld [vmem:[#allocation2 + $0xc8] sm:$0xff]
        %v615 = vld [vmem:[#allocation2 + $0xd0] sm:$0xff]
        %v616 = vld [vmem:[#allocation2 + $0xd8] sm:$0xff]
        %v617 = vld [vmem:[#allocation2 + $0xe0] sm:$0xff]
        %v618 = vld [vmem:[#allocation2 + $0xe8] sm:$0xff]
        %v619 = vld [vmem:[#allocation2 + $0xf0] sm:$0xff]
        %v620 = vld [vmem:[#allocation2 + $0xf8] sm:$0xff]
        %v621 = vld [vmem:[#allocation2 + $0x100] sm:$0xff]
        %v622 = vld [vmem:[#allocation2 + $0x108] sm:$0xff]
        %v623 = vld [vmem:[#allocation2 + $0x110] sm:$0xff]
        %v624 = vld [vmem:[#allocation2 + $0x118] sm:$0xff]
        %v625 = vld [vmem:[#allocation2 + $0x120] sm:$0xff]
        %v626 = vld [vmem:[#allocation2 + $0x128] sm:$0xff]
        %v627 = vld [vmem:[#allocation2 + $0x130] sm:$0xff]
        %v628 = vld [vmem:[#allocation2 + $0x138] sm:$0xff]
        %663 = vrot.lane.b32.xlu0 %v589, 1
        %v664 = vpop.permute.xlu0 %663
        %665 = vrot.lane.b32.xlu0 %v590, 1
        %v666 = vpop.permute.xlu0 %665
        %667 = vrot.lane.b32.xlu0 %v591, 1
        %v668 = vpop.permute.xlu0 %667
        %669 = vrot.lane.b32.xlu0 %v592, 1
        %v670 = vpop.permute.xlu0 %669
        %671 = vrot.lane.b32.xlu0 %v593, 1
        %v672 = vpop.permute.xlu0 %671
        %673 = vrot.lane.b32.xlu0 %v594, 1
        %v674 = vpop.permute.xlu0 %673
        %675 = vrot.lane.b32.xlu0 %v595, 1
        %v676 = vpop.permute.xlu0 %675
        %677 = vrot.lane.b32.xlu0 %v596, 1
        %v678 = vpop.permute.xlu0 %677
        %679 = vrot.lane.b32.xlu0 %v597, 1
        %v680 = vpop.permute.xlu0 %679
        %681 = vrot.lane.b32.xlu0 %v598, 1
        %v682 = vpop.permute.xlu0 %681
        %683 = vrot.lane.b32.xlu0 %v599, 1
        %v684 = vpop.permute.xlu0 %683
        %685 = vrot.lane.b32.xlu0 %v600, 1
        %v686 = vpop.permute.xlu0 %685
        %687 = vrot.lane.b32.xlu0 %v601, 1
        %v688 = vpop.permute.xlu0 %687
        %689 = vrot.lane.b32.xlu0 %v602, 1
        %v690 = vpop.permute.xlu0 %689
        %691 = vrot.lane.b32.xlu0 %v603, 1
        %v692 = vpop.permute.xlu0 %691
        %693 = vrot.lane.b32.xlu0 %v604, 1
        %v694 = vpop.permute.xlu0 %693
        %695 = vrot.lane.b32.xlu0 %v605, 1
        %v696 = vpop.permute.xlu0 %695
        %697 = vrot.lane.b32.xlu0 %v609, 1
        %v698 = vpop.permute.xlu0 %697
        %699 = vrot.lane.b32.xlu0 %v610, 1
        %v700 = vpop.permute.xlu0 %699
        %701 = vrot.lane.b32.xlu0 %v611, 1
        %v702 = vpop.permute.xlu0 %701
        %703 = vrot.lane.b32.xlu0 %v612, 1
        %v704 = vpop.permute.xlu0 %703
        %705 = vrot.lane.b32.xlu0 %v613, 1
        %v706 = vpop.permute.xlu0 %705
        %707 = vrot.lane.b32.xlu0 %v614, 1
        %v708 = vpop.permute.xlu0 %707
        %709 = vrot.lane.b32.xlu0 %v615, 1
        %v710 = vpop.permute.xlu0 %709
        %711 = vrot.lane.b32.xlu0 %v616, 1
        %v712 = vpop.permute.xlu0 %711
        %713 = vrot.lane.b32.xlu0 %v617, 1
        %v714 = vpop.permute.xlu0 %713
        %715 = vrot.lane.b32.xlu0 %v618, 1
        %v716 = vpop.permute.xlu0 %715
        %717 = vrot.lane.b32.xlu0 %v619, 1
        %v718 = vpop.permute.xlu0 %717
        %719 = vrot.lane.b32.xlu0 %v620, 1
        %v720 = vpop.permute.xlu0 %719
        %721 = vrot.lane.b32.xlu0 %v621, 1
        %v722 = vpop.permute.xlu0 %721
        %723 = vrot.lane.b32.xlu0 %v622, 1
        %v724 = vpop.permute.xlu0 %723
        %725 = vrot.lane.b32.xlu0 %v623, 1
        %v726 = vpop.permute.xlu0 %725
        %727 = vrot.lane.b32.xlu0 %v624, 1
        %v728 = vpop.permute.xlu0 %727
        %729 = vrot.lane.b32.xlu0 %v625, 1
        %v730 = vpop.permute.xlu0 %729
        %vm731 = vcmask 7168
        %v732 = vsel %vm731, %v664, %v666
        %v733 = vsel %vm731, %v666, %v668
        %v734 = vsel %vm731, %v668, %v670
        %v735 = vsel %vm731, %v670, %v672
        %v736 = vsel %vm731, %v672, %v674
        %v737 = vsel %vm731, %v674, %v676
        %v738 = vsel %vm731, %v676, %v678
        %v739 = vsel %vm731, %v678, %v680
        %v740 = vsel %vm731, %v680, %v682
        %v741 = vsel %vm731, %v682, %v684
        %v742 = vsel %vm731, %v684, %v686
        %v743 = vsel %vm731, %v686, %v688
        %v744 = vsel %vm731, %v688, %v690
        %v745 = vsel %vm731, %v690, %v692
        %v746 = vsel %vm731, %v692, %v694
        %v747 = vsel %vm731, %v694, %v696
        %v748 = vsel %vm731, %v698, %v700
        %v749 = vsel %vm731, %v700, %v702
        %v750 = vsel %vm731, %v702, %v704
        %v751 = vsel %vm731, %v704, %v706
        %v752 = vsel %vm731, %v706, %v708
        %v753 = vsel %vm731, %v708, %v710
        %v754 = vsel %vm731, %v710, %v712
        %v755 = vsel %vm731, %v712, %v714
        %v756 = vsel %vm731, %v714, %v716
        %v757 = vsel %vm731, %v716, %v718
        %v758 = vsel %vm731, %v718, %v720
        %v759 = vsel %vm731, %v720, %v722
        %v760 = vsel %vm731, %v722, %v724
        %v761 = vsel %vm731, %v724, %v726
        %v762 = vsel %vm731, %v726, %v728
        %v763 = vsel %vm731, %v728, %v730
        %796 = vst [vmem:[#allocation4] sm:$0xff] %v732
        %797 = vst [vmem:[#allocation4 + $0x8] sm:$0xff] %v733
        %798 = vst [vmem:[#allocation4 + $0x10] sm:$0xff] %v734
        %799 = vst [vmem:[#allocation4 + $0x18] sm:$0xff] %v735
        %800 = vst [vmem:[#allocation4 + $0x20] sm:$0xff] %v736
        %801 = vst [vmem:[#allocation4 + $0x28] sm:$0xff] %v737
        %802 = vst [vmem:[#allocation4 + $0x30] sm:$0xff] %v738
        %803 = vst [vmem:[#allocation4 + $0x38] sm:$0xff] %v739
        %804 = vst [vmem:[#allocation4 + $0x40] sm:$0xff] %v740
        %805 = vst [vmem:[#allocation4 + $0x48] sm:$0xff] %v741
        %806 = vst [vmem:[#allocation4 + $0x50] sm:$0xff] %v742
        %807 = vst [vmem:[#allocation4 + $0x58] sm:$0xff] %v743
        %808 = vst [vmem:[#allocation4 + $0x60] sm:$0xff] %v744
        %809 = vst [vmem:[#allocation4 + $0x68] sm:$0xff] %v745
        %810 = vst [vmem:[#allocation4 + $0x70] sm:$0xff] %v746
        %811 = vst [vmem:[#allocation4 + $0x78] sm:$0xff] %v747
        %812 = vst [vmem:[#allocation4 + $0x80] sm:$0xff] %v748
        %813 = vst [vmem:[#allocation4 + $0x88] sm:$0xff] %v749
        %814 = vst [vmem:[#allocation4 + $0x90] sm:$0xff] %v750
        %815 = vst [vmem:[#allocation4 + $0x98] sm:$0xff] %v751
        %816 = vst [vmem:[#allocation4 + $0xa0] sm:$0xff] %v752
        %817 = vst [vmem:[#allocation4 + $0xa8] sm:$0xff] %v753
        %818 = vst [vmem:[#allocation4 + $0xb0] sm:$0xff] %v754
        %819 = vst [vmem:[#allocation4 + $0xb8] sm:$0xff] %v755
        %820 = vst [vmem:[#allocation4 + $0xc0] sm:$0xff] %v756
        %821 = vst [vmem:[#allocation4 + $0xc8] sm:$0xff] %v757
        %822 = vst [vmem:[#allocation4 + $0xd0] sm:$0xff] %v758
        %823 = vst [vmem:[#allocation4 + $0xd8] sm:$0xff] %v759
        %824 = vst [vmem:[#allocation4 + $0xe0] sm:$0xff] %v760
        %825 = vst [vmem:[#allocation4 + $0xe8] sm:$0xff] %v761
        %826 = vst [vmem:[#allocation4 + $0xf0] sm:$0xff] %v762
        %827 = vst [vmem:[#allocation4 + $0xf8] sm:$0xff] %v763
        %828 = vst [vmem:[#allocation4 + $0x100] sm:$0xff] %v590
        %829 = vst [vmem:[#allocation4 + $0x108] sm:$0xff] %v591
        %830 = vst [vmem:[#allocation4 + $0x110] sm:$0xff] %v592
        %831 = vst [vmem:[#allocation4 + $0x118] sm:$0xff] %v593
        %832 = vst [vmem:[#allocation4 + $0x120] sm:$0xff] %v594
        %833 = vst [vmem:[#allocation4 + $0x128] sm:$0xff] %v595
        %834 = vst [vmem:[#allocation4 + $0x130] sm:$0xff] %v596
        %835 = vst [vmem:[#allocation4 + $0x138] sm:$0xff] %v597
        %836 = vst [vmem:[#allocation4 + $0x140] sm:$0xff] %v598
        %837 = vst [vmem:[#allocation4 + $0x148] sm:$0xff] %v599
        %838 = vst [vmem:[#allocation4 + $0x150] sm:$0xff] %v600
        %839 = vst [vmem:[#allocation4 + $0x158] sm:$0xff] %v601
        %840 = vst [vmem:[#allocation4 + $0x160] sm:$0xff] %v602
        %841 = vst [vmem:[#allocation4 + $0x168] sm:$0xff] %v603
        %842 = vst [vmem:[#allocation4 + $0x170] sm:$0xff] %v604
        %843 = vst [vmem:[#allocation4 + $0x178] sm:$0xff] %v605
        %844 = vst [vmem:[#allocation4 + $0x180] sm:$0xff] %v610
        %845 = vst [vmem:[#allocation4 + $0x188] sm:$0xff] %v611
        %846 = vst [vmem:[#allocation4 + $0x190] sm:$0xff] %v612
        %847 = vst [vmem:[#allocation4 + $0x198] sm:$0xff] %v613
        %848 = vst [vmem:[#allocation4 + $0x1a0] sm:$0xff] %v614
        %849 = vst [vmem:[#allocation4 + $0x1a8] sm:$0xff] %v615
        %850 = vst [vmem:[#allocation4 + $0x1b0] sm:$0xff] %v616
        %851 = vst [vmem:[#allocation4 + $0x1b8] sm:$0xff] %v617
        %852 = vst [vmem:[#allocation4 + $0x1c0] sm:$0xff] %v618
        %853 = vst [vmem:[#allocation4 + $0x1c8] sm:$0xff] %v619
        %854 = vst [vmem:[#allocation4 + $0x1d0] sm:$0xff] %v620
        %855 = vst [vmem:[#allocation4 + $0x1d8] sm:$0xff] %v621
        %856 = vst [vmem:[#allocation4 + $0x1e0] sm:$0xff] %v622
        %857 = vst [vmem:[#allocation4 + $0x1e8] sm:$0xff] %v623
        %858 = vst [vmem:[#allocation4 + $0x1f0] sm:$0xff] %v624
        %859 = vst [vmem:[#allocation4 + $0x1f8] sm:$0xff] %v625
        %862 = vrot.lane.b32.xlu0 %v590, 127
        %v863 = vpop.permute.xlu0 %862
        %864 = vrot.lane.b32.xlu0 %v591, 127
        %v865 = vpop.permute.xlu0 %864
        %866 = vrot.lane.b32.xlu0 %v592, 127
        %v867 = vpop.permute.xlu0 %866
        %868 = vrot.lane.b32.xlu0 %v593, 127
        %v869 = vpop.permute.xlu0 %868
        %870 = vrot.lane.b32.xlu0 %v594, 127
        %v871 = vpop.permute.xlu0 %870
        %872 = vrot.lane.b32.xlu0 %v595, 127
        %v873 = vpop.permute.xlu0 %872
        %874 = vrot.lane.b32.xlu0 %v596, 127
        %v875 = vpop.permute.xlu0 %874
        %876 = vrot.lane.b32.xlu0 %v597, 127
        %v877 = vpop.permute.xlu0 %876
        %878 = vrot.lane.b32.xlu0 %v598, 127
        %v879 = vpop.permute.xlu0 %878
        %880 = vrot.lane.b32.xlu0 %v599, 127
        %v881 = vpop.permute.xlu0 %880
        %882 = vrot.lane.b32.xlu0 %v600, 127
        %v883 = vpop.permute.xlu0 %882
        %884 = vrot.lane.b32.xlu0 %v601, 127
        %v885 = vpop.permute.xlu0 %884
        %886 = vrot.lane.b32.xlu0 %v602, 127
        %v887 = vpop.permute.xlu0 %886
        %888 = vrot.lane.b32.xlu0 %v603, 127
        %v889 = vpop.permute.xlu0 %888
        %890 = vrot.lane.b32.xlu0 %v604, 127
        %v891 = vpop.permute.xlu0 %890
        %892 = vrot.lane.b32.xlu0 %v605, 127
        %v893 = vpop.permute.xlu0 %892
        %894 = vrot.lane.b32.xlu0 %v606, 127
        %v895 = vpop.permute.xlu0 %894
        %896 = vrot.lane.b32.xlu0 %v610, 127
        %v897 = vpop.permute.xlu0 %896
        %898 = vrot.lane.b32.xlu0 %v611, 127
        %v899 = vpop.permute.xlu0 %898
        %900 = vrot.lane.b32.xlu0 %v612, 127
        %v901 = vpop.permute.xlu0 %900
        %902 = vrot.lane.b32.xlu0 %v613, 127
        %v903 = vpop.permute.xlu0 %902
        %904 = vrot.lane.b32.xlu0 %v614, 127
        %v905 = vpop.permute.xlu0 %904
        %906 = vrot.lane.b32.xlu0 %v615, 127
        %v907 = vpop.permute.xlu0 %906
        %908 = vrot.lane.b32.xlu0 %v616, 127
        %v909 = vpop.permute.xlu0 %908
        %910 = vrot.lane.b32.xlu0 %v617, 127
        %v911 = vpop.permute.xlu0 %910
        %912 = vrot.lane.b32.xlu0 %v618, 127
        %v913 = vpop.permute.xlu0 %912
        %914 = vrot.lane.b32.xlu0 %v619, 127
        %v915 = vpop.permute.xlu0 %914
        %916 = vrot.lane.b32.xlu0 %v620, 127
        %v917 = vpop.permute.xlu0 %916
        %918 = vrot.lane.b32.xlu0 %v621, 127
        %v919 = vpop.permute.xlu0 %918
        %920 = vrot.lane.b32.xlu0 %v622, 127
        %v921 = vpop.permute.xlu0 %920
        %922 = vrot.lane.b32.xlu0 %v623, 127
        %v923 = vpop.permute.xlu0 %922
        %924 = vrot.lane.b32.xlu0 %v624, 127
        %v925 = vpop.permute.xlu0 %924
        %926 = vrot.lane.b32.xlu0 %v625, 127
        %v927 = vpop.permute.xlu0 %926
        %928 = vrot.lane.b32.xlu0 %v626, 127
        %v929 = vpop.permute.xlu0 %928
        %vm930 = vcmask 1039360
        %v931 = vsel %vm930, %v863, %v865
        %v932 = vsel %vm930, %v865, %v867
        %v933 = vsel %vm930, %v867, %v869
        %v934 = vsel %vm930, %v869, %v871
        %v935 = vsel %vm930, %v871, %v873
        %v936 = vsel %vm930, %v873, %v875
        %v937 = vsel %vm930, %v875, %v877
        %v938 = vsel %vm930, %v877, %v879
        %v939 = vsel %vm930, %v879, %v881
        %v940 = vsel %vm930, %v881, %v883
        %v941 = vsel %vm930, %v883, %v885
        %v942 = vsel %vm930, %v885, %v887
        %v943 = vsel %vm930, %v887, %v889
        %v944 = vsel %vm930, %v889, %v891
        %v945 = vsel %vm930, %v891, %v893
        %v946 = vsel %vm930, %v893, %v895
        %v947 = vsel %vm930, %v897, %v899
        %v948 = vsel %vm930, %v899, %v901
        %v949 = vsel %vm930, %v901, %v903
        %v950 = vsel %vm930, %v903, %v905
        %v951 = vsel %vm930, %v905, %v907
        %v952 = vsel %vm930, %v907, %v909
        %v953 = vsel %vm930, %v909, %v911
        %v954 = vsel %vm930, %v911, %v913
        %v955 = vsel %vm930, %v913, %v915
        %v956 = vsel %vm930, %v915, %v917
        %v957 = vsel %vm930, %v917, %v919
        %v958 = vsel %vm930, %v919, %v921
        %v959 = vsel %vm930, %v921, %v923
        %v960 = vsel %vm930, %v923, %v925
        %v961 = vsel %vm930, %v925, %v927
        %v962 = vsel %vm930, %v927, %v929
        %995 = vst [vmem:[#allocation4 + $0x200] sm:$0xff] %v931
        %996 = vst [vmem:[#allocation4 + $0x208] sm:$0xff] %v932
        %997 = vst [vmem:[#allocation4 + $0x210] sm:$0xff] %v933
        %998 = vst [vmem:[#allocation4 + $0x218] sm:$0xff] %v934
        %999 = vst [vmem:[#allocation4 + $0x220] sm:$0xff] %v935
        %1000 = vst [vmem:[#allocation4 + $0x228] sm:$0xff] %v936
        %1001 = vst [vmem:[#allocation4 + $0x230] sm:$0xff] %v937
        %1002 = vst [vmem:[#allocation4 + $0x238] sm:$0xff] %v938
        %1003 = vst [vmem:[#allocation4 + $0x240] sm:$0xff] %v939
        %1004 = vst [vmem:[#allocation4 + $0x248] sm:$0xff] %v940
        %1005 = vst [vmem:[#allocation4 + $0x250] sm:$0xff] %v941
        %1006 = vst [vmem:[#allocation4 + $0x258] sm:$0xff] %v942
        %1007 = vst [vmem:[#allocation4 + $0x260] sm:$0xff] %v943
        %1008 = vst [vmem:[#allocation4 + $0x268] sm:$0xff] %v944
        %1009 = vst [vmem:[#allocation4 + $0x270] sm:$0xff] %v945
        %1010 = vst [vmem:[#allocation4 + $0x278] sm:$0xff] %v946
        %1011 = vst [vmem:[#allocation4 + $0x280] sm:$0xff] %v947
        %1012 = vst [vmem:[#allocation4 + $0x288] sm:$0xff] %v948
        %1013 = vst [vmem:[#allocation4 + $0x290] sm:$0xff] %v949
        %1014 = vst [vmem:[#allocation4 + $0x298] sm:$0xff] %v950
        %1015 = vst [vmem:[#allocation4 + $0x2a0] sm:$0xff] %v951
        %1016 = vst [vmem:[#allocation4 + $0x2a8] sm:$0xff] %v952
        %1017 = vst [vmem:[#allocation4 + $0x2b0] sm:$0xff] %v953
        %1018 = vst [vmem:[#allocation4 + $0x2b8] sm:$0xff] %v954
        %1019 = vst [vmem:[#allocation4 + $0x2c0] sm:$0xff] %v955
        %1020 = vst [vmem:[#allocation4 + $0x2c8] sm:$0xff] %v956
        %1021 = vst [vmem:[#allocation4 + $0x2d0] sm:$0xff] %v957
        %1022 = vst [vmem:[#allocation4 + $0x2d8] sm:$0xff] %v958
        %1023 = vst [vmem:[#allocation4 + $0x2e0] sm:$0xff] %v959
        %1024 = vst [vmem:[#allocation4 + $0x2e8] sm:$0xff] %v960
        %1025 = vst [vmem:[#allocation4 + $0x2f0] sm:$0xff] %v961
        %1026 = vst [vmem:[#allocation4 + $0x2f8] sm:$0xff] %v962
        %1027 = vrot.lane.b32.xlu0 %v606, 1
        %v1028 = vpop.permute.xlu0 %1027
        %1029 = vrot.lane.b32.xlu0 %v626, 1
        %v1030 = vpop.permute.xlu0 %1029
        %v1031 = vsel %vm731, %v696, %v1028
        %v1032 = vsel %vm731, %v730, %v1030
        %1035 = vst [vmem:[#allocation4 + $0x300] sm:$0xff] %v733
        %1036 = vst [vmem:[#allocation4 + $0x308] sm:$0xff] %v734
        %1037 = vst [vmem:[#allocation4 + $0x310] sm:$0xff] %v735
        %1038 = vst [vmem:[#allocation4 + $0x318] sm:$0xff] %v736
        %1039 = vst [vmem:[#allocation4 + $0x320] sm:$0xff] %v737
        %1040 = vst [vmem:[#allocation4 + $0x328] sm:$0xff] %v738
        %1041 = vst [vmem:[#allocation4 + $0x330] sm:$0xff] %v739
        %1042 = vst [vmem:[#allocation4 + $0x338] sm:$0xff] %v740
        %1043 = vst [vmem:[#allocation4 + $0x340] sm:$0xff] %v741
        %1044 = vst [vmem:[#allocation4 + $0x348] sm:$0xff] %v742
        %1045 = vst [vmem:[#allocation4 + $0x350] sm:$0xff] %v743
        %1046 = vst [vmem:[#allocation4 + $0x358] sm:$0xff] %v744
        %1047 = vst [vmem:[#allocation4 + $0x360] sm:$0xff] %v745
        %1048 = vst [vmem:[#allocation4 + $0x368] sm:$0xff] %v746
        %1049 = vst [vmem:[#allocation4 + $0x370] sm:$0xff] %v747
        %1050 = vst [vmem:[#allocation4 + $0x378] sm:$0xff] %v1031
        %1051 = vst [vmem:[#allocation4 + $0x380] sm:$0xff] %v749
        %1052 = vst [vmem:[#allocation4 + $0x388] sm:$0xff] %v750
        %1053 = vst [vmem:[#allocation4 + $0x390] sm:$0xff] %v751
        %1054 = vst [vmem:[#allocation4 + $0x398] sm:$0xff] %v752
        %1055 = vst [vmem:[#allocation4 + $0x3a0] sm:$0xff] %v753
        %1056 = vst [vmem:[#allocation4 + $0x3a8] sm:$0xff] %v754
        %1057 = vst [vmem:[#allocation4 + $0x3b0] sm:$0xff] %v755
        %1058 = vst [vmem:[#allocation4 + $0x3b8] sm:$0xff] %v756
        %1059 = vst [vmem:[#allocation4 + $0x3c0] sm:$0xff] %v757
        %1060 = vst [vmem:[#allocation4 + $0x3c8] sm:$0xff] %v758
        %1061 = vst [vmem:[#allocation4 + $0x3d0] sm:$0xff] %v759
        %1062 = vst [vmem:[#allocation4 + $0x3d8] sm:$0xff] %v760
        %1063 = vst [vmem:[#allocation4 + $0x3e0] sm:$0xff] %v761
        %1064 = vst [vmem:[#allocation4 + $0x3e8] sm:$0xff] %v762
        %1065 = vst [vmem:[#allocation4 + $0x3f0] sm:$0xff] %v763
        %1066 = vst [vmem:[#allocation4 + $0x3f8] sm:$0xff] %v1032
        %1067 = vst [vmem:[#allocation4 + $0x400] sm:$0xff] %v591
        %1068 = vst [vmem:[#allocation4 + $0x408] sm:$0xff] %v592
        %1069 = vst [vmem:[#allocation4 + $0x410] sm:$0xff] %v593
        %1070 = vst [vmem:[#allocation4 + $0x418] sm:$0xff] %v594
        %1071 = vst [vmem:[#allocation4 + $0x420] sm:$0xff] %v595
        %1072 = vst [vmem:[#allocation4 + $0x428] sm:$0xff] %v596
        %1073 = vst [vmem:[#allocation4 + $0x430] sm:$0xff] %v597
        %1074 = vst [vmem:[#allocation4 + $0x438] sm:$0xff] %v598
        %1075 = vst [vmem:[#allocation4 + $0x440] sm:$0xff] %v599
        %1076 = vst [vmem:[#allocation4 + $0x448] sm:$0xff] %v600
        %1077 = vst [vmem:[#allocation4 + $0x450] sm:$0xff] %v601
        %1078 = vst [vmem:[#allocation4 + $0x458] sm:$0xff] %v602
        %1079 = vst [vmem:[#allocation4 + $0x460] sm:$0xff] %v603
        %1080 = vst [vmem:[#allocation4 + $0x468] sm:$0xff] %v604
        %1081 = vst [vmem:[#allocation4 + $0x470] sm:$0xff] %v605
        %1082 = vst [vmem:[#allocation4 + $0x478] sm:$0xff] %v606
        %1083 = vst [vmem:[#allocation4 + $0x480] sm:$0xff] %v611
        %1084 = vst [vmem:[#allocation4 + $0x488] sm:$0xff] %v612
        %1085 = vst [vmem:[#allocation4 + $0x490] sm:$0xff] %v613
        %1086 = vst [vmem:[#allocation4 + $0x498] sm:$0xff] %v614
        %1087 = vst [vmem:[#allocation4 + $0x4a0] sm:$0xff] %v615
        %1088 = vst [vmem:[#allocation4 + $0x4a8] sm:$0xff] %v616
        %1089 = vst [vmem:[#allocation4 + $0x4b0] sm:$0xff] %v617
        %1090 = vst [vmem:[#allocation4 + $0x4b8] sm:$0xff] %v618
        %1091 = vst [vmem:[#allocation4 + $0x4c0] sm:$0xff] %v619
        %1092 = vst [vmem:[#allocation4 + $0x4c8] sm:$0xff] %v620
        %1093 = vst [vmem:[#allocation4 + $0x4d0] sm:$0xff] %v621
        %1094 = vst [vmem:[#allocation4 + $0x4d8] sm:$0xff] %v622
        %1095 = vst [vmem:[#allocation4 + $0x4e0] sm:$0xff] %v623
        %1096 = vst [vmem:[#allocation4 + $0x4e8] sm:$0xff] %v624
        %1097 = vst [vmem:[#allocation4 + $0x4f0] sm:$0xff] %v625
        %1098 = vst [vmem:[#allocation4 + $0x4f8] sm:$0xff] %v626
        %1101 = vrot.lane.b32.xlu0 %v607, 127
        %v1102 = vpop.permute.xlu0 %1101
        %1103 = vrot.lane.b32.xlu0 %v627, 127
        %v1104 = vpop.permute.xlu0 %1103
        %v1105 = vsel %vm930, %v895, %v1102
        %v1106 = vsel %vm930, %v929, %v1104
        %1109 = vst [vmem:[#allocation4 + $0x500] sm:$0xff] %v932
        %1110 = vst [vmem:[#allocation4 + $0x508] sm:$0xff] %v933
        %1111 = vst [vmem:[#allocation4 + $0x510] sm:$0xff] %v934
        %1112 = vst [vmem:[#allocation4 + $0x518] sm:$0xff] %v935
        %1113 = vst [vmem:[#allocation4 + $0x520] sm:$0xff] %v936
        %1114 = vst [vmem:[#allocation4 + $0x528] sm:$0xff] %v937
        %1115 = vst [vmem:[#allocation4 + $0x530] sm:$0xff] %v938
        %1116 = vst [vmem:[#allocation4 + $0x538] sm:$0xff] %v939
        %1117 = vst [vmem:[#allocation4 + $0x540] sm:$0xff] %v940
        %1118 = vst [vmem:[#allocation4 + $0x548] sm:$0xff] %v941
        %1119 = vst [vmem:[#allocation4 + $0x550] sm:$0xff] %v942
        %1120 = vst [vmem:[#allocation4 + $0x558] sm:$0xff] %v943
        %1121 = vst [vmem:[#allocation4 + $0x560] sm:$0xff] %v944
        %1122 = vst [vmem:[#allocation4 + $0x568] sm:$0xff] %v945
        %1123 = vst [vmem:[#allocation4 + $0x570] sm:$0xff] %v946
        %1124 = vst [vmem:[#allocation4 + $0x578] sm:$0xff] %v1105
        %1125 = vst [vmem:[#allocation4 + $0x580] sm:$0xff] %v948
        %1126 = vst [vmem:[#allocation4 + $0x588] sm:$0xff] %v949
        %1127 = vst [vmem:[#allocation4 + $0x590] sm:$0xff] %v950
        %1128 = vst [vmem:[#allocation4 + $0x598] sm:$0xff] %v951
        %1129 = vst [vmem:[#allocation4 + $0x5a0] sm:$0xff] %v952
        %1130 = vst [vmem:[#allocation4 + $0x5a8] sm:$0xff] %v953
        %1131 = vst [vmem:[#allocation4 + $0x5b0] sm:$0xff] %v954
        %1132 = vst [vmem:[#allocation4 + $0x5b8] sm:$0xff] %v955
        %1133 = vst [vmem:[#allocation4 + $0x5c0] sm:$0xff] %v956
        %1134 = vst [vmem:[#allocation4 + $0x5c8] sm:$0xff] %v957
        %1135 = vst [vmem:[#allocation4 + $0x5d0] sm:$0xff] %v958
        %1136 = vst [vmem:[#allocation4 + $0x5d8] sm:$0xff] %v959
        %1137 = vst [vmem:[#allocation4 + $0x5e0] sm:$0xff] %v960
        %1138 = vst [vmem:[#allocation4 + $0x5e8] sm:$0xff] %v961
        %1139 = vst [vmem:[#allocation4 + $0x5f0] sm:$0xff] %v962
        %1140 = vst [vmem:[#allocation4 + $0x5f8] sm:$0xff] %v1106
        %1141 = vrot.lane.b32.xlu0 %v607, 1
        %v1142 = vpop.permute.xlu0 %1141
        %1143 = vrot.lane.b32.xlu0 %v627, 1
        %v1144 = vpop.permute.xlu0 %1143
        %v1145 = vsel %vm731, %v1028, %v1142
        %v1146 = vsel %vm731, %v1030, %v1144
        %1149 = vst [vmem:[#allocation4 + $0x600] sm:$0xff] %v734
        %1150 = vst [vmem:[#allocation4 + $0x608] sm:$0xff] %v735
        %1151 = vst [vmem:[#allocation4 + $0x610] sm:$0xff] %v736
        %1152 = vst [vmem:[#allocation4 + $0x618] sm:$0xff] %v737
        %1153 = vst [vmem:[#allocation4 + $0x620] sm:$0xff] %v738
        %1154 = vst [vmem:[#allocation4 + $0x628] sm:$0xff] %v739
        %1155 = vst [vmem:[#allocation4 + $0x630] sm:$0xff] %v740
        %1156 = vst [vmem:[#allocation4 + $0x638] sm:$0xff] %v741
        %1157 = vst [vmem:[#allocation4 + $0x640] sm:$0xff] %v742
        %1158 = vst [vmem:[#allocation4 + $0x648] sm:$0xff] %v743
        %1159 = vst [vmem:[#allocation4 + $0x650] sm:$0xff] %v744
        %1160 = vst [vmem:[#allocation4 + $0x658] sm:$0xff] %v745
        %1161 = vst [vmem:[#allocation4 + $0x660] sm:$0xff] %v746
        %1162 = vst [vmem:[#allocation4 + $0x668] sm:$0xff] %v747
        %1163 = vst [vmem:[#allocation4 + $0x670] sm:$0xff] %v1031
        %1164 = vst [vmem:[#allocation4 + $0x678] sm:$0xff] %v1145
        %1165 = vst [vmem:[#allocation4 + $0x680] sm:$0xff] %v750
        %1166 = vst [vmem:[#allocation4 + $0x688] sm:$0xff] %v751
        %1167 = vst [vmem:[#allocation4 + $0x690] sm:$0xff] %v752
        %1168 = vst [vmem:[#allocation4 + $0x698] sm:$0xff] %v753
        %1169 = vst [vmem:[#allocation4 + $0x6a0] sm:$0xff] %v754
        %1170 = vst [vmem:[#allocation4 + $0x6a8] sm:$0xff] %v755
        %1171 = vst [vmem:[#allocation4 + $0x6b0] sm:$0xff] %v756
        %1172 = vst [vmem:[#allocation4 + $0x6b8] sm:$0xff] %v757
        %1173 = vst [vmem:[#allocation4 + $0x6c0] sm:$0xff] %v758
        %1174 = vst [vmem:[#allocation4 + $0x6c8] sm:$0xff] %v759
        %1175 = vst [vmem:[#allocation4 + $0x6d0] sm:$0xff] %v760
        %1176 = vst [vmem:[#allocation4 + $0x6d8] sm:$0xff] %v761
        %1177 = vst [vmem:[#allocation4 + $0x6e0] sm:$0xff] %v762
        %1178 = vst [vmem:[#allocation4 + $0x6e8] sm:$0xff] %v763
        %1179 = vst [vmem:[#allocation4 + $0x6f0] sm:$0xff] %v1032
        %1180 = vst [vmem:[#allocation4 + $0x6f8] sm:$0xff] %v1146
        %1181 = vst [vmem:[#allocation4 + $0x700] sm:$0xff] %v592
        %1182 = vst [vmem:[#allocation4 + $0x708] sm:$0xff] %v593
        %1183 = vst [vmem:[#allocation4 + $0x710] sm:$0xff] %v594
        %1184 = vst [vmem:[#allocation4 + $0x718] sm:$0xff] %v595
        %1185 = vst [vmem:[#allocation4 + $0x720] sm:$0xff] %v596
        %1186 = vst [vmem:[#allocation4 + $0x728] sm:$0xff] %v597
        %1187 = vst [vmem:[#allocation4 + $0x730] sm:$0xff] %v598
        %1188 = vst [vmem:[#allocation4 + $0x738] sm:$0xff] %v599
        %1189 = vst [vmem:[#allocation4 + $0x740] sm:$0xff] %v600
        %1190 = vst [vmem:[#allocation4 + $0x748] sm:$0xff] %v601
        %1191 = vst [vmem:[#allocation4 + $0x750] sm:$0xff] %v602
        %1192 = vst [vmem:[#allocation4 + $0x758] sm:$0xff] %v603
        %1193 = vst [vmem:[#allocation4 + $0x760] sm:$0xff] %v604
        %1194 = vst [vmem:[#allocation4 + $0x768] sm:$0xff] %v605
        %1195 = vst [vmem:[#allocation4 + $0x770] sm:$0xff] %v606
        %1196 = vst [vmem:[#allocation4 + $0x778] sm:$0xff] %v607
        %1197 = vst [vmem:[#allocation4 + $0x780] sm:$0xff] %v612
        %1198 = vst [vmem:[#allocation4 + $0x788] sm:$0xff] %v613
        %1199 = vst [vmem:[#allocation4 + $0x790] sm:$0xff] %v614
        %1200 = vst [vmem:[#allocation4 + $0x798] sm:$0xff] %v615
        %1201 = vst [vmem:[#allocation4 + $0x7a0] sm:$0xff] %v616
        %1202 = vst [vmem:[#allocation4 + $0x7a8] sm:$0xff] %v617
        %1203 = vst [vmem:[#allocation4 + $0x7b0] sm:$0xff] %v618
        %1204 = vst [vmem:[#allocation4 + $0x7b8] sm:$0xff] %v619
        %1205 = vst [vmem:[#allocation4 + $0x7c0] sm:$0xff] %v620
        %1206 = vst [vmem:[#allocation4 + $0x7c8] sm:$0xff] %v621
        %1207 = vst [vmem:[#allocation4 + $0x7d0] sm:$0xff] %v622
        %1208 = vst [vmem:[#allocation4 + $0x7d8] sm:$0xff] %v623
        %1209 = vst [vmem:[#allocation4 + $0x7e0] sm:$0xff] %v624
        %1210 = vst [vmem:[#allocation4 + $0x7e8] sm:$0xff] %v625
        %1211 = vst [vmem:[#allocation4 + $0x7f0] sm:$0xff] %v626
        %1212 = vst [vmem:[#allocation4 + $0x7f8] sm:$0xff] %v627
        %1215 = vrot.lane.b32.xlu0 %v608, 127
        %v1216 = vpop.permute.xlu0 %1215
        %1217 = vrot.lane.b32.xlu0 %v628, 127
        %v1218 = vpop.permute.xlu0 %1217
        %v1219 = vsel %vm930, %v1102, %v1216
        %v1220 = vsel %vm930, %v1104, %v1218
        %1223 = vst [vmem:[#allocation4 + $0x800] sm:$0xff] %v933
        %1224 = vst [vmem:[#allocation4 + $0x808] sm:$0xff] %v934
        %1225 = vst [vmem:[#allocation4 + $0x810] sm:$0xff] %v935
        %1226 = vst [vmem:[#allocation4 + $0x818] sm:$0xff] %v936
        %1227 = vst [vmem:[#allocation4 + $0x820] sm:$0xff] %v937
        %1228 = vst [vmem:[#allocation4 + $0x828] sm:$0xff] %v938
        %1229 = vst [vmem:[#allocation4 + $0x830] sm:$0xff] %v939
        %1230 = vst [vmem:[#allocation4 + $0x838] sm:$0xff] %v940
        %1231 = vst [vmem:[#allocation4 + $0x840] sm:$0xff] %v941
        %1232 = vst [vmem:[#allocation4 + $0x848] sm:$0xff] %v942
        %1233 = vst [vmem:[#allocation4 + $0x850] sm:$0xff] %v943
        %1234 = vst [vmem:[#allocation4 + $0x858] sm:$0xff] %v944
        %1235 = vst [vmem:[#allocation4 + $0x860] sm:$0xff] %v945
        %1236 = vst [vmem:[#allocation4 + $0x868] sm:$0xff] %v946
        %1237 = vst [vmem:[#allocation4 + $0x870] sm:$0xff] %v1105
        %1238 = vst [vmem:[#allocation4 + $0x878] sm:$0xff] %v1219
        %1239 = vst [vmem:[#allocation4 + $0x880] sm:$0xff] %v949
        %1240 = vst [vmem:[#allocation4 + $0x888] sm:$0xff] %v950
        %1241 = vst [vmem:[#allocation4 + $0x890] sm:$0xff] %v951
        %1242 = vst [vmem:[#allocation4 + $0x898] sm:$0xff] %v952
        %1243 = vst [vmem:[#allocation4 + $0x8a0] sm:$0xff] %v953
        %1244 = vst [vmem:[#allocation4 + $0x8a8] sm:$0xff] %v954
        %1245 = vst [vmem:[#allocation4 + $0x8b0] sm:$0xff] %v955
        %1246 = vst [vmem:[#allocation4 + $0x8b8] sm:$0xff] %v956
        %1247 = vst [vmem:[#allocation4 + $0x8c0] sm:$0xff] %v957
        %1248 = vst [vmem:[#allocation4 + $0x8c8] sm:$0xff] %v958
        %1249 = vst [vmem:[#allocation4 + $0x8d0] sm:$0xff] %v959
        %1250 = vst [vmem:[#allocation4 + $0x8d8] sm:$0xff] %v960
        %1251 = vst [vmem:[#allocation4 + $0x8e0] sm:$0xff] %v961
        %1252 = vst [vmem:[#allocation4 + $0x8e8] sm:$0xff] %v962
        %1253 = vst [vmem:[#allocation4 + $0x8f0] sm:$0xff] %v1106
        %1254 = vst [vmem:[#allocation4 + $0x8f8] sm:$0xff] %v1220
        %v1255 = vld [vmem:[#allocation9] sm:$0xff]
        %v1256 = vld [vmem:[#allocation9 + $0x8] sm:$0xff]
        %v1257 = vld [vmem:[#allocation9 + $0x10] sm:$0xff]
        %v1258 = vld [vmem:[#allocation9 + $0x18] sm:$0xff]
        %v1259 = vld [vmem:[#allocation9 + $0x20] sm:$0xff]
        %v1260 = vld [vmem:[#allocation9 + $0x28] sm:$0xff]
        %v1261 = vld [vmem:[#allocation4] sm:$0xff]
        %v1262 = vld [vmem:[#allocation4 + $0x8] sm:$0xff]
        %v1263 = vld [vmem:[#allocation4 + $0x10] sm:$0xff]
        %v1264 = vld [vmem:[#allocation4 + $0x18] sm:$0xff]
        %v1265 = vld [vmem:[#allocation4 + $0x20] sm:$0xff]
        %v1266 = vld [vmem:[#allocation4 + $0x28] sm:$0xff]
        %v1267 = vld [vmem:[#allocation4 + $0x30] sm:$0xff]
        %v1268 = vld [vmem:[#allocation4 + $0x38] sm:$0xff]
        %v1269 = vld [vmem:[#allocation4 + $0x40] sm:$0xff]
        %v1270 = vld [vmem:[#allocation4 + $0x48] sm:$0xff]
        %v1271 = vld [vmem:[#allocation4 + $0x50] sm:$0xff]
        %v1272 = vld [vmem:[#allocation4 + $0x58] sm:$0xff]
        %v1273 = vld [vmem:[#allocation4 + $0x60] sm:$0xff]
        %v1274 = vld [vmem:[#allocation4 + $0x68] sm:$0xff]
        %v1275 = vld [vmem:[#allocation4 + $0x70] sm:$0xff]
        %v1276 = vld [vmem:[#allocation4 + $0x78] sm:$0xff]
        %v1277 = vld [vmem:[#allocation4 + $0x80] sm:$0xff]
        %v1278 = vld [vmem:[#allocation4 + $0x88] sm:$0xff]
        %v1279 = vld [vmem:[#allocation4 + $0x90] sm:$0xff]
        %v1280 = vld [vmem:[#allocation4 + $0x98] sm:$0xff]
        %v1281 = vld [vmem:[#allocation4 + $0xa0] sm:$0xff]
        %v1282 = vld [vmem:[#allocation4 + $0xa8] sm:$0xff]
        %v1283 = vld [vmem:[#allocation4 + $0xb0] sm:$0xff]
        %v1284 = vld [vmem:[#allocation4 + $0xb8] sm:$0xff]
        %v1285 = vld [vmem:[#allocation4 + $0xc0] sm:$0xff]
        %v1286 = vld [vmem:[#allocation4 + $0xc8] sm:$0xff]
        %v1287 = vld [vmem:[#allocation4 + $0xd0] sm:$0xff]
        %v1288 = vld [vmem:[#allocation4 + $0xd8] sm:$0xff]
        %v1289 = vld [vmem:[#allocation4 + $0xe0] sm:$0xff]
        %v1290 = vld [vmem:[#allocation4 + $0xe8] sm:$0xff]
        %v1291 = vld [vmem:[#allocation4 + $0xf0] sm:$0xff]
        %v1292 = vld [vmem:[#allocation4 + $0xf8] sm:$0xff]
        %v1293 = vld [vmem:[#allocation4 + $0x100] sm:$0xff]
        %v1294 = vld [vmem:[#allocation4 + $0x108] sm:$0xff]
        %v1295 = vld [vmem:[#allocation4 + $0x110] sm:$0xff]
        %v1296 = vld [vmem:[#allocation4 + $0x118] sm:$0xff]
        %v1297 = vld [vmem:[#allocation4 + $0x120] sm:$0xff]
        %v1298 = vld [vmem:[#allocation4 + $0x128] sm:$0xff]
        %v1299 = vld [vmem:[#allocation4 + $0x130] sm:$0xff]
        %v1300 = vld [vmem:[#allocation4 + $0x138] sm:$0xff]
        %v1301 = vld [vmem:[#allocation4 + $0x140] sm:$0xff]
        %v1302 = vld [vmem:[#allocation4 + $0x148] sm:$0xff]
        %v1303 = vld [vmem:[#allocation4 + $0x150] sm:$0xff]
        %v1304 = vld [vmem:[#allocation4 + $0x158] sm:$0xff]
        %v1305 = vld [vmem:[#allocation4 + $0x160] sm:$0xff]
        %v1306 = vld [vmem:[#allocation4 + $0x168] sm:$0xff]
        %v1307 = vld [vmem:[#allocation4 + $0x170] sm:$0xff]
        %v1308 = vld [vmem:[#allocation4 + $0x178] sm:$0xff]
        %v1309 = vld [vmem:[#allocation4 + $0x180] sm:$0xff]
        %v1310 = vld [vmem:[#allocation4 + $0x188] sm:$0xff]
        %v1311 = vld [vmem:[#allocation4 + $0x190] sm:$0xff]
        %v1312 = vld [vmem:[#allocation4 + $0x198] sm:$0xff]
        %v1313 = vld [vmem:[#allocation4 + $0x1a0] sm:$0xff]
        %v1314 = vld [vmem:[#allocation4 + $0x1a8] sm:$0xff]
        %v1315 = vld [vmem:[#allocation4 + $0x1b0] sm:$0xff]
        %v1316 = vld [vmem:[#allocation4 + $0x1b8] sm:$0xff]
        %v1317 = vld [vmem:[#allocation4 + $0x1c0] sm:$0xff]
        %v1318 = vld [vmem:[#allocation4 + $0x1c8] sm:$0xff]
        %v1319 = vld [vmem:[#allocation4 + $0x1d0] sm:$0xff]
        %v1320 = vld [vmem:[#allocation4 + $0x1d8] sm:$0xff]
        %v1321 = vld [vmem:[#allocation4 + $0x1e0] sm:$0xff]
        %v1322 = vld [vmem:[#allocation4 + $0x1e8] sm:$0xff]
        %v1323 = vld [vmem:[#allocation4 + $0x1f0] sm:$0xff]
        %v1324 = vld [vmem:[#allocation4 + $0x1f8] sm:$0xff]
        %v1325 = vld [vmem:[#allocation4 + $0x200] sm:$0xff]
        %v1326 = vld [vmem:[#allocation4 + $0x208] sm:$0xff]
        %v1327 = vld [vmem:[#allocation4 + $0x210] sm:$0xff]
        %v1328 = vld [vmem:[#allocation4 + $0x218] sm:$0xff]
        %v1329 = vld [vmem:[#allocation4 + $0x220] sm:$0xff]
        %v1330 = vld [vmem:[#allocation4 + $0x228] sm:$0xff]
        %v1331 = vld [vmem:[#allocation4 + $0x230] sm:$0xff]
        %v1332 = vld [vmem:[#allocation4 + $0x238] sm:$0xff]
        %v1333 = vld [vmem:[#allocation4 + $0x240] sm:$0xff]
        %v1334 = vld [vmem:[#allocation4 + $0x248] sm:$0xff]
        %v1335 = vld [vmem:[#allocation4 + $0x250] sm:$0xff]
        %v1336 = vld [vmem:[#allocation4 + $0x258] sm:$0xff]
        %v1337 = vld [vmem:[#allocation4 + $0x260] sm:$0xff]
        %v1338 = vld [vmem:[#allocation4 + $0x268] sm:$0xff]
        %v1339 = vld [vmem:[#allocation4 + $0x270] sm:$0xff]
        %v1340 = vld [vmem:[#allocation4 + $0x278] sm:$0xff]
        %v1341 = vld [vmem:[#allocation4 + $0x280] sm:$0xff]
        %v1342 = vld [vmem:[#allocation4 + $0x288] sm:$0xff]
        %v1343 = vld [vmem:[#allocation4 + $0x290] sm:$0xff]
        %v1344 = vld [vmem:[#allocation4 + $0x298] sm:$0xff]
        %v1345 = vld [vmem:[#allocation4 + $0x2a0] sm:$0xff]
        %v1346 = vld [vmem:[#allocation4 + $0x2a8] sm:$0xff]
        %v1347 = vld [vmem:[#allocation4 + $0x2b0] sm:$0xff]
        %v1348 = vld [vmem:[#allocation4 + $0x2b8] sm:$0xff]
        %v1349 = vld [vmem:[#allocation4 + $0x2c0] sm:$0xff]
        %v1350 = vld [vmem:[#allocation4 + $0x2c8] sm:$0xff]
        %v1351 = vld [vmem:[#allocation4 + $0x2d0] sm:$0xff]
        %v1352 = vld [vmem:[#allocation4 + $0x2d8] sm:$0xff]
        %v1353 = vld [vmem:[#allocation4 + $0x2e0] sm:$0xff]
        %v1354 = vld [vmem:[#allocation4 + $0x2e8] sm:$0xff]
        %v1355 = vld [vmem:[#allocation4 + $0x2f0] sm:$0xff]
        %v1356 = vld [vmem:[#allocation4 + $0x2f8] sm:$0xff]
        %v1357 = vld [vmem:[#allocation4 + $0x300] sm:$0xff]
        %v1358 = vld [vmem:[#allocation4 + $0x308] sm:$0xff]
        %v1359 = vld [vmem:[#allocation4 + $0x310] sm:$0xff]
        %v1360 = vld [vmem:[#allocation4 + $0x318] sm:$0xff]
        %v1361 = vld [vmem:[#allocation4 + $0x320] sm:$0xff]
        %v1362 = vld [vmem:[#allocation4 + $0x328] sm:$0xff]
        %v1363 = vld [vmem:[#allocation4 + $0x330] sm:$0xff]
        %v1364 = vld [vmem:[#allocation4 + $0x338] sm:$0xff]
        %v1365 = vld [vmem:[#allocation4 + $0x340] sm:$0xff]
        %v1366 = vld [vmem:[#allocation4 + $0x348] sm:$0xff]
        %v1367 = vld [vmem:[#allocation4 + $0x350] sm:$0xff]
        %v1368 = vld [vmem:[#allocation4 + $0x358] sm:$0xff]
        %v1369 = vld [vmem:[#allocation4 + $0x360] sm:$0xff]
        %v1370 = vld [vmem:[#allocation4 + $0x368] sm:$0xff]
        %v1371 = vld [vmem:[#allocation4 + $0x370] sm:$0xff]
        %v1372 = vld [vmem:[#allocation4 + $0x378] sm:$0xff]
        %v1373 = vld [vmem:[#allocation4 + $0x380] sm:$0xff]
        %v1374 = vld [vmem:[#allocation4 + $0x388] sm:$0xff]
        %v1375 = vld [vmem:[#allocation4 + $0x390] sm:$0xff]
        %v1376 = vld [vmem:[#allocation4 + $0x398] sm:$0xff]
        %v1377 = vld [vmem:[#allocation4 + $0x3a0] sm:$0xff]
        %v1378 = vld [vmem:[#allocation4 + $0x3a8] sm:$0xff]
        %v1379 = vld [vmem:[#allocation4 + $0x3b0] sm:$0xff]
        %v1380 = vld [vmem:[#allocation4 + $0x3b8] sm:$0xff]
        %v1381 = vld [vmem:[#allocation4 + $0x3c0] sm:$0xff]
        %v1382 = vld [vmem:[#allocation4 + $0x3c8] sm:$0xff]
        %v1383 = vld [vmem:[#allocation4 + $0x3d0] sm:$0xff]
        %v1384 = vld [vmem:[#allocation4 + $0x3d8] sm:$0xff]
        %v1385 = vld [vmem:[#allocation4 + $0x3e0] sm:$0xff]
        %v1386 = vld [vmem:[#allocation4 + $0x3e8] sm:$0xff]
        %v1387 = vld [vmem:[#allocation4 + $0x3f0] sm:$0xff]
        %v1388 = vld [vmem:[#allocation4 + $0x3f8] sm:$0xff]
        %v1389 = vld [vmem:[#allocation4 + $0x400] sm:$0xff]
        %v1390 = vld [vmem:[#allocation4 + $0x408] sm:$0xff]
        %v1391 = vld [vmem:[#allocation4 + $0x410] sm:$0xff]
        %v1392 = vld [vmem:[#allocation4 + $0x418] sm:$0xff]
        %v1393 = vld [vmem:[#allocation4 + $0x420] sm:$0xff]
        %v1394 = vld [vmem:[#allocation4 + $0x428] sm:$0xff]
        %v1395 = vld [vmem:[#allocation4 + $0x430] sm:$0xff]
        %v1396 = vld [vmem:[#allocation4 + $0x438] sm:$0xff]
        %v1397 = vld [vmem:[#allocation4 + $0x440] sm:$0xff]
        %v1398 = vld [vmem:[#allocation4 + $0x448] sm:$0xff]
        %v1399 = vld [vmem:[#allocation4 + $0x450] sm:$0xff]
        %v1400 = vld [vmem:[#allocation4 + $0x458] sm:$0xff]
        %v1401 = vld [vmem:[#allocation4 + $0x460] sm:$0xff]
        %v1402 = vld [vmem:[#allocation4 + $0x468] sm:$0xff]
        %v1403 = vld [vmem:[#allocation4 + $0x470] sm:$0xff]
        %v1404 = vld [vmem:[#allocation4 + $0x478] sm:$0xff]
        %v1405 = vld [vmem:[#allocation4 + $0x480] sm:$0xff]
        %v1406 = vld [vmem:[#allocation4 + $0x488] sm:$0xff]
        %v1407 = vld [vmem:[#allocation4 + $0x490] sm:$0xff]
        %v1408 = vld [vmem:[#allocation4 + $0x498] sm:$0xff]
        %v1409 = vld [vmem:[#allocation4 + $0x4a0] sm:$0xff]
        %v1410 = vld [vmem:[#allocation4 + $0x4a8] sm:$0xff]
        %v1411 = vld [vmem:[#allocation4 + $0x4b0] sm:$0xff]
        %v1412 = vld [vmem:[#allocation4 + $0x4b8] sm:$0xff]
        %v1413 = vld [vmem:[#allocation4 + $0x4c0] sm:$0xff]
        %v1414 = vld [vmem:[#allocation4 + $0x4c8] sm:$0xff]
        %v1415 = vld [vmem:[#allocation4 + $0x4d0] sm:$0xff]
        %v1416 = vld [vmem:[#allocation4 + $0x4d8] sm:$0xff]
        %v1417 = vld [vmem:[#allocation4 + $0x4e0] sm:$0xff]
        %v1418 = vld [vmem:[#allocation4 + $0x4e8] sm:$0xff]
        %v1419 = vld [vmem:[#allocation4 + $0x4f0] sm:$0xff]
        %v1420 = vld [vmem:[#allocation4 + $0x4f8] sm:$0xff]
        %v1421 = vld [vmem:[#allocation4 + $0x500] sm:$0xff]
        %v1422 = vld [vmem:[#allocation4 + $0x508] sm:$0xff]
        %v1423 = vld [vmem:[#allocation4 + $0x510] sm:$0xff]
        %v1424 = vld [vmem:[#allocation4 + $0x518] sm:$0xff]
        %v1425 = vld [vmem:[#allocation4 + $0x520] sm:$0xff]
        %v1426 = vld [vmem:[#allocation4 + $0x528] sm:$0xff]
        %v1427 = vld [vmem:[#allocation4 + $0x530] sm:$0xff]
        %v1428 = vld [vmem:[#allocation4 + $0x538] sm:$0xff]
        %v1429 = vld [vmem:[#allocation4 + $0x540] sm:$0xff]
        %v1430 = vld [vmem:[#allocation4 + $0x548] sm:$0xff]
        %v1431 = vld [vmem:[#allocation4 + $0x550] sm:$0xff]
        %v1432 = vld [vmem:[#allocation4 + $0x558] sm:$0xff]
        %v1433 = vld [vmem:[#allocation4 + $0x560] sm:$0xff]
        %v1434 = vld [vmem:[#allocation4 + $0x568] sm:$0xff]
        %v1435 = vld [vmem:[#allocation4 + $0x570] sm:$0xff]
        %v1436 = vld [vmem:[#allocation4 + $0x578] sm:$0xff]
        %v1437 = vld [vmem:[#allocation4 + $0x580] sm:$0xff]
        %v1438 = vld [vmem:[#allocation4 + $0x588] sm:$0xff]
        %v1439 = vld [vmem:[#allocation4 + $0x590] sm:$0xff]
        %v1440 = vld [vmem:[#allocation4 + $0x598] sm:$0xff]
        %v1441 = vld [vmem:[#allocation4 + $0x5a0] sm:$0xff]
        %v1442 = vld [vmem:[#allocation4 + $0x5a8] sm:$0xff]
        %v1443 = vld [vmem:[#allocation4 + $0x5b0] sm:$0xff]
        %v1444 = vld [vmem:[#allocation4 + $0x5b8] sm:$0xff]
        %v1445 = vld [vmem:[#allocation4 + $0x5c0] sm:$0xff]
        %v1446 = vld [vmem:[#allocation4 + $0x5c8] sm:$0xff]
        %v1447 = vld [vmem:[#allocation4 + $0x5d0] sm:$0xff]
        %v1448 = vld [vmem:[#allocation4 + $0x5d8] sm:$0xff]
        %v1449 = vld [vmem:[#allocation4 + $0x5e0] sm:$0xff]
        %v1450 = vld [vmem:[#allocation4 + $0x5e8] sm:$0xff]
        %v1451 = vld [vmem:[#allocation4 + $0x5f0] sm:$0xff]
        %v1452 = vld [vmem:[#allocation4 + $0x5f8] sm:$0xff]
        %v1453 = vld [vmem:[#allocation4 + $0x600] sm:$0xff]
        %v1454 = vld [vmem:[#allocation4 + $0x608] sm:$0xff]
        %v1455 = vld [vmem:[#allocation4 + $0x610] sm:$0xff]
        %v1456 = vld [vmem:[#allocation4 + $0x618] sm:$0xff]
        %v1457 = vld [vmem:[#allocation4 + $0x620] sm:$0xff]
        %v1458 = vld [vmem:[#allocation4 + $0x628] sm:$0xff]
        %v1459 = vld [vmem:[#allocation4 + $0x630] sm:$0xff]
        %v1460 = vld [vmem:[#allocation4 + $0x638] sm:$0xff]
        %v1461 = vld [vmem:[#allocation4 + $0x640] sm:$0xff]
        %v1462 = vld [vmem:[#allocation4 + $0x648] sm:$0xff]
        %v1463 = vld [vmem:[#allocation4 + $0x650] sm:$0xff]
        %v1464 = vld [vmem:[#allocation4 + $0x658] sm:$0xff]
        %v1465 = vld [vmem:[#allocation4 + $0x660] sm:$0xff]
        %v1466 = vld [vmem:[#allocation4 + $0x668] sm:$0xff]
        %v1467 = vld [vmem:[#allocation4 + $0x670] sm:$0xff]
        %v1468 = vld [vmem:[#allocation4 + $0x678] sm:$0xff]
        %v1469 = vld [vmem:[#allocation4 + $0x680] sm:$0xff]
        %v1470 = vld [vmem:[#allocation4 + $0x688] sm:$0xff]
        %v1471 = vld [vmem:[#allocation4 + $0x690] sm:$0xff]
        %v1472 = vld [vmem:[#allocation4 + $0x698] sm:$0xff]
        %v1473 = vld [vmem:[#allocation4 + $0x6a0] sm:$0xff]
        %v1474 = vld [vmem:[#allocation4 + $0x6a8] sm:$0xff]
        %v1475 = vld [vmem:[#allocation4 + $0x6b0] sm:$0xff]
        %v1476 = vld [vmem:[#allocation4 + $0x6b8] sm:$0xff]
        %v1477 = vld [vmem:[#allocation4 + $0x6c0] sm:$0xff]
        %v1478 = vld [vmem:[#allocation4 + $0x6c8] sm:$0xff]
        %v1479 = vld [vmem:[#allocation4 + $0x6d0] sm:$0xff]
        %v1480 = vld [vmem:[#allocation4 + $0x6d8] sm:$0xff]
        %v1481 = vld [vmem:[#allocation4 + $0x6e0] sm:$0xff]
        %v1482 = vld [vmem:[#allocation4 + $0x6e8] sm:$0xff]
        %v1483 = vld [vmem:[#allocation4 + $0x6f0] sm:$0xff]
        %v1484 = vld [vmem:[#allocation4 + $0x6f8] sm:$0xff]
        %v1485 = vld [vmem:[#allocation4 + $0x700] sm:$0xff]
        %v1486 = vld [vmem:[#allocation4 + $0x708] sm:$0xff]
        %v1487 = vld [vmem:[#allocation4 + $0x710] sm:$0xff]
        %v1488 = vld [vmem:[#allocation4 + $0x718] sm:$0xff]
        %v1489 = vld [vmem:[#allocation4 + $0x720] sm:$0xff]
        %v1490 = vld [vmem:[#allocation4 + $0x728] sm:$0xff]
        %v1491 = vld [vmem:[#allocation4 + $0x730] sm:$0xff]
        %v1492 = vld [vmem:[#allocation4 + $0x738] sm:$0xff]
        %v1493 = vld [vmem:[#allocation4 + $0x740] sm:$0xff]
        %v1494 = vld [vmem:[#allocation4 + $0x748] sm:$0xff]
        %v1495 = vld [vmem:[#allocation4 + $0x750] sm:$0xff]
        %v1496 = vld [vmem:[#allocation4 + $0x758] sm:$0xff]
        %v1497 = vld [vmem:[#allocation4 + $0x760] sm:$0xff]
        %v1498 = vld [vmem:[#allocation4 + $0x768] sm:$0xff]
        %v1499 = vld [vmem:[#allocation4 + $0x770] sm:$0xff]
        %v1500 = vld [vmem:[#allocation4 + $0x778] sm:$0xff]
        %v1501 = vld [vmem:[#allocation4 + $0x780] sm:$0xff]
        %v1502 = vld [vmem:[#allocation4 + $0x788] sm:$0xff]
        %v1503 = vld [vmem:[#allocation4 + $0x790] sm:$0xff]
        %v1504 = vld [vmem:[#allocation4 + $0x798] sm:$0xff]
        %v1505 = vld [vmem:[#allocation4 + $0x7a0] sm:$0xff]
        %v1506 = vld [vmem:[#allocation4 + $0x7a8] sm:$0xff]
        %v1507 = vld [vmem:[#allocation4 + $0x7b0] sm:$0xff]
        %v1508 = vld [vmem:[#allocation4 + $0x7b8] sm:$0xff]
        %v1509 = vld [vmem:[#allocation4 + $0x7c0] sm:$0xff]
        %v1510 = vld [vmem:[#allocation4 + $0x7c8] sm:$0xff]
        %v1511 = vld [vmem:[#allocation4 + $0x7d0] sm:$0xff]
        %v1512 = vld [vmem:[#allocation4 + $0x7d8] sm:$0xff]
        %v1513 = vld [vmem:[#allocation4 + $0x7e0] sm:$0xff]
        %v1514 = vld [vmem:[#allocation4 + $0x7e8] sm:$0xff]
        %v1515 = vld [vmem:[#allocation4 + $0x7f0] sm:$0xff]
        %v1516 = vld [vmem:[#allocation4 + $0x7f8] sm:$0xff]
        %v1517 = vld [vmem:[#allocation4 + $0x800] sm:$0xff]
        %v1518 = vld [vmem:[#allocation4 + $0x808] sm:$0xff]
        %v1519 = vld [vmem:[#allocation4 + $0x810] sm:$0xff]
        %v1520 = vld [vmem:[#allocation4 + $0x818] sm:$0xff]
        %v1521 = vld [vmem:[#allocation4 + $0x820] sm:$0xff]
        %v1522 = vld [vmem:[#allocation4 + $0x828] sm:$0xff]
        %v1523 = vld [vmem:[#allocation4 + $0x830] sm:$0xff]
        %v1524 = vld [vmem:[#allocation4 + $0x838] sm:$0xff]
        %v1525 = vld [vmem:[#allocation4 + $0x840] sm:$0xff]
        %v1526 = vld [vmem:[#allocation4 + $0x848] sm:$0xff]
        %v1527 = vld [vmem:[#allocation4 + $0x850] sm:$0xff]
        %v1528 = vld [vmem:[#allocation4 + $0x858] sm:$0xff]
        %v1529 = vld [vmem:[#allocation4 + $0x860] sm:$0xff]
        %v1530 = vld [vmem:[#allocation4 + $0x868] sm:$0xff]
        %v1531 = vld [vmem:[#allocation4 + $0x870] sm:$0xff]
        %v1532 = vld [vmem:[#allocation4 + $0x878] sm:$0xff]
        %v1533 = vld [vmem:[#allocation4 + $0x880] sm:$0xff]
        %v1534 = vld [vmem:[#allocation4 + $0x888] sm:$0xff]
        %v1535 = vld [vmem:[#allocation4 + $0x890] sm:$0xff]
        %v1536 = vld [vmem:[#allocation4 + $0x898] sm:$0xff]
        %v1537 = vld [vmem:[#allocation4 + $0x8a0] sm:$0xff]
        %v1538 = vld [vmem:[#allocation4 + $0x8a8] sm:$0xff]
        %v1539 = vld [vmem:[#allocation4 + $0x8b0] sm:$0xff]
        %v1540 = vld [vmem:[#allocation4 + $0x8b8] sm:$0xff]
        %v1541 = vld [vmem:[#allocation4 + $0x8c0] sm:$0xff]
        %v1542 = vld [vmem:[#allocation4 + $0x8c8] sm:$0xff]
        %v1543 = vld [vmem:[#allocation4 + $0x8d0] sm:$0xff]
        %v1544 = vld [vmem:[#allocation4 + $0x8d8] sm:$0xff]
        %v1545 = vld [vmem:[#allocation4 + $0x8e0] sm:$0xff]
        %v1546 = vld [vmem:[#allocation4 + $0x8e8] sm:$0xff]
        %v1547 = vld [vmem:[#allocation4 + $0x8f0] sm:$0xff]
        %v1548 = vld [vmem:[#allocation4 + $0x8f8] sm:$0xff]
        %v1549 = vld [vmem:[%s2] sm:$0xff]
        %v1550 = vld [vmem:[%s2 + $0x8] sm:$0xff]
        %v1551 = vld [vmem:[%s2 + $0x10] sm:$0xff]
        %1553 = vset.pattern.permute.xlu0 0
        %1554 = vperm.xlu0 %1553, %v1549
        %v1555 = vpop.permute.xlu0 %1554
        %1558 = vset.pattern.permute.xlu0 0
        %1559 = vperm.xlu0 %1558, %v1550
        %v1560 = vpop.permute.xlu0 %1559
        %1563 = vset.pattern.permute.xlu0 0
        %1564 = vperm.xlu0 %1563, %v1551
        %v1565 = vpop.permute.xlu0 %1564
        %vm1567 = vcmask 130048
        %v1569 = vsel %vm1567, %v1256, 0
        %v1572 = vsel %vm1567, %v1258, 0
        %v1575 = vsel %vm1567, %v1260, 0
        %1577 = vmatpush.msra.mxu0 %v1501
        %1578 = vmatpush.msra.mxu0 %v1485
        %1579 = vmatpush.msra.mxu0 %v1469
        %1580 = vmatpush.msra.mxu0 %v1453
        %1581 = vmatpush.msra.mxu0 %v1437
        %1582 = vmatpush.msra.mxu0 %v1421
        %1583 = vmatpush.msra.mxu0 %v1405
        %1584 = vmatpush.msra.mxu0 %v1389
        %1585 = vmatpush.msra.mxu0 %v1373
        %1586 = vmatpush.msra.mxu0 %v1357
        %1587 = vmatpush.msra.mxu0 %v1341
        %1588 = vmatpush.msra.mxu0 %v1325
        %1589 = vmatpush.msra.mxu0 %v1309
        %1590 = vmatpush.msra.mxu0 %v1293
        %1591 = vmatpush.msra.mxu0 %v1277
        %1592 = vmatpush.msra.mxu0 %v1261
        %1593 = vmatmul.f32.gmra.mxu0 %v1255
        %v1594 = vpop.f32.mrf.mxu0
        %v1595 = vadd.f32 %v1555, %v1594
        %1596 = vmatmul.f32.gmra.mxu0 %v1257
        %v1597 = vpop.f32.mrf.mxu0
        %v1598 = vadd.f32 %v1560, %v1597
        %1599 = vmatmul.f32.gmra.mxu0 %v1259
        %v1600 = vpop.f32.mrf.mxu0
        %v1601 = vadd.f32 %v1565, %v1600
        %1602 = vdwg.mxu0
        %1603 = vmatpush.msra.mxu0 0.0
        %1604 = vmatpush.msra.mxu0 0.0
        %1605 = vmatpush.msra.mxu0 0.0
        %1606 = vmatpush.msra.mxu0 0.0
        %1607 = vmatpush.msra.mxu0 0.0
        %1608 = vmatpush.msra.mxu0 0.0
        %1609 = vmatpush.msra.mxu0 0.0
        %1610 = vmatpush.msra.mxu0 0.0
        %1611 = vmatpush.msra.mxu0 0.0
        %1612 = vmatpush.msra.mxu0 0.0
        %1613 = vmatpush.msra.mxu0 0.0
        %1614 = vmatpush.msra.mxu0 0.0
        %1615 = vmatpush.msra.mxu0 0.0
        %1616 = vmatpush.msra.mxu0 0.0
        %1617 = vmatpush.msra.mxu0 %v1533
        %1618 = vmatpush.msra.mxu0 %v1517
        %1619 = vmatmul.f32.gmra.mxu0 %v1569
        %v1620 = vpop.f32.mrf.mxu0
        %v1621 = vadd.f32 %v1595, %v1620
        %1622 = vmatmul.f32.gmra.mxu0 %v1572
        %v1623 = vpop.f32.mrf.mxu0
        %v1624 = vadd.f32 %v1598, %v1623
        %1625 = vmatmul.f32.gmra.mxu0 %v1575
        %v1626 = vpop.f32.mrf.mxu0
        %v1627 = vadd.f32 %v1601, %v1626
        %1628 = vdwg.mxu0
        %1629 = vmatpush.msra.mxu0 %v1502
        %1630 = vmatpush.msra.mxu0 %v1486
        %1631 = vmatpush.msra.mxu0 %v1470
        %1632 = vmatpush.msra.mxu0 %v1454
        %1633 = vmatpush.msra.mxu0 %v1438
        %1634 = vmatpush.msra.mxu0 %v1422
        %1635 = vmatpush.msra.mxu0 %v1406
        %1636 = vmatpush.msra.mxu0 %v1390
        %1637 = vmatpush.msra.mxu0 %v1374
        %1638 = vmatpush.msra.mxu0 %v1358
        %1639 = vmatpush.msra.mxu0 %v1342
        %1640 = vmatpush.msra.mxu0 %v1326
        %1641 = vmatpush.msra.mxu0 %v1310
        %1642 = vmatpush.msra.mxu0 %v1294
        %1643 = vmatpush.msra.mxu0 %v1278
        %1644 = vmatpush.msra.mxu0 %v1262
        %1645 = vmatmul.f32.gmra.mxu0 %v1255
        %v1646 = vpop.f32.mrf.mxu0
        %v1647 = vadd.f32 %v1555, %v1646
        %1648 = vmatmul.f32.gmra.mxu0 %v1257
        %v1649 = vpop.f32.mrf.mxu0
        %v1650 = vadd.f32 %v1560, %v1649
        %1651 = vmatmul.f32.gmra.mxu0 %v1259
        %v1652 = vpop.f32.mrf.mxu0
        %v1653 = vadd.f32 %v1565, %v1652
        %1654 = vdwg.mxu0
        %1655 = vmatpush.msra.mxu0 0.0
        %1656 = vmatpush.msra.mxu0 0.0
        %1657 = vmatpush.msra.mxu0 0.0
        %1658 = vmatpush.msra.mxu0 0.0
        %1659 = vmatpush.msra.mxu0 0.0
        %1660 = vmatpush.msra.mxu0 0.0
        %1661 = vmatpush.msra.mxu0 0.0
        %1662 = vmatpush.msra.mxu0 0.0
        %1663 = vmatpush.msra.mxu0 0.0
        %1664 = vmatpush.msra.mxu0 0.0
        %1665 = vmatpush.msra.mxu0 0.0
        %1666 = vmatpush.msra.mxu0 0.0
        %1667 = vmatpush.msra.mxu0 0.0
        %1668 = vmatpush.msra.mxu0 0.0
        %1669 = vmatpush.msra.mxu0 %v1534
        %1670 = vmatpush.msra.mxu0 %v1518
        %1671 = vmatmul.f32.gmra.mxu0 %v1569
        %v1672 = vpop.f32.mrf.mxu0
        %v1673 = vadd.f32 %v1647, %v1672
        %1674 = vmatmul.f32.gmra.mxu0 %v1572
        %v1675 = vpop.f32.mrf.mxu0
        %v1676 = vadd.f32 %v1650, %v1675
        %1677 = vmatmul.f32.gmra.mxu0 %v1575
        %v1678 = vpop.f32.mrf.mxu0
        %v1679 = vadd.f32 %v1653, %v1678
        %1680 = vdwg.mxu0
        %1681 = vmatpush.msra.mxu0 %v1503
        %1682 = vmatpush.msra.mxu0 %v1487
        %1683 = vmatpush.msra.mxu0 %v1471
        %1684 = vmatpush.msra.mxu0 %v1455
        %1685 = vmatpush.msra.mxu0 %v1439
        %1686 = vmatpush.msra.mxu0 %v1423
        %1687 = vmatpush.msra.mxu0 %v1407
        %1688 = vmatpush.msra.mxu0 %v1391
        %1689 = vmatpush.msra.mxu0 %v1375
        %1690 = vmatpush.msra.mxu0 %v1359
        %1691 = vmatpush.msra.mxu0 %v1343
        %1692 = vmatpush.msra.mxu0 %v1327
        %1693 = vmatpush.msra.mxu0 %v1311
        %1694 = vmatpush.msra.mxu0 %v1295
        %1695 = vmatpush.msra.mxu0 %v1279
        %1696 = vmatpush.msra.mxu0 %v1263
        %1697 = vmatmul.f32.gmra.mxu0 %v1255
        %v1698 = vpop.f32.mrf.mxu0
        %v1699 = vadd.f32 %v1555, %v1698
        %1700 = vmatmul.f32.gmra.mxu0 %v1257
        %v1701 = vpop.f32.mrf.mxu0
        %v1702 = vadd.f32 %v1560, %v1701
        %1703 = vmatmul.f32.gmra.mxu0 %v1259
        %v1704 = vpop.f32.mrf.mxu0
        %v1705 = vadd.f32 %v1565, %v1704
        %1706 = vdwg.mxu0
        %1707 = vmatpush.msra.mxu0 0.0
        %1708 = vmatpush.msra.mxu0 0.0
        %1709 = vmatpush.msra.mxu0 0.0
        %1710 = vmatpush.msra.mxu0 0.0
        %1711 = vmatpush.msra.mxu0 0.0
        %1712 = vmatpush.msra.mxu0 0.0
        %1713 = vmatpush.msra.mxu0 0.0
        %1714 = vmatpush.msra.mxu0 0.0
        %1715 = vmatpush.msra.mxu0 0.0
        %1716 = vmatpush.msra.mxu0 0.0
        %1717 = vmatpush.msra.mxu0 0.0
        %1718 = vmatpush.msra.mxu0 0.0
        %1719 = vmatpush.msra.mxu0 0.0
        %1720 = vmatpush.msra.mxu0 0.0
        %1721 = vmatpush.msra.mxu0 %v1535
        %1722 = vmatpush.msra.mxu0 %v1519
        %1723 = vmatmul.f32.gmra.mxu0 %v1569
        %v1724 = vpop.f32.mrf.mxu0
        %v1725 = vadd.f32 %v1699, %v1724
        %1726 = vmatmul.f32.gmra.mxu0 %v1572
        %v1727 = vpop.f32.mrf.mxu0
        %v1728 = vadd.f32 %v1702, %v1727
        %1729 = vmatmul.f32.gmra.mxu0 %v1575
        %v1730 = vpop.f32.mrf.mxu0
        %v1731 = vadd.f32 %v1705, %v1730
        %1732 = vdwg.mxu0
        %1733 = vmatpush.msra.mxu0 %v1504
        %1734 = vmatpush.msra.mxu0 %v1488
        %1735 = vmatpush.msra.mxu0 %v1472
        %1736 = vmatpush.msra.mxu0 %v1456
        %1737 = vmatpush.msra.mxu0 %v1440
        %1738 = vmatpush.msra.mxu0 %v1424
        %1739 = vmatpush.msra.mxu0 %v1408
        %1740 = vmatpush.msra.mxu0 %v1392
        %1741 = vmatpush.msra.mxu0 %v1376
        %1742 = vmatpush.msra.mxu0 %v1360
        %1743 = vmatpush.msra.mxu0 %v1344
        %1744 = vmatpush.msra.mxu0 %v1328
        %1745 = vmatpush.msra.mxu0 %v1312
        %1746 = vmatpush.msra.mxu0 %v1296
        %1747 = vmatpush.msra.mxu0 %v1280
        %1748 = vmatpush.msra.mxu0 %v1264
        %1749 = vmatmul.f32.gmra.mxu0 %v1255
        %v1750 = vpop.f32.mrf.mxu0
        %v1751 = vadd.f32 %v1555, %v1750
        %1752 = vmatmul.f32.gmra.mxu0 %v1257
        %v1753 = vpop.f32.mrf.mxu0
        %v1754 = vadd.f32 %v1560, %v1753
        %1755 = vmatmul.f32.gmra.mxu0 %v1259
        %v1756 = vpop.f32.mrf.mxu0
        %v1757 = vadd.f32 %v1565, %v1756
        %1758 = vdwg.mxu0
        %1759 = vmatpush.msra.mxu0 0.0
        %1760 = vmatpush.msra.mxu0 0.0
        %1761 = vmatpush.msra.mxu0 0.0
        %1762 = vmatpush.msra.mxu0 0.0
        %1763 = vmatpush.msra.mxu0 0.0
        %1764 = vmatpush.msra.mxu0 0.0
        %1765 = vmatpush.msra.mxu0 0.0
        %1766 = vmatpush.msra.mxu0 0.0
        %1767 = vmatpush.msra.mxu0 0.0
        %1768 = vmatpush.msra.mxu0 0.0
        %1769 = vmatpush.msra.mxu0 0.0
        %1770 = vmatpush.msra.mxu0 0.0
        %1771 = vmatpush.msra.mxu0 0.0
        %1772 = vmatpush.msra.mxu0 0.0
        %1773 = vmatpush.msra.mxu0 %v1536
        %1774 = vmatpush.msra.mxu0 %v1520
        %1775 = vmatmul.f32.gmra.mxu0 %v1569
        %v1776 = vpop.f32.mrf.mxu0
        %v1777 = vadd.f32 %v1751, %v1776
        %1778 = vmatmul.f32.gmra.mxu0 %v1572
        %v1779 = vpop.f32.mrf.mxu0
        %v1780 = vadd.f32 %v1754, %v1779
        %1781 = vmatmul.f32.gmra.mxu0 %v1575
        %v1782 = vpop.f32.mrf.mxu0
        %v1783 = vadd.f32 %v1757, %v1782
        %1784 = vdwg.mxu0
        %1785 = vmatpush.msra.mxu0 %v1505
        %1786 = vmatpush.msra.mxu0 %v1489
        %1787 = vmatpush.msra.mxu0 %v1473
        %1788 = vmatpush.msra.mxu0 %v1457
        %1789 = vmatpush.msra.mxu0 %v1441
        %1790 = vmatpush.msra.mxu0 %v1425
        %1791 = vmatpush.msra.mxu0 %v1409
        %1792 = vmatpush.msra.mxu0 %v1393
        %1793 = vmatpush.msra.mxu0 %v1377
        %1794 = vmatpush.msra.mxu0 %v1361
        %1795 = vmatpush.msra.mxu0 %v1345
        %1796 = vmatpush.msra.mxu0 %v1329
        %1797 = vmatpush.msra.mxu0 %v1313
        %1798 = vmatpush.msra.mxu0 %v1297
        %1799 = vmatpush.msra.mxu0 %v1281
        %1800 = vmatpush.msra.mxu0 %v1265
        %1801 = vmatmul.f32.gmra.mxu0 %v1255
        %v1802 = vpop.f32.mrf.mxu0
        %v1803 = vadd.f32 %v1555, %v1802
        %1804 = vmatmul.f32.gmra.mxu0 %v1257
        %v1805 = vpop.f32.mrf.mxu0
        %v1806 = vadd.f32 %v1560, %v1805
        %1807 = vmatmul.f32.gmra.mxu0 %v1259
        %v1808 = vpop.f32.mrf.mxu0
        %v1809 = vadd.f32 %v1565, %v1808
        %1810 = vdwg.mxu0
        %1811 = vmatpush.msra.mxu0 0.0
        %1812 = vmatpush.msra.mxu0 0.0
        %1813 = vmatpush.msra.mxu0 0.0
        %1814 = vmatpush.msra.mxu0 0.0
        %1815 = vmatpush.msra.mxu0 0.0
        %1816 = vmatpush.msra.mxu0 0.0
        %1817 = vmatpush.msra.mxu0 0.0
        %1818 = vmatpush.msra.mxu0 0.0
        %1819 = vmatpush.msra.mxu0 0.0
        %1820 = vmatpush.msra.mxu0 0.0
        %1821 = vmatpush.msra.mxu0 0.0
        %1822 = vmatpush.msra.mxu0 0.0
        %1823 = vmatpush.msra.mxu0 0.0
        %1824 = vmatpush.msra.mxu0 0.0
        %1825 = vmatpush.msra.mxu0 %v1537
        %1826 = vmatpush.msra.mxu0 %v1521
        %1827 = vmatmul.f32.gmra.mxu0 %v1569
        %v1828 = vpop.f32.mrf.mxu0
        %v1829 = vadd.f32 %v1803, %v1828
        %1830 = vmatmul.f32.gmra.mxu0 %v1572
        %v1831 = vpop.f32.mrf.mxu0
        %v1832 = vadd.f32 %v1806, %v1831
        %1833 = vmatmul.f32.gmra.mxu0 %v1575
        %v1834 = vpop.f32.mrf.mxu0
        %v1835 = vadd.f32 %v1809, %v1834
        %1836 = vdwg.mxu0
        %1837 = vmatpush.msra.mxu0 %v1506
        %1838 = vmatpush.msra.mxu0 %v1490
        %1839 = vmatpush.msra.mxu0 %v1474
        %1840 = vmatpush.msra.mxu0 %v1458
        %1841 = vmatpush.msra.mxu0 %v1442
        %1842 = vmatpush.msra.mxu0 %v1426
        %1843 = vmatpush.msra.mxu0 %v1410
        %1844 = vmatpush.msra.mxu0 %v1394
        %1845 = vmatpush.msra.mxu0 %v1378
        %1846 = vmatpush.msra.mxu0 %v1362
        %1847 = vmatpush.msra.mxu0 %v1346
        %1848 = vmatpush.msra.mxu0 %v1330
        %1849 = vmatpush.msra.mxu0 %v1314
        %1850 = vmatpush.msra.mxu0 %v1298
        %1851 = vmatpush.msra.mxu0 %v1282
        %1852 = vmatpush.msra.mxu0 %v1266
        %1853 = vmatmul.f32.gmra.mxu0 %v1255
        %v1854 = vpop.f32.mrf.mxu0
        %v1855 = vadd.f32 %v1555, %v1854
        %1856 = vmatmul.f32.gmra.mxu0 %v1257
        %v1857 = vpop.f32.mrf.mxu0
        %v1858 = vadd.f32 %v1560, %v1857
        %1859 = vmatmul.f32.gmra.mxu0 %v1259
        %v1860 = vpop.f32.mrf.mxu0
        %v1861 = vadd.f32 %v1565, %v1860
        %1862 = vdwg.mxu0
        %1863 = vmatpush.msra.mxu0 0.0
        %1864 = vmatpush.msra.mxu0 0.0
        %1865 = vmatpush.msra.mxu0 0.0
        %1866 = vmatpush.msra.mxu0 0.0
        %1867 = vmatpush.msra.mxu0 0.0
        %1868 = vmatpush.msra.mxu0 0.0
        %1869 = vmatpush.msra.mxu0 0.0
        %1870 = vmatpush.msra.mxu0 0.0
        %1871 = vmatpush.msra.mxu0 0.0
        %1872 = vmatpush.msra.mxu0 0.0
        %1873 = vmatpush.msra.mxu0 0.0
        %1874 = vmatpush.msra.mxu0 0.0
        %1875 = vmatpush.msra.mxu0 0.0
        %1876 = vmatpush.msra.mxu0 0.0
        %1877 = vmatpush.msra.mxu0 %v1538
        %1878 = vmatpush.msra.mxu0 %v1522
        %1879 = vmatmul.f32.gmra.mxu0 %v1569
        %v1880 = vpop.f32.mrf.mxu0
        %v1881 = vadd.f32 %v1855, %v1880
        %1882 = vmatmul.f32.gmra.mxu0 %v1572
        %v1883 = vpop.f32.mrf.mxu0
        %v1884 = vadd.f32 %v1858, %v1883
        %1885 = vmatmul.f32.gmra.mxu0 %v1575
        %v1886 = vpop.f32.mrf.mxu0
        %v1887 = vadd.f32 %v1861, %v1886
        %1888 = vdwg.mxu0
        %1889 = vmatpush.msra.mxu0 %v1507
        %1890 = vmatpush.msra.mxu0 %v1491
        %1891 = vmatpush.msra.mxu0 %v1475
        %1892 = vmatpush.msra.mxu0 %v1459
        %1893 = vmatpush.msra.mxu0 %v1443
        %1894 = vmatpush.msra.mxu0 %v1427
        %1895 = vmatpush.msra.mxu0 %v1411
        %1896 = vmatpush.msra.mxu0 %v1395
        %1897 = vmatpush.msra.mxu0 %v1379
        %1898 = vmatpush.msra.mxu0 %v1363
        %1899 = vmatpush.msra.mxu0 %v1347
        %1900 = vmatpush.msra.mxu0 %v1331
        %1901 = vmatpush.msra.mxu0 %v1315
        %1902 = vmatpush.msra.mxu0 %v1299
        %1903 = vmatpush.msra.mxu0 %v1283
        %1904 = vmatpush.msra.mxu0 %v1267
        %1905 = vmatmul.f32.gmra.mxu0 %v1255
        %v1906 = vpop.f32.mrf.mxu0
        %v1907 = vadd.f32 %v1555, %v1906
        %1908 = vmatmul.f32.gmra.mxu0 %v1257
        %v1909 = vpop.f32.mrf.mxu0
        %v1910 = vadd.f32 %v1560, %v1909
        %1911 = vmatmul.f32.gmra.mxu0 %v1259
        %v1912 = vpop.f32.mrf.mxu0
        %v1913 = vadd.f32 %v1565, %v1912
        %1914 = vdwg.mxu0
        %1915 = vmatpush.msra.mxu0 0.0
        %1916 = vmatpush.msra.mxu0 0.0
        %1917 = vmatpush.msra.mxu0 0.0
        %1918 = vmatpush.msra.mxu0 0.0
        %1919 = vmatpush.msra.mxu0 0.0
        %1920 = vmatpush.msra.mxu0 0.0
        %1921 = vmatpush.msra.mxu0 0.0
        %1922 = vmatpush.msra.mxu0 0.0
        %1923 = vmatpush.msra.mxu0 0.0
        %1924 = vmatpush.msra.mxu0 0.0
        %1925 = vmatpush.msra.mxu0 0.0
        %1926 = vmatpush.msra.mxu0 0.0
        %1927 = vmatpush.msra.mxu0 0.0
        %1928 = vmatpush.msra.mxu0 0.0
        %1929 = vmatpush.msra.mxu0 %v1539
        %1930 = vmatpush.msra.mxu0 %v1523
        %1931 = vmatmul.f32.gmra.mxu0 %v1569
        %v1932 = vpop.f32.mrf.mxu0
        %v1933 = vadd.f32 %v1907, %v1932
        %1934 = vmatmul.f32.gmra.mxu0 %v1572
        %v1935 = vpop.f32.mrf.mxu0
        %v1936 = vadd.f32 %v1910, %v1935
        %1937 = vmatmul.f32.gmra.mxu0 %v1575
        %v1938 = vpop.f32.mrf.mxu0
        %v1939 = vadd.f32 %v1913, %v1938
        %1940 = vdwg.mxu0
        %1941 = vmatpush.msra.mxu0 %v1508
        %1942 = vmatpush.msra.mxu0 %v1492
        %1943 = vmatpush.msra.mxu0 %v1476
        %1944 = vmatpush.msra.mxu0 %v1460
        %1945 = vmatpush.msra.mxu0 %v1444
        %1946 = vmatpush.msra.mxu0 %v1428
        %1947 = vmatpush.msra.mxu0 %v1412
        %1948 = vmatpush.msra.mxu0 %v1396
        %1949 = vmatpush.msra.mxu0 %v1380
        %1950 = vmatpush.msra.mxu0 %v1364
        %1951 = vmatpush.msra.mxu0 %v1348
        %1952 = vmatpush.msra.mxu0 %v1332
        %1953 = vmatpush.msra.mxu0 %v1316
        %1954 = vmatpush.msra.mxu0 %v1300
        %1955 = vmatpush.msra.mxu0 %v1284
        %1956 = vmatpush.msra.mxu0 %v1268
        %1957 = vmatmul.f32.gmra.mxu0 %v1255
        %v1958 = vpop.f32.mrf.mxu0
        %v1959 = vadd.f32 %v1555, %v1958
        %1960 = vmatmul.f32.gmra.mxu0 %v1257
        %v1961 = vpop.f32.mrf.mxu0
        %v1962 = vadd.f32 %v1560, %v1961
        %1963 = vmatmul.f32.gmra.mxu0 %v1259
        %v1964 = vpop.f32.mrf.mxu0
        %v1965 = vadd.f32 %v1565, %v1964
        %1966 = vdwg.mxu0
        %1967 = vmatpush.msra.mxu0 0.0
        %1968 = vmatpush.msra.mxu0 0.0
        %1969 = vmatpush.msra.mxu0 0.0
        %1970 = vmatpush.msra.mxu0 0.0
        %1971 = vmatpush.msra.mxu0 0.0
        %1972 = vmatpush.msra.mxu0 0.0
        %1973 = vmatpush.msra.mxu0 0.0
        %1974 = vmatpush.msra.mxu0 0.0
        %1975 = vmatpush.msra.mxu0 0.0
        %1976 = vmatpush.msra.mxu0 0.0
        %1977 = vmatpush.msra.mxu0 0.0
        %1978 = vmatpush.msra.mxu0 0.0
        %1979 = vmatpush.msra.mxu0 0.0
        %1980 = vmatpush.msra.mxu0 0.0
        %1981 = vmatpush.msra.mxu0 %v1540
        %1982 = vmatpush.msra.mxu0 %v1524
        %1983 = vmatmul.f32.gmra.mxu0 %v1569
        %v1984 = vpop.f32.mrf.mxu0
        %v1985 = vadd.f32 %v1959, %v1984
        %1986 = vmatmul.f32.gmra.mxu0 %v1572
        %v1987 = vpop.f32.mrf.mxu0
        %v1988 = vadd.f32 %v1962, %v1987
        %1989 = vmatmul.f32.gmra.mxu0 %v1575
        %v1990 = vpop.f32.mrf.mxu0
        %v1991 = vadd.f32 %v1965, %v1990
        %1992 = vdwg.mxu0
        %1993 = vmatpush.msra.mxu0 %v1509
        %1994 = vmatpush.msra.mxu0 %v1493
        %1995 = vmatpush.msra.mxu0 %v1477
        %1996 = vmatpush.msra.mxu0 %v1461
        %1997 = vmatpush.msra.mxu0 %v1445
        %1998 = vmatpush.msra.mxu0 %v1429
        %1999 = vmatpush.msra.mxu0 %v1413
        %2000 = vmatpush.msra.mxu0 %v1397
        %2001 = vmatpush.msra.mxu0 %v1381
        %2002 = vmatpush.msra.mxu0 %v1365
        %2003 = vmatpush.msra.mxu0 %v1349
        %2004 = vmatpush.msra.mxu0 %v1333
        %2005 = vmatpush.msra.mxu0 %v1317
        %2006 = vmatpush.msra.mxu0 %v1301
        %2007 = vmatpush.msra.mxu0 %v1285
        %2008 = vmatpush.msra.mxu0 %v1269
        %2009 = vmatmul.f32.gmra.mxu0 %v1255
        %v2010 = vpop.f32.mrf.mxu0
        %v2011 = vadd.f32 %v1555, %v2010
        %2012 = vmatmul.f32.gmra.mxu0 %v1257
        %v2013 = vpop.f32.mrf.mxu0
        %v2014 = vadd.f32 %v1560, %v2013
        %2015 = vmatmul.f32.gmra.mxu0 %v1259
        %v2016 = vpop.f32.mrf.mxu0
        %v2017 = vadd.f32 %v1565, %v2016
        %2018 = vdwg.mxu0
        %2019 = vmatpush.msra.mxu0 0.0
        %2020 = vmatpush.msra.mxu0 0.0
        %2021 = vmatpush.msra.mxu0 0.0
        %2022 = vmatpush.msra.mxu0 0.0
        %2023 = vmatpush.msra.mxu0 0.0
        %2024 = vmatpush.msra.mxu0 0.0
        %2025 = vmatpush.msra.mxu0 0.0
        %2026 = vmatpush.msra.mxu0 0.0
        %2027 = vmatpush.msra.mxu0 0.0
        %2028 = vmatpush.msra.mxu0 0.0
        %2029 = vmatpush.msra.mxu0 0.0
        %2030 = vmatpush.msra.mxu0 0.0
        %2031 = vmatpush.msra.mxu0 0.0
        %2032 = vmatpush.msra.mxu0 0.0
        %2033 = vmatpush.msra.mxu0 %v1541
        %2034 = vmatpush.msra.mxu0 %v1525
        %2035 = vmatmul.f32.gmra.mxu0 %v1569
        %v2036 = vpop.f32.mrf.mxu0
        %v2037 = vadd.f32 %v2011, %v2036
        %2038 = vmatmul.f32.gmra.mxu0 %v1572
        %v2039 = vpop.f32.mrf.mxu0
        %v2040 = vadd.f32 %v2014, %v2039
        %2041 = vmatmul.f32.gmra.mxu0 %v1575
        %v2042 = vpop.f32.mrf.mxu0
        %v2043 = vadd.f32 %v2017, %v2042
        %2044 = vdwg.mxu0
        %2045 = vmatpush.msra.mxu0 %v1510
        %2046 = vmatpush.msra.mxu0 %v1494
        %2047 = vmatpush.msra.mxu0 %v1478
        %2048 = vmatpush.msra.mxu0 %v1462
        %2049 = vmatpush.msra.mxu0 %v1446
        %2050 = vmatpush.msra.mxu0 %v1430
        %2051 = vmatpush.msra.mxu0 %v1414
        %2052 = vmatpush.msra.mxu0 %v1398
        %2053 = vmatpush.msra.mxu0 %v1382
        %2054 = vmatpush.msra.mxu0 %v1366
        %2055 = vmatpush.msra.mxu0 %v1350
        %2056 = vmatpush.msra.mxu0 %v1334
        %2057 = vmatpush.msra.mxu0 %v1318
        %2058 = vmatpush.msra.mxu0 %v1302
        %2059 = vmatpush.msra.mxu0 %v1286
        %2060 = vmatpush.msra.mxu0 %v1270
        %2061 = vmatmul.f32.gmra.mxu0 %v1255
        %v2062 = vpop.f32.mrf.mxu0
        %v2063 = vadd.f32 %v1555, %v2062
        %2064 = vmatmul.f32.gmra.mxu0 %v1257
        %v2065 = vpop.f32.mrf.mxu0
        %v2066 = vadd.f32 %v1560, %v2065
        %2067 = vmatmul.f32.gmra.mxu0 %v1259
        %v2068 = vpop.f32.mrf.mxu0
        %v2069 = vadd.f32 %v1565, %v2068
        %2070 = vdwg.mxu0
        %2071 = vmatpush.msra.mxu0 0.0
        %2072 = vmatpush.msra.mxu0 0.0
        %2073 = vmatpush.msra.mxu0 0.0
        %2074 = vmatpush.msra.mxu0 0.0
        %2075 = vmatpush.msra.mxu0 0.0
        %2076 = vmatpush.msra.mxu0 0.0
        %2077 = vmatpush.msra.mxu0 0.0
        %2078 = vmatpush.msra.mxu0 0.0
        %2079 = vmatpush.msra.mxu0 0.0
        %2080 = vmatpush.msra.mxu0 0.0
        %2081 = vmatpush.msra.mxu0 0.0
        %2082 = vmatpush.msra.mxu0 0.0
        %2083 = vmatpush.msra.mxu0 0.0
        %2084 = vmatpush.msra.mxu0 0.0
        %2085 = vmatpush.msra.mxu0 %v1542
        %2086 = vmatpush.msra.mxu0 %v1526
        %2087 = vmatmul.f32.gmra.mxu0 %v1569
        %v2088 = vpop.f32.mrf.mxu0
        %v2089 = vadd.f32 %v2063, %v2088
        %2090 = vmatmul.f32.gmra.mxu0 %v1572
        %v2091 = vpop.f32.mrf.mxu0
        %v2092 = vadd.f32 %v2066, %v2091
        %2093 = vmatmul.f32.gmra.mxu0 %v1575
        %v2094 = vpop.f32.mrf.mxu0
        %v2095 = vadd.f32 %v2069, %v2094
        %2096 = vdwg.mxu0
        %2097 = vmatpush.msra.mxu0 %v1511
        %2098 = vmatpush.msra.mxu0 %v1495
        %2099 = vmatpush.msra.mxu0 %v1479
        %2100 = vmatpush.msra.mxu0 %v1463
        %2101 = vmatpush.msra.mxu0 %v1447
        %2102 = vmatpush.msra.mxu0 %v1431
        %2103 = vmatpush.msra.mxu0 %v1415
        %2104 = vmatpush.msra.mxu0 %v1399
        %2105 = vmatpush.msra.mxu0 %v1383
        %2106 = vmatpush.msra.mxu0 %v1367
        %2107 = vmatpush.msra.mxu0 %v1351
        %2108 = vmatpush.msra.mxu0 %v1335
        %2109 = vmatpush.msra.mxu0 %v1319
        %2110 = vmatpush.msra.mxu0 %v1303
        %2111 = vmatpush.msra.mxu0 %v1287
        %2112 = vmatpush.msra.mxu0 %v1271
        %2113 = vmatmul.f32.gmra.mxu0 %v1255
        %v2114 = vpop.f32.mrf.mxu0
        %v2115 = vadd.f32 %v1555, %v2114
        %2116 = vmatmul.f32.gmra.mxu0 %v1257
        %v2117 = vpop.f32.mrf.mxu0
        %v2118 = vadd.f32 %v1560, %v2117
        %2119 = vmatmul.f32.gmra.mxu0 %v1259
        %v2120 = vpop.f32.mrf.mxu0
        %v2121 = vadd.f32 %v1565, %v2120
        %2122 = vdwg.mxu0
        %2123 = vmatpush.msra.mxu0 0.0
        %2124 = vmatpush.msra.mxu0 0.0
        %2125 = vmatpush.msra.mxu0 0.0
        %2126 = vmatpush.msra.mxu0 0.0
        %2127 = vmatpush.msra.mxu0 0.0
        %2128 = vmatpush.msra.mxu0 0.0
        %2129 = vmatpush.msra.mxu0 0.0
        %2130 = vmatpush.msra.mxu0 0.0
        %2131 = vmatpush.msra.mxu0 0.0
        %2132 = vmatpush.msra.mxu0 0.0
        %2133 = vmatpush.msra.mxu0 0.0
        %2134 = vmatpush.msra.mxu0 0.0
        %2135 = vmatpush.msra.mxu0 0.0
        %2136 = vmatpush.msra.mxu0 0.0
        %2137 = vmatpush.msra.mxu0 %v1543
        %2138 = vmatpush.msra.mxu0 %v1527
        %2139 = vmatmul.f32.gmra.mxu0 %v1569
        %v2140 = vpop.f32.mrf.mxu0
        %v2141 = vadd.f32 %v2115, %v2140
        %2142 = vmatmul.f32.gmra.mxu0 %v1572
        %v2143 = vpop.f32.mrf.mxu0
        %v2144 = vadd.f32 %v2118, %v2143
        %2145 = vmatmul.f32.gmra.mxu0 %v1575
        %v2146 = vpop.f32.mrf.mxu0
        %v2147 = vadd.f32 %v2121, %v2146
        %2148 = vdwg.mxu0
        %2149 = vmatpush.msra.mxu0 %v1512
        %2150 = vmatpush.msra.mxu0 %v1496
        %2151 = vmatpush.msra.mxu0 %v1480
        %2152 = vmatpush.msra.mxu0 %v1464
        %2153 = vmatpush.msra.mxu0 %v1448
        %2154 = vmatpush.msra.mxu0 %v1432
        %2155 = vmatpush.msra.mxu0 %v1416
        %2156 = vmatpush.msra.mxu0 %v1400
        %2157 = vmatpush.msra.mxu0 %v1384
        %2158 = vmatpush.msra.mxu0 %v1368
        %2159 = vmatpush.msra.mxu0 %v1352
        %2160 = vmatpush.msra.mxu0 %v1336
        %2161 = vmatpush.msra.mxu0 %v1320
        %2162 = vmatpush.msra.mxu0 %v1304
        %2163 = vmatpush.msra.mxu0 %v1288
        %2164 = vmatpush.msra.mxu0 %v1272
        %2165 = vmatmul.f32.gmra.mxu0 %v1255
        %v2166 = vpop.f32.mrf.mxu0
        %v2167 = vadd.f32 %v1555, %v2166
        %2168 = vmatmul.f32.gmra.mxu0 %v1257
        %v2169 = vpop.f32.mrf.mxu0
        %v2170 = vadd.f32 %v1560, %v2169
        %2171 = vmatmul.f32.gmra.mxu0 %v1259
        %v2172 = vpop.f32.mrf.mxu0
        %v2173 = vadd.f32 %v1565, %v2172
        %2174 = vdwg.mxu0
        %2175 = vmatpush.msra.mxu0 0.0
        %2176 = vmatpush.msra.mxu0 0.0
        %2177 = vmatpush.msra.mxu0 0.0
        %2178 = vmatpush.msra.mxu0 0.0
        %2179 = vmatpush.msra.mxu0 0.0
        %2180 = vmatpush.msra.mxu0 0.0
        %2181 = vmatpush.msra.mxu0 0.0
        %2182 = vmatpush.msra.mxu0 0.0
        %2183 = vmatpush.msra.mxu0 0.0
        %2184 = vmatpush.msra.mxu0 0.0
        %2185 = vmatpush.msra.mxu0 0.0
        %2186 = vmatpush.msra.mxu0 0.0
        %2187 = vmatpush.msra.mxu0 0.0
        %2188 = vmatpush.msra.mxu0 0.0
        %2189 = vmatpush.msra.mxu0 %v1544
        %2190 = vmatpush.msra.mxu0 %v1528
        %2191 = vmatmul.f32.gmra.mxu0 %v1569
        %v2192 = vpop.f32.mrf.mxu0
        %v2193 = vadd.f32 %v2167, %v2192
        %2194 = vmatmul.f32.gmra.mxu0 %v1572
        %v2195 = vpop.f32.mrf.mxu0
        %v2196 = vadd.f32 %v2170, %v2195
        %2197 = vmatmul.f32.gmra.mxu0 %v1575
        %v2198 = vpop.f32.mrf.mxu0
        %v2199 = vadd.f32 %v2173, %v2198
        %2200 = vdwg.mxu0
        %2201 = vmatpush.msra.mxu0 %v1513
        %2202 = vmatpush.msra.mxu0 %v1497
        %2203 = vmatpush.msra.mxu0 %v1481
        %2204 = vmatpush.msra.mxu0 %v1465
        %2205 = vmatpush.msra.mxu0 %v1449
        %2206 = vmatpush.msra.mxu0 %v1433
        %2207 = vmatpush.msra.mxu0 %v1417
        %2208 = vmatpush.msra.mxu0 %v1401
        %2209 = vmatpush.msra.mxu0 %v1385
        %2210 = vmatpush.msra.mxu0 %v1369
        %2211 = vmatpush.msra.mxu0 %v1353
        %2212 = vmatpush.msra.mxu0 %v1337
        %2213 = vmatpush.msra.mxu0 %v1321
        %2214 = vmatpush.msra.mxu0 %v1305
        %2215 = vmatpush.msra.mxu0 %v1289
        %2216 = vmatpush.msra.mxu0 %v1273
        %2217 = vmatmul.f32.gmra.mxu0 %v1255
        %v2218 = vpop.f32.mrf.mxu0
        %v2219 = vadd.f32 %v1555, %v2218
        %2220 = vmatmul.f32.gmra.mxu0 %v1257
        %v2221 = vpop.f32.mrf.mxu0
        %v2222 = vadd.f32 %v1560, %v2221
        %2223 = vmatmul.f32.gmra.mxu0 %v1259
        %v2224 = vpop.f32.mrf.mxu0
        %v2225 = vadd.f32 %v1565, %v2224
        %2226 = vdwg.mxu0
        %2227 = vmatpush.msra.mxu0 0.0
        %2228 = vmatpush.msra.mxu0 0.0
        %2229 = vmatpush.msra.mxu0 0.0
        %2230 = vmatpush.msra.mxu0 0.0
        %2231 = vmatpush.msra.mxu0 0.0
        %2232 = vmatpush.msra.mxu0 0.0
        %2233 = vmatpush.msra.mxu0 0.0
        %2234 = vmatpush.msra.mxu0 0.0
        %2235 = vmatpush.msra.mxu0 0.0
        %2236 = vmatpush.msra.mxu0 0.0
        %2237 = vmatpush.msra.mxu0 0.0
        %2238 = vmatpush.msra.mxu0 0.0
        %2239 = vmatpush.msra.mxu0 0.0
        %2240 = vmatpush.msra.mxu0 0.0
        %2241 = vmatpush.msra.mxu0 %v1545
        %2242 = vmatpush.msra.mxu0 %v1529
        %2243 = vmatmul.f32.gmra.mxu0 %v1569
        %v2244 = vpop.f32.mrf.mxu0
        %v2245 = vadd.f32 %v2219, %v2244
        %2246 = vmatmul.f32.gmra.mxu0 %v1572
        %v2247 = vpop.f32.mrf.mxu0
        %v2248 = vadd.f32 %v2222, %v2247
        %2249 = vmatmul.f32.gmra.mxu0 %v1575
        %v2250 = vpop.f32.mrf.mxu0
        %v2251 = vadd.f32 %v2225, %v2250
        %2252 = vdwg.mxu0
        %2253 = vmatpush.msra.mxu0 %v1514
        %2254 = vmatpush.msra.mxu0 %v1498
        %2255 = vmatpush.msra.mxu0 %v1482
        %2256 = vmatpush.msra.mxu0 %v1466
        %2257 = vmatpush.msra.mxu0 %v1450
        %2258 = vmatpush.msra.mxu0 %v1434
        %2259 = vmatpush.msra.mxu0 %v1418
        %2260 = vmatpush.msra.mxu0 %v1402
        %2261 = vmatpush.msra.mxu0 %v1386
        %2262 = vmatpush.msra.mxu0 %v1370
        %2263 = vmatpush.msra.mxu0 %v1354
        %2264 = vmatpush.msra.mxu0 %v1338
        %2265 = vmatpush.msra.mxu0 %v1322
        %2266 = vmatpush.msra.mxu0 %v1306
        %2267 = vmatpush.msra.mxu0 %v1290
        %2268 = vmatpush.msra.mxu0 %v1274
        %2269 = vmatmul.f32.gmra.mxu0 %v1255
        %v2270 = vpop.f32.mrf.mxu0
        %v2271 = vadd.f32 %v1555, %v2270
        %2272 = vmatmul.f32.gmra.mxu0 %v1257
        %v2273 = vpop.f32.mrf.mxu0
        %v2274 = vadd.f32 %v1560, %v2273
        %2275 = vmatmul.f32.gmra.mxu0 %v1259
        %v2276 = vpop.f32.mrf.mxu0
        %v2277 = vadd.f32 %v1565, %v2276
        %2278 = vdwg.mxu0
        %2279 = vmatpush.msra.mxu0 0.0
        %2280 = vmatpush.msra.mxu0 0.0
        %2281 = vmatpush.msra.mxu0 0.0
        %2282 = vmatpush.msra.mxu0 0.0
        %2283 = vmatpush.msra.mxu0 0.0
        %2284 = vmatpush.msra.mxu0 0.0
        %2285 = vmatpush.msra.mxu0 0.0
        %2286 = vmatpush.msra.mxu0 0.0
        %2287 = vmatpush.msra.mxu0 0.0
        %2288 = vmatpush.msra.mxu0 0.0
        %2289 = vmatpush.msra.mxu0 0.0
        %2290 = vmatpush.msra.mxu0 0.0
        %2291 = vmatpush.msra.mxu0 0.0
        %2292 = vmatpush.msra.mxu0 0.0
        %2293 = vmatpush.msra.mxu0 %v1546
        %2294 = vmatpush.msra.mxu0 %v1530
        %2295 = vmatmul.f32.gmra.mxu0 %v1569
        %v2296 = vpop.f32.mrf.mxu0
        %v2297 = vadd.f32 %v2271, %v2296
        %2298 = vmatmul.f32.gmra.mxu0 %v1572
        %v2299 = vpop.f32.mrf.mxu0
        %v2300 = vadd.f32 %v2274, %v2299
        %2301 = vmatmul.f32.gmra.mxu0 %v1575
        %v2302 = vpop.f32.mrf.mxu0
        %v2303 = vadd.f32 %v2277, %v2302
        %2304 = vdwg.mxu0
        %2305 = vmatpush.msra.mxu0 %v1515
        %2306 = vmatpush.msra.mxu0 %v1499
        %2307 = vmatpush.msra.mxu0 %v1483
        %2308 = vmatpush.msra.mxu0 %v1467
        %2309 = vmatpush.msra.mxu0 %v1451
        %2310 = vmatpush.msra.mxu0 %v1435
        %2311 = vmatpush.msra.mxu0 %v1419
        %2312 = vmatpush.msra.mxu0 %v1403
        %2313 = vmatpush.msra.mxu0 %v1387
        %2314 = vmatpush.msra.mxu0 %v1371
        %2315 = vmatpush.msra.mxu0 %v1355
        %2316 = vmatpush.msra.mxu0 %v1339
        %2317 = vmatpush.msra.mxu0 %v1323
        %2318 = vmatpush.msra.mxu0 %v1307
        %2319 = vmatpush.msra.mxu0 %v1291
        %2320 = vmatpush.msra.mxu0 %v1275
        %2321 = vmatmul.f32.gmra.mxu0 %v1255
        %v2322 = vpop.f32.mrf.mxu0
        %v2323 = vadd.f32 %v1555, %v2322
        %2324 = vmatmul.f32.gmra.mxu0 %v1257
        %v2325 = vpop.f32.mrf.mxu0
        %v2326 = vadd.f32 %v1560, %v2325
        %2327 = vmatmul.f32.gmra.mxu0 %v1259
        %v2328 = vpop.f32.mrf.mxu0
        %v2329 = vadd.f32 %v1565, %v2328
        %2330 = vdwg.mxu0
        %2331 = vmatpush.msra.mxu0 0.0
        %2332 = vmatpush.msra.mxu0 0.0
        %2333 = vmatpush.msra.mxu0 0.0
        %2334 = vmatpush.msra.mxu0 0.0
        %2335 = vmatpush.msra.mxu0 0.0
        %2336 = vmatpush.msra.mxu0 0.0
        %2337 = vmatpush.msra.mxu0 0.0
        %2338 = vmatpush.msra.mxu0 0.0
        %2339 = vmatpush.msra.mxu0 0.0
        %2340 = vmatpush.msra.mxu0 0.0
        %2341 = vmatpush.msra.mxu0 0.0
        %2342 = vmatpush.msra.mxu0 0.0
        %2343 = vmatpush.msra.mxu0 0.0
        %2344 = vmatpush.msra.mxu0 0.0
        %2345 = vmatpush.msra.mxu0 %v1547
        %2346 = vmatpush.msra.mxu0 %v1531
        %2347 = vmatmul.f32.gmra.mxu0 %v1569
        %v2348 = vpop.f32.mrf.mxu0
        %v2349 = vadd.f32 %v2323, %v2348
        %2350 = vmatmul.f32.gmra.mxu0 %v1572
        %v2351 = vpop.f32.mrf.mxu0
        %v2352 = vadd.f32 %v2326, %v2351
        %2353 = vmatmul.f32.gmra.mxu0 %v1575
        %v2354 = vpop.f32.mrf.mxu0
        %v2355 = vadd.f32 %v2329, %v2354
        %2356 = vdwg.mxu0
        %2357 = vmatpush.msra.mxu0 %v1516
        %2358 = vmatpush.msra.mxu0 %v1500
        %2359 = vmatpush.msra.mxu0 %v1484
        %2360 = vmatpush.msra.mxu0 %v1468
        %2361 = vmatpush.msra.mxu0 %v1452
        %2362 = vmatpush.msra.mxu0 %v1436
        %2363 = vmatpush.msra.mxu0 %v1420
        %2364 = vmatpush.msra.mxu0 %v1404
        %2365 = vmatpush.msra.mxu0 %v1388
        %2366 = vmatpush.msra.mxu0 %v1372
        %2367 = vmatpush.msra.mxu0 %v1356
        %2368 = vmatpush.msra.mxu0 %v1340
        %2369 = vmatpush.msra.mxu0 %v1324
        %2370 = vmatpush.msra.mxu0 %v1308
        %2371 = vmatpush.msra.mxu0 %v1292
        %2372 = vmatpush.msra.mxu0 %v1276
        %2373 = vmatmul.f32.gmra.mxu0 %v1255
        %v2374 = vpop.f32.mrf.mxu0
        %v2375 = vadd.f32 %v1555, %v2374
        %2376 = vmatmul.f32.gmra.mxu0 %v1257
        %v2377 = vpop.f32.mrf.mxu0
        %v2378 = vadd.f32 %v1560, %v2377
        %2379 = vmatmul.f32.gmra.mxu0 %v1259
        %v2380 = vpop.f32.mrf.mxu0
        %v2381 = vadd.f32 %v1565, %v2380
        %2382 = vdwg.mxu0
        %2383 = vmatpush.msra.mxu0 0.0
        %2384 = vmatpush.msra.mxu0 0.0
        %2385 = vmatpush.msra.mxu0 0.0
        %2386 = vmatpush.msra.mxu0 0.0
        %2387 = vmatpush.msra.mxu0 0.0
        %2388 = vmatpush.msra.mxu0 0.0
        %2389 = vmatpush.msra.mxu0 0.0
        %2390 = vmatpush.msra.mxu0 0.0
        %2391 = vmatpush.msra.mxu0 0.0
        %2392 = vmatpush.msra.mxu0 0.0
        %2393 = vmatpush.msra.mxu0 0.0
        %2394 = vmatpush.msra.mxu0 0.0
        %2395 = vmatpush.msra.mxu0 0.0
        %2396 = vmatpush.msra.mxu0 0.0
        %2397 = vmatpush.msra.mxu0 %v1548
        %2398 = vmatpush.msra.mxu0 %v1532
        %2399 = vmatmul.f32.gmra.mxu0 %v1569
        %v2400 = vpop.f32.mrf.mxu0
        %v2401 = vadd.f32 %v2375, %v2400
        %2402 = vmatmul.f32.gmra.mxu0 %v1572
        %v2403 = vpop.f32.mrf.mxu0
        %v2404 = vadd.f32 %v2378, %v2403
        %2405 = vmatmul.f32.gmra.mxu0 %v1575
        %v2406 = vpop.f32.mrf.mxu0
        %v2407 = vadd.f32 %v2381, %v2406
        %2408 = vdwg.mxu0
        %vm2409 = vcmp.ge.f32.partialorder %v1621, 0.0
        %vm2410 = vcmp.ge.f32.partialorder %v1673, 0.0
        %vm2411 = vcmp.ge.f32.partialorder %v1725, 0.0
        %vm2412 = vcmp.ge.f32.partialorder %v1777, 0.0
        %vm2413 = vcmp.ge.f32.partialorder %v1829, 0.0
        %vm2414 = vcmp.ge.f32.partialorder %v1881, 0.0
        %vm2415 = vcmp.ge.f32.partialorder %v1933, 0.0
        %vm2416 = vcmp.ge.f32.partialorder %v1985, 0.0
        %vm2417 = vcmp.ge.f32.partialorder %v2037, 0.0
        %vm2418 = vcmp.ge.f32.partialorder %v2089, 0.0
        %vm2419 = vcmp.ge.f32.partialorder %v2141, 0.0
        %vm2420 = vcmp.ge.f32.partialorder %v2193, 0.0
        %vm2421 = vcmp.ge.f32.partialorder %v2245, 0.0
        %vm2422 = vcmp.ge.f32.partialorder %v2297, 0.0
        %vm2423 = vcmp.ge.f32.partialorder %v2349, 0.0
        %vm2424 = vcmp.ge.f32.partialorder %v2401, 0.0
        %vm2425 = vcmp.ge.f32.partialorder %v1624, 0.0
        %vm2426 = vcmp.ge.f32.partialorder %v1676, 0.0
        %vm2427 = vcmp.ge.f32.partialorder %v1728, 0.0
        %vm2428 = vcmp.ge.f32.partialorder %v1780, 0.0
        %vm2429 = vcmp.ge.f32.partialorder %v1832, 0.0
        %vm2430 = vcmp.ge.f32.partialorder %v1884, 0.0
        %vm2431 = vcmp.ge.f32.partialorder %v1936, 0.0
        %vm2432 = vcmp.ge.f32.partialorder %v1988, 0.0
        %vm2433 = vcmp.ge.f32.partialorder %v2040, 0.0
        %vm2434 = vcmp.ge.f32.partialorder %v2092, 0.0
        %vm2435 = vcmp.ge.f32.partialorder %v2144, 0.0
        %vm2436 = vcmp.ge.f32.partialorder %v2196, 0.0
        %vm2437 = vcmp.ge.f32.partialorder %v2248, 0.0
        %vm2438 = vcmp.ge.f32.partialorder %v2300, 0.0
        %vm2439 = vcmp.ge.f32.partialorder %v2352, 0.0
        %vm2440 = vcmp.ge.f32.partialorder %v2404, 0.0
        %v2441 = vmul.f32 %v1621, 0.2
        %v2442 = vmul.f32 %v1673, 0.2
        %v2443 = vmul.f32 %v1725, 0.2
        %v2444 = vmul.f32 %v1777, 0.2
        %v2445 = vmul.f32 %v1829, 0.2
        %v2446 = vmul.f32 %v1881, 0.2
        %v2447 = vmul.f32 %v1933, 0.2
        %v2448 = vmul.f32 %v1985, 0.2
        %v2449 = vmul.f32 %v2037, 0.2
        %v2450 = vmul.f32 %v2089, 0.2
        %v2451 = vmul.f32 %v2141, 0.2
        %v2452 = vmul.f32 %v2193, 0.2
        %v2453 = vmul.f32 %v2245, 0.2
        %v2454 = vmul.f32 %v2297, 0.2
        %v2455 = vmul.f32 %v2349, 0.2
        %v2456 = vmul.f32 %v2401, 0.2
        %v2457 = vmul.f32 %v1624, 0.2
        %v2458 = vmul.f32 %v1676, 0.2
        %v2459 = vmul.f32 %v1728, 0.2
        %v2460 = vmul.f32 %v1780, 0.2
        %v2461 = vmul.f32 %v1832, 0.2
        %v2462 = vmul.f32 %v1884, 0.2
        %v2463 = vmul.f32 %v1936, 0.2
        %v2464 = vmul.f32 %v1988, 0.2
        %v2465 = vmul.f32 %v2040, 0.2
        %v2466 = vmul.f32 %v2092, 0.2
        %v2467 = vmul.f32 %v2144, 0.2
        %v2468 = vmul.f32 %v2196, 0.2
        %v2469 = vmul.f32 %v2248, 0.2
        %v2470 = vmul.f32 %v2300, 0.2
        %v2471 = vmul.f32 %v2352, 0.2
        %v2472 = vmul.f32 %v2404, 0.2
        %v2473 = vsel %vm2409, %v1621, %v2441
        %v2474 = vsel %vm2410, %v1673, %v2442
        %v2475 = vsel %vm2411, %v1725, %v2443
        %v2476 = vsel %vm2412, %v1777, %v2444
        %v2477 = vsel %vm2413, %v1829, %v2445
        %v2478 = vsel %vm2414, %v1881, %v2446
        %v2479 = vsel %vm2415, %v1933, %v2447
        %v2480 = vsel %vm2416, %v1985, %v2448
        %v2481 = vsel %vm2417, %v2037, %v2449
        %v2482 = vsel %vm2418, %v2089, %v2450
        %v2483 = vsel %vm2419, %v2141, %v2451
        %v2484 = vsel %vm2420, %v2193, %v2452
        %v2485 = vsel %vm2421, %v2245, %v2453
        %v2486 = vsel %vm2422, %v2297, %v2454
        %v2487 = vsel %vm2423, %v2349, %v2455
        %v2488 = vsel %vm2424, %v2401, %v2456
        %v2489 = vsel %vm2425, %v1624, %v2457
        %v2490 = vsel %vm2426, %v1676, %v2458
        %v2491 = vsel %vm2427, %v1728, %v2459
        %v2492 = vsel %vm2428, %v1780, %v2460
        %v2493 = vsel %vm2429, %v1832, %v2461
        %v2494 = vsel %vm2430, %v1884, %v2462
        %v2495 = vsel %vm2431, %v1936, %v2463
        %v2496 = vsel %vm2432, %v1988, %v2464
        %v2497 = vsel %vm2433, %v2040, %v2465
        %v2498 = vsel %vm2434, %v2092, %v2466
        %v2499 = vsel %vm2435, %v2144, %v2467
        %v2500 = vsel %vm2436, %v2196, %v2468
        %v2501 = vsel %vm2437, %v2248, %v2469
        %v2502 = vsel %vm2438, %v2300, %v2470
        %v2503 = vsel %vm2439, %v2352, %v2471
        %v2504 = vsel %vm2440, %v2404, %v2472
        %2505 = vst [vmem:[#allocation3] sm:$0xff] 0.0
        %2506 = vst [vmem:[#allocation3 + $0x8] sm:$0xff] 0.0
        %2507 = vst [vmem:[#allocation3 + $0xa0] sm:$0xff] 0.0
        %2508 = vst [vmem:[#allocation3 + $0xa8] sm:$0xff] 0.0
        %2509 = vst [vmem:[#allocation3 + $0x90] sm:$0xff] 0.0
        %2510 = vst [vmem:[#allocation3 + $0x98] sm:$0xff] 0.0
        %2511 = vst [vmem:[#allocation3 + $0x130] sm:$0xff] 0.0
        %2512 = vst [vmem:[#allocation3 + $0x138] sm:$0xff] 0.0
        %v2513 = vlaneseq
        %v2514 = vand.u32 %v2513, 127
        %v2515 = vrot.slane %v2514, 4
        %vm2516 = vcmask 1047556
        %v2517 = vsel %vm2516, 0, %v2515
        %v2519 = vunpack.c.l.s4 1983009808
        %v2520 = vunpack.c.0.s8 %v2519
        %v2521 = vperm.slane %v2514, %v2520
        %v2523 = vunpack.c.l.s4 1983009808
        %v2524 = vunpack.c.0.s8 %v2523
        %v2525 = vperm.slane %v2517, %v2524
        %v2526 = vrot.slane %v2521, 4
        %v2527 = vsel %vm2516, 0, %v2526
        %v2529 = vunpack.c.l.s4 1934713408
        %v2530 = vunpack.c.0.s8 %v2529
        %v2531 = vperm.slane %v2521, %v2530
        %v2533 = vunpack.c.l.s4 1934713408
        %v2534 = vunpack.c.0.s8 %v2533
        %v2535 = vperm.slane %v2527, %v2534
        %v2536 = vrot.slane %v2525, 4
        %v2537 = vsel %vm2516, 0, %v2536
        %v2539 = vunpack.c.l.s4 1934713408
        %v2540 = vunpack.c.0.s8 %v2539
        %v2541 = vperm.slane %v2525, %v2540
        %v2543 = vunpack.c.l.s4 1934713408
        %v2544 = vunpack.c.0.s8 %v2543
        %v2545 = vperm.slane %v2537, %v2544
        %v2546 = vrot.slane %v2531, 4
        %v2547 = vsel %vm2516, 0, %v2546
        %v2548 = vrot.slane %v2535, 4
        %v2549 = vsel %vm2516, 0, %v2548
        %v2550 = vrot.slane %v2541, 4
        %v2551 = vsel %vm2516, 0, %v2550
        %v2552 = vrot.slane %v2545, 4
        %v2553 = vsel %vm2516, 0, %v2552
        %vm2554 = vcmp.lt.s32.totalorder %v2531, 16
        %vm2555 = vcmp.lt.s32.totalorder %v2547, 16
        %vm2556 = vcmp.lt.s32.totalorder %v2535, 16
        %vm2557 = vcmp.lt.s32.totalorder %v2549, 16
        %vm2558 = vcmp.lt.s32.totalorder %v2541, 16
        %vm2559 = vcmp.lt.s32.totalorder %v2551, 16
        %vm2560 = vcmp.lt.s32.totalorder %v2545, 16
        %vm2561 = vcmp.lt.s32.totalorder %v2553, 16
        %v2562 = vsel %vm2554, 1, 0
        %v2563 = vsel %vm2555, 1, 0
        %v2564 = vsel %vm2556, 1, 0
        %v2565 = vsel %vm2557, 1, 0
        %v2566 = vsel %vm2558, 1, 0
        %v2567 = vsel %vm2559, 1, 0
        %v2568 = vsel %vm2560, 1, 0
        %v2569 = vsel %vm2561, 1, 0
        %v2570 = vcvt.s32.f32 %v2562
        %v2571 = vcvt.s32.f32 %v2563
        %v2572 = vcvt.s32.f32 %v2564
        %v2573 = vcvt.s32.f32 %v2565
        %v2574 = vcvt.s32.f32 %v2566
        %v2575 = vcvt.s32.f32 %v2567
        %v2576 = vcvt.s32.f32 %v2568
        %v2577 = vcvt.s32.f32 %v2569
        %v2578 = vperm.slane %v2570, 0
        %v2579 = vperm.slane %v2571, 0
        %v2580 = vperm.slane %v2572, 0
        %v2581 = vperm.slane %v2573, 0
        %v2582 = vperm.slane %v2574, 0
        %v2583 = vperm.slane %v2575, 0
        %v2584 = vperm.slane %v2576, 0
        %v2585 = vperm.slane %v2577, 0
        %v2586 = vmul.f32 %v2473, %v2578
        %v2587 = vmul.f32 %v2474, %v2579
        %v2588 = vmul.f32 %v2475, %v2580
        %v2589 = vmul.f32 %v2476, %v2581
        %v2590 = vmul.f32 %v2477, %v2582
        %v2591 = vmul.f32 %v2478, %v2583
        %v2592 = vmul.f32 %v2479, %v2584
        %v2593 = vmul.f32 %v2480, %v2585
        %v2594 = vmul.f32 %v2481, %v2578
        %v2595 = vmul.f32 %v2482, %v2579
        %v2596 = vmul.f32 %v2483, %v2580
        %v2597 = vmul.f32 %v2484, %v2581
        %v2598 = vmul.f32 %v2485, %v2582
        %v2599 = vmul.f32 %v2486, %v2583
        %v2600 = vmul.f32 %v2487, %v2584
        %v2601 = vmul.f32 %v2488, %v2585
        %v2602 = vmul.f32 %v2489, %v2578
        %v2603 = vmul.f32 %v2490, %v2579
        %v2604 = vmul.f32 %v2491, %v2580
        %v2605 = vmul.f32 %v2492, %v2581
        %v2606 = vmul.f32 %v2493, %v2582
        %v2607 = vmul.f32 %v2494, %v2583
        %v2608 = vmul.f32 %v2495, %v2584
        %v2609 = vmul.f32 %v2496, %v2585
        %v2610 = vmul.f32 %v2497, %v2578
        %v2611 = vmul.f32 %v2498, %v2579
        %v2612 = vmul.f32 %v2499, %v2580
        %v2613 = vmul.f32 %v2500, %v2581
        %v2614 = vmul.f32 %v2501, %v2582
        %v2615 = vmul.f32 %v2502, %v2583
        %v2616 = vmul.f32 %v2503, %v2584
        %v2617 = vmul.f32 %v2504, %v2585
        %2618 = vst [vmem:[#allocation3 + $0x10] sm:$0xff] %v2586
        %2619 = vst [vmem:[#allocation3 + $0x18] sm:$0xff] %v2587
        %2620 = vst [vmem:[#allocation3 + $0x20] sm:$0xff] %v2588
        %2621 = vst [vmem:[#allocation3 + $0x28] sm:$0xff] %v2589
        %2622 = vst [vmem:[#allocation3 + $0x30] sm:$0xff] %v2590
        %2623 = vst [vmem:[#allocation3 + $0x38] sm:$0xff] %v2591
        %2624 = vst [vmem:[#allocation3 + $0x40] sm:$0xff] %v2592
        %2625 = vst [vmem:[#allocation3 + $0x48] sm:$0xff] %v2593
        %2626 = vst [vmem:[#allocation3 + $0x50] sm:$0xff] %v2594
        %2627 = vst [vmem:[#allocation3 + $0x58] sm:$0xff] %v2595
        %2628 = vst [vmem:[#allocation3 + $0x60] sm:$0xff] %v2596
        %2629 = vst [vmem:[#allocation3 + $0x68] sm:$0xff] %v2597
        %2630 = vst [vmem:[#allocation3 + $0x70] sm:$0xff] %v2598
        %2631 = vst [vmem:[#allocation3 + $0x78] sm:$0xff] %v2599
        %2632 = vst [vmem:[#allocation3 + $0x80] sm:$0xff] %v2600
        %2633 = vst [vmem:[#allocation3 + $0x88] sm:$0xff] %v2601
        %2634 = vst [vmem:[#allocation3 + $0xb0] sm:$0xff] %v2602
        %2635 = vst [vmem:[#allocation3 + $0xb8] sm:$0xff] %v2603
        %2636 = vst [vmem:[#allocation3 + $0xc0] sm:$0xff] %v2604
        %2637 = vst [vmem:[#allocation3 + $0xc8] sm:$0xff] %v2605
        %2638 = vst [vmem:[#allocation3 + $0xd0] sm:$0xff] %v2606
        %2639 = vst [vmem:[#allocation3 + $0xd8] sm:$0xff] %v2607
        %2640 = vst [vmem:[#allocation3 + $0xe0] sm:$0xff] %v2608
        %2641 = vst [vmem:[#allocation3 + $0xe8] sm:$0xff] %v2609
        %2642 = vst [vmem:[#allocation3 + $0xf0] sm:$0xff] %v2610
        %2643 = vst [vmem:[#allocation3 + $0xf8] sm:$0xff] %v2611
        %2644 = vst [vmem:[#allocation3 + $0x100] sm:$0xff] %v2612
        %2645 = vst [vmem:[#allocation3 + $0x108] sm:$0xff] %v2613
        %2646 = vst [vmem:[#allocation3 + $0x110] sm:$0xff] %v2614
        %2647 = vst [vmem:[#allocation3 + $0x118] sm:$0xff] %v2615
        %2648 = vst [vmem:[#allocation3 + $0x120] sm:$0xff] %v2616
        %2649 = vst [vmem:[#allocation3 + $0x128] sm:$0xff] %v2617
        %v2650 = vld [vmem:[#allocation3] sm:$0xff]
        %v2651 = vld [vmem:[#allocation3 + $0x8] sm:$0xff]
        %v2652 = vld [vmem:[#allocation3 + $0x10] sm:$0xff]
        %v2653 = vld [vmem:[#allocation3 + $0x18] sm:$0xff]
        %v2654 = vld [vmem:[#allocation3 + $0x20] sm:$0xff]
        %v2655 = vld [vmem:[#allocation3 + $0x28] sm:$0xff]
        %v2656 = vld [vmem:[#allocation3 + $0x30] sm:$0xff]
        %v2657 = vld [vmem:[#allocation3 + $0x38] sm:$0xff]
        %v2658 = vld [vmem:[#allocation3 + $0x40] sm:$0xff]
        %v2659 = vld [vmem:[#allocation3 + $0x48] sm:$0xff]
        %v2660 = vld [vmem:[#allocation3 + $0x50] sm:$0xff]
        %v2661 = vld [vmem:[#allocation3 + $0x58] sm:$0xff]
        %v2662 = vld [vmem:[#allocation3 + $0x60] sm:$0xff]
        %v2663 = vld [vmem:[#allocation3 + $0x68] sm:$0xff]
        %v2664 = vld [vmem:[#allocation3 + $0x70] sm:$0xff]
        %v2665 = vld [vmem:[#allocation3 + $0x78] sm:$0xff]
        %v2666 = vld [vmem:[#allocation3 + $0x80] sm:$0xff]
        %v2667 = vld [vmem:[#allocation3 + $0x88] sm:$0xff]
        %v2668 = vld [vmem:[#allocation3 + $0x90] sm:$0xff]
        %v2669 = vld [vmem:[#allocation3 + $0x98] sm:$0xff]
        %v2670 = vld [vmem:[#allocation3 + $0xa0] sm:$0xff]
        %v2671 = vld [vmem:[#allocation3 + $0xa8] sm:$0xff]
        %v2672 = vld [vmem:[#allocation3 + $0xb0] sm:$0xff]
        %v2673 = vld [vmem:[#allocation3 + $0xb8] sm:$0xff]
        %v2674 = vld [vmem:[#allocation3 + $0xc0] sm:$0xff]
        %v2675 = vld [vmem:[#allocation3 + $0xc8] sm:$0xff]
        %v2676 = vld [vmem:[#allocation3 + $0xd0] sm:$0xff]
        %v2677 = vld [vmem:[#allocation3 + $0xd8] sm:$0xff]
        %v2678 = vld [vmem:[#allocation3 + $0xe0] sm:$0xff]
        %v2679 = vld [vmem:[#allocation3 + $0xe8] sm:$0xff]
        %v2680 = vld [vmem:[#allocation3 + $0xf0] sm:$0xff]
        %v2681 = vld [vmem:[#allocation3 + $0xf8] sm:$0xff]
        %v2682 = vld [vmem:[#allocation3 + $0x100] sm:$0xff]
        %v2683 = vld [vmem:[#allocation3 + $0x108] sm:$0xff]
        %v2684 = vld [vmem:[#allocation3 + $0x110] sm:$0xff]
        %v2685 = vld [vmem:[#allocation3 + $0x118] sm:$0xff]
        %v2686 = vld [vmem:[#allocation3 + $0x120] sm:$0xff]
        %v2687 = vld [vmem:[#allocation3 + $0x128] sm:$0xff]
        %v2688 = vld [vmem:[#allocation3 + $0x130] sm:$0xff]
        %v2689 = vld [vmem:[#allocation3 + $0x138] sm:$0xff]
        %2724 = vrot.lane.b32.xlu0 %v2650, 1
        %v2725 = vpop.permute.xlu0 %2724
        %2726 = vrot.lane.b32.xlu0 %v2651, 1
        %v2727 = vpop.permute.xlu0 %2726
        %2728 = vrot.lane.b32.xlu0 %v2652, 1
        %v2729 = vpop.permute.xlu0 %2728
        %2730 = vrot.lane.b32.xlu0 %v2653, 1
        %v2731 = vpop.permute.xlu0 %2730
        %2732 = vrot.lane.b32.xlu0 %v2654, 1
        %v2733 = vpop.permute.xlu0 %2732
        %2734 = vrot.lane.b32.xlu0 %v2655, 1
        %v2735 = vpop.permute.xlu0 %2734
        %2736 = vrot.lane.b32.xlu0 %v2656, 1
        %v2737 = vpop.permute.xlu0 %2736
        %2738 = vrot.lane.b32.xlu0 %v2657, 1
        %v2739 = vpop.permute.xlu0 %2738
        %2740 = vrot.lane.b32.xlu0 %v2658, 1
        %v2741 = vpop.permute.xlu0 %2740
        %2742 = vrot.lane.b32.xlu0 %v2659, 1
        %v2743 = vpop.permute.xlu0 %2742
        %2744 = vrot.lane.b32.xlu0 %v2660, 1
        %v2745 = vpop.permute.xlu0 %2744
        %2746 = vrot.lane.b32.xlu0 %v2661, 1
        %v2747 = vpop.permute.xlu0 %2746
        %2748 = vrot.lane.b32.xlu0 %v2662, 1
        %v2749 = vpop.permute.xlu0 %2748
        %2750 = vrot.lane.b32.xlu0 %v2663, 1
        %v2751 = vpop.permute.xlu0 %2750
        %2752 = vrot.lane.b32.xlu0 %v2664, 1
        %v2753 = vpop.permute.xlu0 %2752
        %2754 = vrot.lane.b32.xlu0 %v2665, 1
        %v2755 = vpop.permute.xlu0 %2754
        %2756 = vrot.lane.b32.xlu0 %v2666, 1
        %v2757 = vpop.permute.xlu0 %2756
        %2758 = vrot.lane.b32.xlu0 %v2670, 1
        %v2759 = vpop.permute.xlu0 %2758
        %2760 = vrot.lane.b32.xlu0 %v2671, 1
        %v2761 = vpop.permute.xlu0 %2760
        %2762 = vrot.lane.b32.xlu0 %v2672, 1
        %v2763 = vpop.permute.xlu0 %2762
        %2764 = vrot.lane.b32.xlu0 %v2673, 1
        %v2765 = vpop.permute.xlu0 %2764
        %2766 = vrot.lane.b32.xlu0 %v2674, 1
        %v2767 = vpop.permute.xlu0 %2766
        %2768 = vrot.lane.b32.xlu0 %v2675, 1
        %v2769 = vpop.permute.xlu0 %2768
        %2770 = vrot.lane.b32.xlu0 %v2676, 1
        %v2771 = vpop.permute.xlu0 %2770
        %2772 = vrot.lane.b32.xlu0 %v2677, 1
        %v2773 = vpop.permute.xlu0 %2772
        %2774 = vrot.lane.b32.xlu0 %v2678, 1
        %v2775 = vpop.permute.xlu0 %2774
        %2776 = vrot.lane.b32.xlu0 %v2679, 1
        %v2777 = vpop.permute.xlu0 %2776
        %2778 = vrot.lane.b32.xlu0 %v2680, 1
        %v2779 = vpop.permute.xlu0 %2778
        %2780 = vrot.lane.b32.xlu0 %v2681, 1
        %v2781 = vpop.permute.xlu0 %2780
        %2782 = vrot.lane.b32.xlu0 %v2682, 1
        %v2783 = vpop.permute.xlu0 %2782
        %2784 = vrot.lane.b32.xlu0 %v2683, 1
        %v2785 = vpop.permute.xlu0 %2784
        %2786 = vrot.lane.b32.xlu0 %v2684, 1
        %v2787 = vpop.permute.xlu0 %2786
        %2788 = vrot.lane.b32.xlu0 %v2685, 1
        %v2789 = vpop.permute.xlu0 %2788
        %2790 = vrot.lane.b32.xlu0 %v2686, 1
        %v2791 = vpop.permute.xlu0 %2790
        %v2792 = vsel %vm731, %v2725, %v2727
        %v2793 = vsel %vm731, %v2727, %v2729
        %v2794 = vsel %vm731, %v2729, %v2731
        %v2795 = vsel %vm731, %v2731, %v2733
        %v2796 = vsel %vm731, %v2733, %v2735
        %v2797 = vsel %vm731, %v2735, %v2737
        %v2798 = vsel %vm731, %v2737, %v2739
        %v2799 = vsel %vm731, %v2739, %v2741
        %v2800 = vsel %vm731, %v2741, %v2743
        %v2801 = vsel %vm731, %v2743, %v2745
        %v2802 = vsel %vm731, %v2745, %v2747
        %v2803 = vsel %vm731, %v2747, %v2749
        %v2804 = vsel %vm731, %v2749, %v2751
        %v2805 = vsel %vm731, %v2751, %v2753
        %v2806 = vsel %vm731, %v2753, %v2755
        %v2807 = vsel %vm731, %v2755, %v2757
        %v2808 = vsel %vm731, %v2759, %v2761
        %v2809 = vsel %vm731, %v2761, %v2763
        %v2810 = vsel %vm731, %v2763, %v2765
        %v2811 = vsel %vm731, %v2765, %v2767
        %v2812 = vsel %vm731, %v2767, %v2769
        %v2813 = vsel %vm731, %v2769, %v2771
        %v2814 = vsel %vm731, %v2771, %v2773
        %v2815 = vsel %vm731, %v2773, %v2775
        %v2816 = vsel %vm731, %v2775, %v2777
        %v2817 = vsel %vm731, %v2777, %v2779
        %v2818 = vsel %vm731, %v2779, %v2781
        %v2819 = vsel %vm731, %v2781, %v2783
        %v2820 = vsel %vm731, %v2783, %v2785
        %v2821 = vsel %vm731, %v2785, %v2787
        %v2822 = vsel %vm731, %v2787, %v2789
        %v2823 = vsel %vm731, %v2789, %v2791
        %2856 = vst [vmem:[#allocation5] sm:$0xff] %v2792
        %2857 = vst [vmem:[#allocation5 + $0x8] sm:$0xff] %v2793
        %2858 = vst [vmem:[#allocation5 + $0x10] sm:$0xff] %v2794
        %2859 = vst [vmem:[#allocation5 + $0x18] sm:$0xff] %v2795
        %2860 = vst [vmem:[#allocation5 + $0x20] sm:$0xff] %v2796
        %2861 = vst [vmem:[#allocation5 + $0x28] sm:$0xff] %v2797
        %2862 = vst [vmem:[#allocation5 + $0x30] sm:$0xff] %v2798
        %2863 = vst [vmem:[#allocation5 + $0x38] sm:$0xff] %v2799
        %2864 = vst [vmem:[#allocation5 + $0x40] sm:$0xff] %v2800
        %2865 = vst [vmem:[#allocation5 + $0x48] sm:$0xff] %v2801
        %2866 = vst [vmem:[#allocation5 + $0x50] sm:$0xff] %v2802
        %2867 = vst [vmem:[#allocation5 + $0x58] sm:$0xff] %v2803
        %2868 = vst [vmem:[#allocation5 + $0x60] sm:$0xff] %v2804
        %2869 = vst [vmem:[#allocation5 + $0x68] sm:$0xff] %v2805
        %2870 = vst [vmem:[#allocation5 + $0x70] sm:$0xff] %v2806
        %2871 = vst [vmem:[#allocation5 + $0x78] sm:$0xff] %v2807
        %2872 = vst [vmem:[#allocation5 + $0x80] sm:$0xff] %v2808
        %2873 = vst [vmem:[#allocation5 + $0x88] sm:$0xff] %v2809
        %2874 = vst [vmem:[#allocation5 + $0x90] sm:$0xff] %v2810
        %2875 = vst [vmem:[#allocation5 + $0x98] sm:$0xff] %v2811
        %2876 = vst [vmem:[#allocation5 + $0xa0] sm:$0xff] %v2812
        %2877 = vst [vmem:[#allocation5 + $0xa8] sm:$0xff] %v2813
        %2878 = vst [vmem:[#allocation5 + $0xb0] sm:$0xff] %v2814
        %2879 = vst [vmem:[#allocation5 + $0xb8] sm:$0xff] %v2815
        %2880 = vst [vmem:[#allocation5 + $0xc0] sm:$0xff] %v2816
        %2881 = vst [vmem:[#allocation5 + $0xc8] sm:$0xff] %v2817
        %2882 = vst [vmem:[#allocation5 + $0xd0] sm:$0xff] %v2818
        %2883 = vst [vmem:[#allocation5 + $0xd8] sm:$0xff] %v2819
        %2884 = vst [vmem:[#allocation5 + $0xe0] sm:$0xff] %v2820
        %2885 = vst [vmem:[#allocation5 + $0xe8] sm:$0xff] %v2821
        %2886 = vst [vmem:[#allocation5 + $0xf0] sm:$0xff] %v2822
        %2887 = vst [vmem:[#allocation5 + $0xf8] sm:$0xff] %v2823
        %2888 = vst [vmem:[#allocation5 + $0x100] sm:$0xff] %v2651
        %2889 = vst [vmem:[#allocation5 + $0x108] sm:$0xff] %v2652
        %2890 = vst [vmem:[#allocation5 + $0x110] sm:$0xff] %v2653
        %2891 = vst [vmem:[#allocation5 + $0x118] sm:$0xff] %v2654
        %2892 = vst [vmem:[#allocation5 + $0x120] sm:$0xff] %v2655
        %2893 = vst [vmem:[#allocation5 + $0x128] sm:$0xff] %v2656
        %2894 = vst [vmem:[#allocation5 + $0x130] sm:$0xff] %v2657
        %2895 = vst [vmem:[#allocation5 + $0x138] sm:$0xff] %v2658
        %2896 = vst [vmem:[#allocation5 + $0x140] sm:$0xff] %v2659
        %2897 = vst [vmem:[#allocation5 + $0x148] sm:$0xff] %v2660
        %2898 = vst [vmem:[#allocation5 + $0x150] sm:$0xff] %v2661
        %2899 = vst [vmem:[#allocation5 + $0x158] sm:$0xff] %v2662
        %2900 = vst [vmem:[#allocation5 + $0x160] sm:$0xff] %v2663
        %2901 = vst [vmem:[#allocation5 + $0x168] sm:$0xff] %v2664
        %2902 = vst [vmem:[#allocation5 + $0x170] sm:$0xff] %v2665
        %2903 = vst [vmem:[#allocation5 + $0x178] sm:$0xff] %v2666
        %2904 = vst [vmem:[#allocation5 + $0x180] sm:$0xff] %v2671
        %2905 = vst [vmem:[#allocation5 + $0x188] sm:$0xff] %v2672
        %2906 = vst [vmem:[#allocation5 + $0x190] sm:$0xff] %v2673
        %2907 = vst [vmem:[#allocation5 + $0x198] sm:$0xff] %v2674
        %2908 = vst [vmem:[#allocation5 + $0x1a0] sm:$0xff] %v2675
        %2909 = vst [vmem:[#allocation5 + $0x1a8] sm:$0xff] %v2676
        %2910 = vst [vmem:[#allocation5 + $0x1b0] sm:$0xff] %v2677
        %2911 = vst [vmem:[#allocation5 + $0x1b8] sm:$0xff] %v2678
        %2912 = vst [vmem:[#allocation5 + $0x1c0] sm:$0xff] %v2679
        %2913 = vst [vmem:[#allocation5 + $0x1c8] sm:$0xff] %v2680
        %2914 = vst [vmem:[#allocation5 + $0x1d0] sm:$0xff] %v2681
        %2915 = vst [vmem:[#allocation5 + $0x1d8] sm:$0xff] %v2682
        %2916 = vst [vmem:[#allocation5 + $0x1e0] sm:$0xff] %v2683
        %2917 = vst [vmem:[#allocation5 + $0x1e8] sm:$0xff] %v2684
        %2918 = vst [vmem:[#allocation5 + $0x1f0] sm:$0xff] %v2685
        %2919 = vst [vmem:[#allocation5 + $0x1f8] sm:$0xff] %v2686
        %2922 = vrot.lane.b32.xlu0 %v2651, 127
        %v2923 = vpop.permute.xlu0 %2922
        %2924 = vrot.lane.b32.xlu0 %v2652, 127
        %v2925 = vpop.permute.xlu0 %2924
        %2926 = vrot.lane.b32.xlu0 %v2653, 127
        %v2927 = vpop.permute.xlu0 %2926
        %2928 = vrot.lane.b32.xlu0 %v2654, 127
        %v2929 = vpop.permute.xlu0 %2928
        %2930 = vrot.lane.b32.xlu0 %v2655, 127
        %v2931 = vpop.permute.xlu0 %2930
        %2932 = vrot.lane.b32.xlu0 %v2656, 127
        %v2933 = vpop.permute.xlu0 %2932
        %2934 = vrot.lane.b32.xlu0 %v2657, 127
        %v2935 = vpop.permute.xlu0 %2934
        %2936 = vrot.lane.b32.xlu0 %v2658, 127
        %v2937 = vpop.permute.xlu0 %2936
        %2938 = vrot.lane.b32.xlu0 %v2659, 127
        %v2939 = vpop.permute.xlu0 %2938
        %2940 = vrot.lane.b32.xlu0 %v2660, 127
        %v2941 = vpop.permute.xlu0 %2940
        %2942 = vrot.lane.b32.xlu0 %v2661, 127
        %v2943 = vpop.permute.xlu0 %2942
        %2944 = vrot.lane.b32.xlu0 %v2662, 127
        %v2945 = vpop.permute.xlu0 %2944
        %2946 = vrot.lane.b32.xlu0 %v2663, 127
        %v2947 = vpop.permute.xlu0 %2946
        %2948 = vrot.lane.b32.xlu0 %v2664, 127
        %v2949 = vpop.permute.xlu0 %2948
        %2950 = vrot.lane.b32.xlu0 %v2665, 127
        %v2951 = vpop.permute.xlu0 %2950
        %2952 = vrot.lane.b32.xlu0 %v2666, 127
        %v2953 = vpop.permute.xlu0 %2952
        %2954 = vrot.lane.b32.xlu0 %v2667, 127
        %v2955 = vpop.permute.xlu0 %2954
        %2956 = vrot.lane.b32.xlu0 %v2671, 127
        %v2957 = vpop.permute.xlu0 %2956
        %2958 = vrot.lane.b32.xlu0 %v2672, 127
        %v2959 = vpop.permute.xlu0 %2958
        %2960 = vrot.lane.b32.xlu0 %v2673, 127
        %v2961 = vpop.permute.xlu0 %2960
        %2962 = vrot.lane.b32.xlu0 %v2674, 127
        %v2963 = vpop.permute.xlu0 %2962
        %2964 = vrot.lane.b32.xlu0 %v2675, 127
        %v2965 = vpop.permute.xlu0 %2964
        %2966 = vrot.lane.b32.xlu0 %v2676, 127
        %v2967 = vpop.permute.xlu0 %2966
        %2968 = vrot.lane.b32.xlu0 %v2677, 127
        %v2969 = vpop.permute.xlu0 %2968
        %2970 = vrot.lane.b32.xlu0 %v2678, 127
        %v2971 = vpop.permute.xlu0 %2970
        %2972 = vrot.lane.b32.xlu0 %v2679, 127
        %v2973 = vpop.permute.xlu0 %2972
        %2974 = vrot.lane.b32.xlu0 %v2680, 127
        %v2975 = vpop.permute.xlu0 %2974
        %2976 = vrot.lane.b32.xlu0 %v2681, 127
        %v2977 = vpop.permute.xlu0 %2976
        %2978 = vrot.lane.b32.xlu0 %v2682, 127
        %v2979 = vpop.permute.xlu0 %2978
        %2980 = vrot.lane.b32.xlu0 %v2683, 127
        %v2981 = vpop.permute.xlu0 %2980
        %2982 = vrot.lane.b32.xlu0 %v2684, 127
        %v2983 = vpop.permute.xlu0 %2982
        %2984 = vrot.lane.b32.xlu0 %v2685, 127
        %v2985 = vpop.permute.xlu0 %2984
        %2986 = vrot.lane.b32.xlu0 %v2686, 127
        %v2987 = vpop.permute.xlu0 %2986
        %2988 = vrot.lane.b32.xlu0 %v2687, 127
        %v2989 = vpop.permute.xlu0 %2988
        %v2990 = vsel %vm930, %v2923, %v2925
        %v2991 = vsel %vm930, %v2925, %v2927
        %v2992 = vsel %vm930, %v2927, %v2929
        %v2993 = vsel %vm930, %v2929, %v2931
        %v2994 = vsel %vm930, %v2931, %v2933
        %v2995 = vsel %vm930, %v2933, %v2935
        %v2996 = vsel %vm930, %v2935, %v2937
        %v2997 = vsel %vm930, %v2937, %v2939
        %v2998 = vsel %vm930, %v2939, %v2941
        %v2999 = vsel %vm930, %v2941, %v2943
        %v3000 = vsel %vm930, %v2943, %v2945
        %v3001 = vsel %vm930, %v2945, %v2947
        %v3002 = vsel %vm930, %v2947, %v2949
        %v3003 = vsel %vm930, %v2949, %v2951
        %v3004 = vsel %vm930, %v2951, %v2953
        %v3005 = vsel %vm930, %v2953, %v2955
        %v3006 = vsel %vm930, %v2957, %v2959
        %v3007 = vsel %vm930, %v2959, %v2961
        %v3008 = vsel %vm930, %v2961, %v2963
        %v3009 = vsel %vm930, %v2963, %v2965
        %v3010 = vsel %vm930, %v2965, %v2967
        %v3011 = vsel %vm930, %v2967, %v2969
        %v3012 = vsel %vm930, %v2969, %v2971
        %v3013 = vsel %vm930, %v2971, %v2973
        %v3014 = vsel %vm930, %v2973, %v2975
        %v3015 = vsel %vm930, %v2975, %v2977
        %v3016 = vsel %vm930, %v2977, %v2979
        %v3017 = vsel %vm930, %v2979, %v2981
        %v3018 = vsel %vm930, %v2981, %v2983
        %v3019 = vsel %vm930, %v2983, %v2985
        %v3020 = vsel %vm930, %v2985, %v2987
        %v3021 = vsel %vm930, %v2987, %v2989
        %3054 = vst [vmem:[#allocation5 + $0x200] sm:$0xff] %v2990
        %3055 = vst [vmem:[#allocation5 + $0x208] sm:$0xff] %v2991
        %3056 = vst [vmem:[#allocation5 + $0x210] sm:$0xff] %v2992
        %3057 = vst [vmem:[#allocation5 + $0x218] sm:$0xff] %v2993
        %3058 = vst [vmem:[#allocation5 + $0x220] sm:$0xff] %v2994
        %3059 = vst [vmem:[#allocation5 + $0x228] sm:$0xff] %v2995
        %3060 = vst [vmem:[#allocation5 + $0x230] sm:$0xff] %v2996
        %3061 = vst [vmem:[#allocation5 + $0x238] sm:$0xff] %v2997
        %3062 = vst [vmem:[#allocation5 + $0x240] sm:$0xff] %v2998
        %3063 = vst [vmem:[#allocation5 + $0x248] sm:$0xff] %v2999
        %3064 = vst [vmem:[#allocation5 + $0x250] sm:$0xff] %v3000
        %3065 = vst [vmem:[#allocation5 + $0x258] sm:$0xff] %v3001
        %3066 = vst [vmem:[#allocation5 + $0x260] sm:$0xff] %v3002
        %3067 = vst [vmem:[#allocation5 + $0x268] sm:$0xff] %v3003
        %3068 = vst [vmem:[#allocation5 + $0x270] sm:$0xff] %v3004
        %3069 = vst [vmem:[#allocation5 + $0x278] sm:$0xff] %v3005
        %3070 = vst [vmem:[#allocation5 + $0x280] sm:$0xff] %v3006
        %3071 = vst [vmem:[#allocation5 + $0x288] sm:$0xff] %v3007
        %3072 = vst [vmem:[#allocation5 + $0x290] sm:$0xff] %v3008
        %3073 = vst [vmem:[#allocation5 + $0x298] sm:$0xff] %v3009
        %3074 = vst [vmem:[#allocation5 + $0x2a0] sm:$0xff] %v3010
        %3075 = vst [vmem:[#allocation5 + $0x2a8] sm:$0xff] %v3011
        %3076 = vst [vmem:[#allocation5 + $0x2b0] sm:$0xff] %v3012
        %3077 = vst [vmem:[#allocation5 + $0x2b8] sm:$0xff] %v3013
        %3078 = vst [vmem:[#allocation5 + $0x2c0] sm:$0xff] %v3014
        %3079 = vst [vmem:[#allocation5 + $0x2c8] sm:$0xff] %v3015
        %3080 = vst [vmem:[#allocation5 + $0x2d0] sm:$0xff] %v3016
        %3081 = vst [vmem:[#allocation5 + $0x2d8] sm:$0xff] %v3017
        %3082 = vst [vmem:[#allocation5 + $0x2e0] sm:$0xff] %v3018
        %3083 = vst [vmem:[#allocation5 + $0x2e8] sm:$0xff] %v3019
        %3084 = vst [vmem:[#allocation5 + $0x2f0] sm:$0xff] %v3020
        %3085 = vst [vmem:[#allocation5 + $0x2f8] sm:$0xff] %v3021
        %3086 = vrot.lane.b32.xlu0 %v2667, 1
        %v3087 = vpop.permute.xlu0 %3086
        %3088 = vrot.lane.b32.xlu0 %v2687, 1
        %v3089 = vpop.permute.xlu0 %3088
        %v3090 = vsel %vm731, %v2757, %v3087
        %v3091 = vsel %vm731, %v2791, %v3089
        %3094 = vst [vmem:[#allocation5 + $0x300] sm:$0xff] %v2793
        %3095 = vst [vmem:[#allocation5 + $0x308] sm:$0xff] %v2794
        %3096 = vst [vmem:[#allocation5 + $0x310] sm:$0xff] %v2795
        %3097 = vst [vmem:[#allocation5 + $0x318] sm:$0xff] %v2796
        %3098 = vst [vmem:[#allocation5 + $0x320] sm:$0xff] %v2797
        %3099 = vst [vmem:[#allocation5 + $0x328] sm:$0xff] %v2798
        %3100 = vst [vmem:[#allocation5 + $0x330] sm:$0xff] %v2799
        %3101 = vst [vmem:[#allocation5 + $0x338] sm:$0xff] %v2800
        %3102 = vst [vmem:[#allocation5 + $0x340] sm:$0xff] %v2801
        %3103 = vst [vmem:[#allocation5 + $0x348] sm:$0xff] %v2802
        %3104 = vst [vmem:[#allocation5 + $0x350] sm:$0xff] %v2803
        %3105 = vst [vmem:[#allocation5 + $0x358] sm:$0xff] %v2804
        %3106 = vst [vmem:[#allocation5 + $0x360] sm:$0xff] %v2805
        %3107 = vst [vmem:[#allocation5 + $0x368] sm:$0xff] %v2806
        %3108 = vst [vmem:[#allocation5 + $0x370] sm:$0xff] %v2807
        %3109 = vst [vmem:[#allocation5 + $0x378] sm:$0xff] %v3090
        %3110 = vst [vmem:[#allocation5 + $0x380] sm:$0xff] %v2809
        %3111 = vst [vmem:[#allocation5 + $0x388] sm:$0xff] %v2810
        %3112 = vst [vmem:[#allocation5 + $0x390] sm:$0xff] %v2811
        %3113 = vst [vmem:[#allocation5 + $0x398] sm:$0xff] %v2812
        %3114 = vst [vmem:[#allocation5 + $0x3a0] sm:$0xff] %v2813
        %3115 = vst [vmem:[#allocation5 + $0x3a8] sm:$0xff] %v2814
        %3116 = vst [vmem:[#allocation5 + $0x3b0] sm:$0xff] %v2815
        %3117 = vst [vmem:[#allocation5 + $0x3b8] sm:$0xff] %v2816
        %3118 = vst [vmem:[#allocation5 + $0x3c0] sm:$0xff] %v2817
        %3119 = vst [vmem:[#allocation5 + $0x3c8] sm:$0xff] %v2818
        %3120 = vst [vmem:[#allocation5 + $0x3d0] sm:$0xff] %v2819
        %3121 = vst [vmem:[#allocation5 + $0x3d8] sm:$0xff] %v2820
        %3122 = vst [vmem:[#allocation5 + $0x3e0] sm:$0xff] %v2821
        %3123 = vst [vmem:[#allocation5 + $0x3e8] sm:$0xff] %v2822
        %3124 = vst [vmem:[#allocation5 + $0x3f0] sm:$0xff] %v2823
        %3125 = vst [vmem:[#allocation5 + $0x3f8] sm:$0xff] %v3091
        %3126 = vst [vmem:[#allocation5 + $0x400] sm:$0xff] %v2652
        %3127 = vst [vmem:[#allocation5 + $0x408] sm:$0xff] %v2653
        %3128 = vst [vmem:[#allocation5 + $0x410] sm:$0xff] %v2654
        %3129 = vst [vmem:[#allocation5 + $0x418] sm:$0xff] %v2655
        %3130 = vst [vmem:[#allocation5 + $0x420] sm:$0xff] %v2656
        %3131 = vst [vmem:[#allocation5 + $0x428] sm:$0xff] %v2657
        %3132 = vst [vmem:[#allocation5 + $0x430] sm:$0xff] %v2658
        %3133 = vst [vmem:[#allocation5 + $0x438] sm:$0xff] %v2659
        %3134 = vst [vmem:[#allocation5 + $0x440] sm:$0xff] %v2660
        %3135 = vst [vmem:[#allocation5 + $0x448] sm:$0xff] %v2661
        %3136 = vst [vmem:[#allocation5 + $0x450] sm:$0xff] %v2662
        %3137 = vst [vmem:[#allocation5 + $0x458] sm:$0xff] %v2663
        %3138 = vst [vmem:[#allocation5 + $0x460] sm:$0xff] %v2664
        %3139 = vst [vmem:[#allocation5 + $0x468] sm:$0xff] %v2665
        %3140 = vst [vmem:[#allocation5 + $0x470] sm:$0xff] %v2666
        %3141 = vst [vmem:[#allocation5 + $0x478] sm:$0xff] %v2667
        %3142 = vst [vmem:[#allocation5 + $0x480] sm:$0xff] %v2672
        %3143 = vst [vmem:[#allocation5 + $0x488] sm:$0xff] %v2673
        %3144 = vst [vmem:[#allocation5 + $0x490] sm:$0xff] %v2674
        %3145 = vst [vmem:[#allocation5 + $0x498] sm:$0xff] %v2675
        %3146 = vst [vmem:[#allocation5 + $0x4a0] sm:$0xff] %v2676
        %3147 = vst [vmem:[#allocation5 + $0x4a8] sm:$0xff] %v2677
        %3148 = vst [vmem:[#allocation5 + $0x4b0] sm:$0xff] %v2678
        %3149 = vst [vmem:[#allocation5 + $0x4b8] sm:$0xff] %v2679
        %3150 = vst [vmem:[#allocation5 + $0x4c0] sm:$0xff] %v2680
        %3151 = vst [vmem:[#allocation5 + $0x4c8] sm:$0xff] %v2681
        %3152 = vst [vmem:[#allocation5 + $0x4d0] sm:$0xff] %v2682
        %3153 = vst [vmem:[#allocation5 + $0x4d8] sm:$0xff] %v2683
        %3154 = vst [vmem:[#allocation5 + $0x4e0] sm:$0xff] %v2684
        %3155 = vst [vmem:[#allocation5 + $0x4e8] sm:$0xff] %v2685
        %3156 = vst [vmem:[#allocation5 + $0x4f0] sm:$0xff] %v2686
        %3157 = vst [vmem:[#allocation5 + $0x4f8] sm:$0xff] %v2687
        %3160 = vrot.lane.b32.xlu0 %v2668, 127
        %v3161 = vpop.permute.xlu0 %3160
        %3162 = vrot.lane.b32.xlu0 %v2688, 127
        %v3163 = vpop.permute.xlu0 %3162
        %v3164 = vsel %vm930, %v2955, %v3161
        %v3165 = vsel %vm930, %v2989, %v3163
        %3168 = vst [vmem:[#allocation5 + $0x500] sm:$0xff] %v2991
        %3169 = vst [vmem:[#allocation5 + $0x508] sm:$0xff] %v2992
        %3170 = vst [vmem:[#allocation5 + $0x510] sm:$0xff] %v2993
        %3171 = vst [vmem:[#allocation5 + $0x518] sm:$0xff] %v2994
        %3172 = vst [vmem:[#allocation5 + $0x520] sm:$0xff] %v2995
        %3173 = vst [vmem:[#allocation5 + $0x528] sm:$0xff] %v2996
        %3174 = vst [vmem:[#allocation5 + $0x530] sm:$0xff] %v2997
        %3175 = vst [vmem:[#allocation5 + $0x538] sm:$0xff] %v2998
        %3176 = vst [vmem:[#allocation5 + $0x540] sm:$0xff] %v2999
        %3177 = vst [vmem:[#allocation5 + $0x548] sm:$0xff] %v3000
        %3178 = vst [vmem:[#allocation5 + $0x550] sm:$0xff] %v3001
        %3179 = vst [vmem:[#allocation5 + $0x558] sm:$0xff] %v3002
        %3180 = vst [vmem:[#allocation5 + $0x560] sm:$0xff] %v3003
        %3181 = vst [vmem:[#allocation5 + $0x568] sm:$0xff] %v3004
        %3182 = vst [vmem:[#allocation5 + $0x570] sm:$0xff] %v3005
        %3183 = vst [vmem:[#allocation5 + $0x578] sm:$0xff] %v3164
        %3184 = vst [vmem:[#allocation5 + $0x580] sm:$0xff] %v3007
        %3185 = vst [vmem:[#allocation5 + $0x588] sm:$0xff] %v3008
        %3186 = vst [vmem:[#allocation5 + $0x590] sm:$0xff] %v3009
        %3187 = vst [vmem:[#allocation5 + $0x598] sm:$0xff] %v3010
        %3188 = vst [vmem:[#allocation5 + $0x5a0] sm:$0xff] %v3011
        %3189 = vst [vmem:[#allocation5 + $0x5a8] sm:$0xff] %v3012
        %3190 = vst [vmem:[#allocation5 + $0x5b0] sm:$0xff] %v3013
        %3191 = vst [vmem:[#allocation5 + $0x5b8] sm:$0xff] %v3014
        %3192 = vst [vmem:[#allocation5 + $0x5c0] sm:$0xff] %v3015
        %3193 = vst [vmem:[#allocation5 + $0x5c8] sm:$0xff] %v3016
        %3194 = vst [vmem:[#allocation5 + $0x5d0] sm:$0xff] %v3017
        %3195 = vst [vmem:[#allocation5 + $0x5d8] sm:$0xff] %v3018
        %3196 = vst [vmem:[#allocation5 + $0x5e0] sm:$0xff] %v3019
        %3197 = vst [vmem:[#allocation5 + $0x5e8] sm:$0xff] %v3020
        %3198 = vst [vmem:[#allocation5 + $0x5f0] sm:$0xff] %v3021
        %3199 = vst [vmem:[#allocation5 + $0x5f8] sm:$0xff] %v3165
        %3200 = vrot.lane.b32.xlu0 %v2668, 1
        %v3201 = vpop.permute.xlu0 %3200
        %3202 = vrot.lane.b32.xlu0 %v2688, 1
        %v3203 = vpop.permute.xlu0 %3202
        %v3204 = vsel %vm731, %v3087, %v3201
        %v3205 = vsel %vm731, %v3089, %v3203
        %3208 = vst [vmem:[#allocation5 + $0x600] sm:$0xff] %v2794
        %3209 = vst [vmem:[#allocation5 + $0x608] sm:$0xff] %v2795
        %3210 = vst [vmem:[#allocation5 + $0x610] sm:$0xff] %v2796
        %3211 = vst [vmem:[#allocation5 + $0x618] sm:$0xff] %v2797
        %3212 = vst [vmem:[#allocation5 + $0x620] sm:$0xff] %v2798
        %3213 = vst [vmem:[#allocation5 + $0x628] sm:$0xff] %v2799
        %3214 = vst [vmem:[#allocation5 + $0x630] sm:$0xff] %v2800
        %3215 = vst [vmem:[#allocation5 + $0x638] sm:$0xff] %v2801
        %3216 = vst [vmem:[#allocation5 + $0x640] sm:$0xff] %v2802
        %3217 = vst [vmem:[#allocation5 + $0x648] sm:$0xff] %v2803
        %3218 = vst [vmem:[#allocation5 + $0x650] sm:$0xff] %v2804
        %3219 = vst [vmem:[#allocation5 + $0x658] sm:$0xff] %v2805
        %3220 = vst [vmem:[#allocation5 + $0x660] sm:$0xff] %v2806
        %3221 = vst [vmem:[#allocation5 + $0x668] sm:$0xff] %v2807
        %3222 = vst [vmem:[#allocation5 + $0x670] sm:$0xff] %v3090
        %3223 = vst [vmem:[#allocation5 + $0x678] sm:$0xff] %v3204
        %3224 = vst [vmem:[#allocation5 + $0x680] sm:$0xff] %v2810
        %3225 = vst [vmem:[#allocation5 + $0x688] sm:$0xff] %v2811
        %3226 = vst [vmem:[#allocation5 + $0x690] sm:$0xff] %v2812
        %3227 = vst [vmem:[#allocation5 + $0x698] sm:$0xff] %v2813
        %3228 = vst [vmem:[#allocation5 + $0x6a0] sm:$0xff] %v2814
        %3229 = vst [vmem:[#allocation5 + $0x6a8] sm:$0xff] %v2815
        %3230 = vst [vmem:[#allocation5 + $0x6b0] sm:$0xff] %v2816
        %3231 = vst [vmem:[#allocation5 + $0x6b8] sm:$0xff] %v2817
        %3232 = vst [vmem:[#allocation5 + $0x6c0] sm:$0xff] %v2818
        %3233 = vst [vmem:[#allocation5 + $0x6c8] sm:$0xff] %v2819
        %3234 = vst [vmem:[#allocation5 + $0x6d0] sm:$0xff] %v2820
        %3235 = vst [vmem:[#allocation5 + $0x6d8] sm:$0xff] %v2821
        %3236 = vst [vmem:[#allocation5 + $0x6e0] sm:$0xff] %v2822
        %3237 = vst [vmem:[#allocation5 + $0x6e8] sm:$0xff] %v2823
        %3238 = vst [vmem:[#allocation5 + $0x6f0] sm:$0xff] %v3091
        %3239 = vst [vmem:[#allocation5 + $0x6f8] sm:$0xff] %v3205
        %3240 = vst [vmem:[#allocation5 + $0x700] sm:$0xff] %v2653
        %3241 = vst [vmem:[#allocation5 + $0x708] sm:$0xff] %v2654
        %3242 = vst [vmem:[#allocation5 + $0x710] sm:$0xff] %v2655
        %3243 = vst [vmem:[#allocation5 + $0x718] sm:$0xff] %v2656
        %3244 = vst [vmem:[#allocation5 + $0x720] sm:$0xff] %v2657
        %3245 = vst [vmem:[#allocation5 + $0x728] sm:$0xff] %v2658
        %3246 = vst [vmem:[#allocation5 + $0x730] sm:$0xff] %v2659
        %3247 = vst [vmem:[#allocation5 + $0x738] sm:$0xff] %v2660
        %3248 = vst [vmem:[#allocation5 + $0x740] sm:$0xff] %v2661
        %3249 = vst [vmem:[#allocation5 + $0x748] sm:$0xff] %v2662
        %3250 = vst [vmem:[#allocation5 + $0x750] sm:$0xff] %v2663
        %3251 = vst [vmem:[#allocation5 + $0x758] sm:$0xff] %v2664
        %3252 = vst [vmem:[#allocation5 + $0x760] sm:$0xff] %v2665
        %3253 = vst [vmem:[#allocation5 + $0x768] sm:$0xff] %v2666
        %3254 = vst [vmem:[#allocation5 + $0x770] sm:$0xff] %v2667
        %3255 = vst [vmem:[#allocation5 + $0x778] sm:$0xff] %v2668
        %3256 = vst [vmem:[#allocation5 + $0x780] sm:$0xff] %v2673
        %3257 = vst [vmem:[#allocation5 + $0x788] sm:$0xff] %v2674
        %3258 = vst [vmem:[#allocation5 + $0x790] sm:$0xff] %v2675
        %3259 = vst [vmem:[#allocation5 + $0x798] sm:$0xff] %v2676
        %3260 = vst [vmem:[#allocation5 + $0x7a0] sm:$0xff] %v2677
        %3261 = vst [vmem:[#allocation5 + $0x7a8] sm:$0xff] %v2678
        %3262 = vst [vmem:[#allocation5 + $0x7b0] sm:$0xff] %v2679
        %3263 = vst [vmem:[#allocation5 + $0x7b8] sm:$0xff] %v2680
        %3264 = vst [vmem:[#allocation5 + $0x7c0] sm:$0xff] %v2681
        %3265 = vst [vmem:[#allocation5 + $0x7c8] sm:$0xff] %v2682
        %3266 = vst [vmem:[#allocation5 + $0x7d0] sm:$0xff] %v2683
        %3267 = vst [vmem:[#allocation5 + $0x7d8] sm:$0xff] %v2684
        %3268 = vst [vmem:[#allocation5 + $0x7e0] sm:$0xff] %v2685
        %3269 = vst [vmem:[#allocation5 + $0x7e8] sm:$0xff] %v2686
        %3270 = vst [vmem:[#allocation5 + $0x7f0] sm:$0xff] %v2687
        %3271 = vst [vmem:[#allocation5 + $0x7f8] sm:$0xff] %v2688
        %3274 = vrot.lane.b32.xlu0 %v2669, 127
        %v3275 = vpop.permute.xlu0 %3274
        %3276 = vrot.lane.b32.xlu0 %v2689, 127
        %v3277 = vpop.permute.xlu0 %3276
        %v3278 = vsel %vm930, %v3161, %v3275
        %v3279 = vsel %vm930, %v3163, %v3277
        %3282 = vst [vmem:[#allocation5 + $0x800] sm:$0xff] %v2992
        %3283 = vst [vmem:[#allocation5 + $0x808] sm:$0xff] %v2993
        %3284 = vst [vmem:[#allocation5 + $0x810] sm:$0xff] %v2994
        %3285 = vst [vmem:[#allocation5 + $0x818] sm:$0xff] %v2995
        %3286 = vst [vmem:[#allocation5 + $0x820] sm:$0xff] %v2996
        %3287 = vst [vmem:[#allocation5 + $0x828] sm:$0xff] %v2997
        %3288 = vst [vmem:[#allocation5 + $0x830] sm:$0xff] %v2998
        %3289 = vst [vmem:[#allocation5 + $0x838] sm:$0xff] %v2999
        %3290 = vst [vmem:[#allocation5 + $0x840] sm:$0xff] %v3000
        %3291 = vst [vmem:[#allocation5 + $0x848] sm:$0xff] %v3001
        %3292 = vst [vmem:[#allocation5 + $0x850] sm:$0xff] %v3002
        %3293 = vst [vmem:[#allocation5 + $0x858] sm:$0xff] %v3003
        %3294 = vst [vmem:[#allocation5 + $0x860] sm:$0xff] %v3004
        %3295 = vst [vmem:[#allocation5 + $0x868] sm:$0xff] %v3005
        %3296 = vst [vmem:[#allocation5 + $0x870] sm:$0xff] %v3164
        %3297 = vst [vmem:[#allocation5 + $0x878] sm:$0xff] %v3278
        %3298 = vst [vmem:[#allocation5 + $0x880] sm:$0xff] %v3008
        %3299 = vst [vmem:[#allocation5 + $0x888] sm:$0xff] %v3009
        %3300 = vst [vmem:[#allocation5 + $0x890] sm:$0xff] %v3010
        %3301 = vst [vmem:[#allocation5 + $0x898] sm:$0xff] %v3011
        %3302 = vst [vmem:[#allocation5 + $0x8a0] sm:$0xff] %v3012
        %3303 = vst [vmem:[#allocation5 + $0x8a8] sm:$0xff] %v3013
        %3304 = vst [vmem:[#allocation5 + $0x8b0] sm:$0xff] %v3014
        %3305 = vst [vmem:[#allocation5 + $0x8b8] sm:$0xff] %v3015
        %3306 = vst [vmem:[#allocation5 + $0x8c0] sm:$0xff] %v3016
        %3307 = vst [vmem:[#allocation5 + $0x8c8] sm:$0xff] %v3017
        %3308 = vst [vmem:[#allocation5 + $0x8d0] sm:$0xff] %v3018
        %3309 = vst [vmem:[#allocation5 + $0x8d8] sm:$0xff] %v3019
        %3310 = vst [vmem:[#allocation5 + $0x8e0] sm:$0xff] %v3020
        %3311 = vst [vmem:[#allocation5 + $0x8e8] sm:$0xff] %v3021
        %3312 = vst [vmem:[#allocation5 + $0x8f0] sm:$0xff] %v3165
        %3313 = vst [vmem:[#allocation5 + $0x8f8] sm:$0xff] %v3279
        %v3314 = vld [vmem:[%s3] sm:$0xff]
        %v3315 = vld [vmem:[%s3 + $0x8] sm:$0xff]
        %v3316 = vld [vmem:[#allocation5] sm:$0xff]
        %v3317 = vld [vmem:[#allocation5 + $0x8] sm:$0xff]
        %v3318 = vld [vmem:[#allocation5 + $0x10] sm:$0xff]
        %v3319 = vld [vmem:[#allocation5 + $0x18] sm:$0xff]
        %v3320 = vld [vmem:[#allocation5 + $0x20] sm:$0xff]
        %v3321 = vld [vmem:[#allocation5 + $0x28] sm:$0xff]
        %v3322 = vld [vmem:[#allocation5 + $0x30] sm:$0xff]
        %v3323 = vld [vmem:[#allocation5 + $0x38] sm:$0xff]
        %v3324 = vld [vmem:[#allocation5 + $0x40] sm:$0xff]
        %v3325 = vld [vmem:[#allocation5 + $0x48] sm:$0xff]
        %v3326 = vld [vmem:[#allocation5 + $0x50] sm:$0xff]
        %v3327 = vld [vmem:[#allocation5 + $0x58] sm:$0xff]
        %v3328 = vld [vmem:[#allocation5 + $0x60] sm:$0xff]
        %v3329 = vld [vmem:[#allocation5 + $0x68] sm:$0xff]
        %v3330 = vld [vmem:[#allocation5 + $0x70] sm:$0xff]
        %v3331 = vld [vmem:[#allocation5 + $0x78] sm:$0xff]
        %v3332 = vld [vmem:[#allocation5 + $0x80] sm:$0xff]
        %v3333 = vld [vmem:[#allocation5 + $0x88] sm:$0xff]
        %v3334 = vld [vmem:[#allocation5 + $0x90] sm:$0xff]
        %v3335 = vld [vmem:[#allocation5 + $0x98] sm:$0xff]
        %v3336 = vld [vmem:[#allocation5 + $0xa0] sm:$0xff]
        %v3337 = vld [vmem:[#allocation5 + $0xa8] sm:$0xff]
        %v3338 = vld [vmem:[#allocation5 + $0xb0] sm:$0xff]
        %v3339 = vld [vmem:[#allocation5 + $0xb8] sm:$0xff]
        %v3340 = vld [vmem:[#allocation5 + $0xc0] sm:$0xff]
        %v3341 = vld [vmem:[#allocation5 + $0xc8] sm:$0xff]
        %v3342 = vld [vmem:[#allocation5 + $0xd0] sm:$0xff]
        %v3343 = vld [vmem:[#allocation5 + $0xd8] sm:$0xff]
        %v3344 = vld [vmem:[#allocation5 + $0xe0] sm:$0xff]
        %v3345 = vld [vmem:[#allocation5 + $0xe8] sm:$0xff]
        %v3346 = vld [vmem:[#allocation5 + $0xf0] sm:$0xff]
        %v3347 = vld [vmem:[#allocation5 + $0xf8] sm:$0xff]
        %v3348 = vld [vmem:[#allocation5 + $0x100] sm:$0xff]
        %v3349 = vld [vmem:[#allocation5 + $0x108] sm:$0xff]
        %v3350 = vld [vmem:[#allocation5 + $0x110] sm:$0xff]
        %v3351 = vld [vmem:[#allocation5 + $0x118] sm:$0xff]
        %v3352 = vld [vmem:[#allocation5 + $0x120] sm:$0xff]
        %v3353 = vld [vmem:[#allocation5 + $0x128] sm:$0xff]
        %v3354 = vld [vmem:[#allocation5 + $0x130] sm:$0xff]
        %v3355 = vld [vmem:[#allocation5 + $0x138] sm:$0xff]
        %v3356 = vld [vmem:[#allocation5 + $0x140] sm:$0xff]
        %v3357 = vld [vmem:[#allocation5 + $0x148] sm:$0xff]
        %v3358 = vld [vmem:[#allocation5 + $0x150] sm:$0xff]
        %v3359 = vld [vmem:[#allocation5 + $0x158] sm:$0xff]
        %v3360 = vld [vmem:[#allocation5 + $0x160] sm:$0xff]
        %v3361 = vld [vmem:[#allocation5 + $0x168] sm:$0xff]
        %v3362 = vld [vmem:[#allocation5 + $0x170] sm:$0xff]
        %v3363 = vld [vmem:[#allocation5 + $0x178] sm:$0xff]
        %v3364 = vld [vmem:[#allocation5 + $0x180] sm:$0xff]
        %v3365 = vld [vmem:[#allocation5 + $0x188] sm:$0xff]
        %v3366 = vld [vmem:[#allocation5 + $0x190] sm:$0xff]
        %v3367 = vld [vmem:[#allocation5 + $0x198] sm:$0xff]
        %v3368 = vld [vmem:[#allocation5 + $0x1a0] sm:$0xff]
        %v3369 = vld [vmem:[#allocation5 + $0x1a8] sm:$0xff]
        %v3370 = vld [vmem:[#allocation5 + $0x1b0] sm:$0xff]
        %v3371 = vld [vmem:[#allocation5 + $0x1b8] sm:$0xff]
        %v3372 = vld [vmem:[#allocation5 + $0x1c0] sm:$0xff]
        %v3373 = vld [vmem:[#allocation5 + $0x1c8] sm:$0xff]
        %v3374 = vld [vmem:[#allocation5 + $0x1d0] sm:$0xff]
        %v3375 = vld [vmem:[#allocation5 + $0x1d8] sm:$0xff]
        %v3376 = vld [vmem:[#allocation5 + $0x1e0] sm:$0xff]
        %v3377 = vld [vmem:[#allocation5 + $0x1e8] sm:$0xff]
        %v3378 = vld [vmem:[#allocation5 + $0x1f0] sm:$0xff]
        %v3379 = vld [vmem:[#allocation5 + $0x1f8] sm:$0xff]
        %v3380 = vld [vmem:[#allocation5 + $0x200] sm:$0xff]
        %v3381 = vld [vmem:[#allocation5 + $0x208] sm:$0xff]
        %v3382 = vld [vmem:[#allocation5 + $0x210] sm:$0xff]
        %v3383 = vld [vmem:[#allocation5 + $0x218] sm:$0xff]
        %v3384 = vld [vmem:[#allocation5 + $0x220] sm:$0xff]
        %v3385 = vld [vmem:[#allocation5 + $0x228] sm:$0xff]
        %v3386 = vld [vmem:[#allocation5 + $0x230] sm:$0xff]
        %v3387 = vld [vmem:[#allocation5 + $0x238] sm:$0xff]
        %v3388 = vld [vmem:[#allocation5 + $0x240] sm:$0xff]
        %v3389 = vld [vmem:[#allocation5 + $0x248] sm:$0xff]
        %v3390 = vld [vmem:[#allocation5 + $0x250] sm:$0xff]
        %v3391 = vld [vmem:[#allocation5 + $0x258] sm:$0xff]
        %v3392 = vld [vmem:[#allocation5 + $0x260] sm:$0xff]
        %v3393 = vld [vmem:[#allocation5 + $0x268] sm:$0xff]
        %v3394 = vld [vmem:[#allocation5 + $0x270] sm:$0xff]
        %v3395 = vld [vmem:[#allocation5 + $0x278] sm:$0xff]
        %v3396 = vld [vmem:[#allocation5 + $0x280] sm:$0xff]
        %v3397 = vld [vmem:[#allocation5 + $0x288] sm:$0xff]
        %v3398 = vld [vmem:[#allocation5 + $0x290] sm:$0xff]
        %v3399 = vld [vmem:[#allocation5 + $0x298] sm:$0xff]
        %v3400 = vld [vmem:[#allocation5 + $0x2a0] sm:$0xff]
        %v3401 = vld [vmem:[#allocation5 + $0x2a8] sm:$0xff]
        %v3402 = vld [vmem:[#allocation5 + $0x2b0] sm:$0xff]
        %v3403 = vld [vmem:[#allocation5 + $0x2b8] sm:$0xff]
        %v3404 = vld [vmem:[#allocation5 + $0x2c0] sm:$0xff]
        %v3405 = vld [vmem:[#allocation5 + $0x2c8] sm:$0xff]
        %v3406 = vld [vmem:[#allocation5 + $0x2d0] sm:$0xff]
        %v3407 = vld [vmem:[#allocation5 + $0x2d8] sm:$0xff]
        %v3408 = vld [vmem:[#allocation5 + $0x2e0] sm:$0xff]
        %v3409 = vld [vmem:[#allocation5 + $0x2e8] sm:$0xff]
        %v3410 = vld [vmem:[#allocation5 + $0x2f0] sm:$0xff]
        %v3411 = vld [vmem:[#allocation5 + $0x2f8] sm:$0xff]
        %v3412 = vld [vmem:[#allocation5 + $0x300] sm:$0xff]
        %v3413 = vld [vmem:[#allocation5 + $0x308] sm:$0xff]
        %v3414 = vld [vmem:[#allocation5 + $0x310] sm:$0xff]
        %v3415 = vld [vmem:[#allocation5 + $0x318] sm:$0xff]
        %v3416 = vld [vmem:[#allocation5 + $0x320] sm:$0xff]
        %v3417 = vld [vmem:[#allocation5 + $0x328] sm:$0xff]
        %v3418 = vld [vmem:[#allocation5 + $0x330] sm:$0xff]
        %v3419 = vld [vmem:[#allocation5 + $0x338] sm:$0xff]
        %v3420 = vld [vmem:[#allocation5 + $0x340] sm:$0xff]
        %v3421 = vld [vmem:[#allocation5 + $0x348] sm:$0xff]
        %v3422 = vld [vmem:[#allocation5 + $0x350] sm:$0xff]
        %v3423 = vld [vmem:[#allocation5 + $0x358] sm:$0xff]
        %v3424 = vld [vmem:[#allocation5 + $0x360] sm:$0xff]
        %v3425 = vld [vmem:[#allocation5 + $0x368] sm:$0xff]
        %v3426 = vld [vmem:[#allocation5 + $0x370] sm:$0xff]
        %v3427 = vld [vmem:[#allocation5 + $0x378] sm:$0xff]
        %v3428 = vld [vmem:[#allocation5 + $0x380] sm:$0xff]
        %v3429 = vld [vmem:[#allocation5 + $0x388] sm:$0xff]
        %v3430 = vld [vmem:[#allocation5 + $0x390] sm:$0xff]
        %v3431 = vld [vmem:[#allocation5 + $0x398] sm:$0xff]
        %v3432 = vld [vmem:[#allocation5 + $0x3a0] sm:$0xff]
        %v3433 = vld [vmem:[#allocation5 + $0x3a8] sm:$0xff]
        %v3434 = vld [vmem:[#allocation5 + $0x3b0] sm:$0xff]
        %v3435 = vld [vmem:[#allocation5 + $0x3b8] sm:$0xff]
        %v3436 = vld [vmem:[#allocation5 + $0x3c0] sm:$0xff]
        %v3437 = vld [vmem:[#allocation5 + $0x3c8] sm:$0xff]
        %v3438 = vld [vmem:[#allocation5 + $0x3d0] sm:$0xff]
        %v3439 = vld [vmem:[#allocation5 + $0x3d8] sm:$0xff]
        %v3440 = vld [vmem:[#allocation5 + $0x3e0] sm:$0xff]
        %v3441 = vld [vmem:[#allocation5 + $0x3e8] sm:$0xff]
        %v3442 = vld [vmem:[#allocation5 + $0x3f0] sm:$0xff]
        %v3443 = vld [vmem:[#allocation5 + $0x3f8] sm:$0xff]
        %v3444 = vld [vmem:[#allocation5 + $0x400] sm:$0xff]
        %v3445 = vld [vmem:[#allocation5 + $0x408] sm:$0xff]
        %v3446 = vld [vmem:[#allocation5 + $0x410] sm:$0xff]
        %v3447 = vld [vmem:[#allocation5 + $0x418] sm:$0xff]
        %v3448 = vld [vmem:[#allocation5 + $0x420] sm:$0xff]
        %v3449 = vld [vmem:[#allocation5 + $0x428] sm:$0xff]
        %v3450 = vld [vmem:[#allocation5 + $0x430] sm:$0xff]
        %v3451 = vld [vmem:[#allocation5 + $0x438] sm:$0xff]
        %v3452 = vld [vmem:[#allocation5 + $0x440] sm:$0xff]
        %v3453 = vld [vmem:[#allocation5 + $0x448] sm:$0xff]
        %v3454 = vld [vmem:[#allocation5 + $0x450] sm:$0xff]
        %v3455 = vld [vmem:[#allocation5 + $0x458] sm:$0xff]
        %v3456 = vld [vmem:[#allocation5 + $0x460] sm:$0xff]
        %v3457 = vld [vmem:[#allocation5 + $0x468] sm:$0xff]
        %v3458 = vld [vmem:[#allocation5 + $0x470] sm:$0xff]
        %v3459 = vld [vmem:[#allocation5 + $0x478] sm:$0xff]
        %v3460 = vld [vmem:[#allocation5 + $0x480] sm:$0xff]
        %v3461 = vld [vmem:[#allocation5 + $0x488] sm:$0xff]
        %v3462 = vld [vmem:[#allocation5 + $0x490] sm:$0xff]
        %v3463 = vld [vmem:[#allocation5 + $0x498] sm:$0xff]
        %v3464 = vld [vmem:[#allocation5 + $0x4a0] sm:$0xff]
        %v3465 = vld [vmem:[#allocation5 + $0x4a8] sm:$0xff]
        %v3466 = vld [vmem:[#allocation5 + $0x4b0] sm:$0xff]
        %v3467 = vld [vmem:[#allocation5 + $0x4b8] sm:$0xff]
        %v3468 = vld [vmem:[#allocation5 + $0x4c0] sm:$0xff]
        %v3469 = vld [vmem:[#allocation5 + $0x4c8] sm:$0xff]
        %v3470 = vld [vmem:[#allocation5 + $0x4d0] sm:$0xff]
        %v3471 = vld [vmem:[#allocation5 + $0x4d8] sm:$0xff]
        %v3472 = vld [vmem:[#allocation5 + $0x4e0] sm:$0xff]
        %v3473 = vld [vmem:[#allocation5 + $0x4e8] sm:$0xff]
        %v3474 = vld [vmem:[#allocation5 + $0x4f0] sm:$0xff]
        %v3475 = vld [vmem:[#allocation5 + $0x4f8] sm:$0xff]
        %v3476 = vld [vmem:[#allocation5 + $0x500] sm:$0xff]
        %v3477 = vld [vmem:[#allocation5 + $0x508] sm:$0xff]
        %v3478 = vld [vmem:[#allocation5 + $0x510] sm:$0xff]
        %v3479 = vld [vmem:[#allocation5 + $0x518] sm:$0xff]
        %v3480 = vld [vmem:[#allocation5 + $0x520] sm:$0xff]
        %v3481 = vld [vmem:[#allocation5 + $0x528] sm:$0xff]
        %v3482 = vld [vmem:[#allocation5 + $0x530] sm:$0xff]
        %v3483 = vld [vmem:[#allocation5 + $0x538] sm:$0xff]
        %v3484 = vld [vmem:[#allocation5 + $0x540] sm:$0xff]
        %v3485 = vld [vmem:[#allocation5 + $0x548] sm:$0xff]
        %v3486 = vld [vmem:[#allocation5 + $0x550] sm:$0xff]
        %v3487 = vld [vmem:[#allocation5 + $0x558] sm:$0xff]
        %v3488 = vld [vmem:[#allocation5 + $0x560] sm:$0xff]
        %v3489 = vld [vmem:[#allocation5 + $0x568] sm:$0xff]
        %v3490 = vld [vmem:[#allocation5 + $0x570] sm:$0xff]
        %v3491 = vld [vmem:[#allocation5 + $0x578] sm:$0xff]
        %v3492 = vld [vmem:[#allocation5 + $0x580] sm:$0xff]
        %v3493 = vld [vmem:[#allocation5 + $0x588] sm:$0xff]
        %v3494 = vld [vmem:[#allocation5 + $0x590] sm:$0xff]
        %v3495 = vld [vmem:[#allocation5 + $0x598] sm:$0xff]
        %v3496 = vld [vmem:[#allocation5 + $0x5a0] sm:$0xff]
        %v3497 = vld [vmem:[#allocation5 + $0x5a8] sm:$0xff]
        %v3498 = vld [vmem:[#allocation5 + $0x5b0] sm:$0xff]
        %v3499 = vld [vmem:[#allocation5 + $0x5b8] sm:$0xff]
        %v3500 = vld [vmem:[#allocation5 + $0x5c0] sm:$0xff]
        %v3501 = vld [vmem:[#allocation5 + $0x5c8] sm:$0xff]
        %v3502 = vld [vmem:[#allocation5 + $0x5d0] sm:$0xff]
        %v3503 = vld [vmem:[#allocation5 + $0x5d8] sm:$0xff]
        %v3504 = vld [vmem:[#allocation5 + $0x5e0] sm:$0xff]
        %v3505 = vld [vmem:[#allocation5 + $0x5e8] sm:$0xff]
        %v3506 = vld [vmem:[#allocation5 + $0x5f0] sm:$0xff]
        %v3507 = vld [vmem:[#allocation5 + $0x5f8] sm:$0xff]
        %v3508 = vld [vmem:[#allocation5 + $0x600] sm:$0xff]
        %v3509 = vld [vmem:[#allocation5 + $0x608] sm:$0xff]
        %v3510 = vld [vmem:[#allocation5 + $0x610] sm:$0xff]
        %v3511 = vld [vmem:[#allocation5 + $0x618] sm:$0xff]
        %v3512 = vld [vmem:[#allocation5 + $0x620] sm:$0xff]
        %v3513 = vld [vmem:[#allocation5 + $0x628] sm:$0xff]
        %v3514 = vld [vmem:[#allocation5 + $0x630] sm:$0xff]
        %v3515 = vld [vmem:[#allocation5 + $0x638] sm:$0xff]
        %v3516 = vld [vmem:[#allocation5 + $0x640] sm:$0xff]
        %v3517 = vld [vmem:[#allocation5 + $0x648] sm:$0xff]
        %v3518 = vld [vmem:[#allocation5 + $0x650] sm:$0xff]
        %v3519 = vld [vmem:[#allocation5 + $0x658] sm:$0xff]
        %v3520 = vld [vmem:[#allocation5 + $0x660] sm:$0xff]
        %v3521 = vld [vmem:[#allocation5 + $0x668] sm:$0xff]
        %v3522 = vld [vmem:[#allocation5 + $0x670] sm:$0xff]
        %v3523 = vld [vmem:[#allocation5 + $0x678] sm:$0xff]
        %v3524 = vld [vmem:[#allocation5 + $0x680] sm:$0xff]
        %v3525 = vld [vmem:[#allocation5 + $0x688] sm:$0xff]
        %v3526 = vld [vmem:[#allocation5 + $0x690] sm:$0xff]
        %v3527 = vld [vmem:[#allocation5 + $0x698] sm:$0xff]
        %v3528 = vld [vmem:[#allocation5 + $0x6a0] sm:$0xff]
        %v3529 = vld [vmem:[#allocation5 + $0x6a8] sm:$0xff]
        %v3530 = vld [vmem:[#allocation5 + $0x6b0] sm:$0xff]
        %v3531 = vld [vmem:[#allocation5 + $0x6b8] sm:$0xff]
        %v3532 = vld [vmem:[#allocation5 + $0x6c0] sm:$0xff]
        %v3533 = vld [vmem:[#allocation5 + $0x6c8] sm:$0xff]
        %v3534 = vld [vmem:[#allocation5 + $0x6d0] sm:$0xff]
        %v3535 = vld [vmem:[#allocation5 + $0x6d8] sm:$0xff]
        %v3536 = vld [vmem:[#allocation5 + $0x6e0] sm:$0xff]
        %v3537 = vld [vmem:[#allocation5 + $0x6e8] sm:$0xff]
        %v3538 = vld [vmem:[#allocation5 + $0x6f0] sm:$0xff]
        %v3539 = vld [vmem:[#allocation5 + $0x6f8] sm:$0xff]
        %v3540 = vld [vmem:[#allocation5 + $0x700] sm:$0xff]
        %v3541 = vld [vmem:[#allocation5 + $0x708] sm:$0xff]
        %v3542 = vld [vmem:[#allocation5 + $0x710] sm:$0xff]
        %v3543 = vld [vmem:[#allocation5 + $0x718] sm:$0xff]
        %v3544 = vld [vmem:[#allocation5 + $0x720] sm:$0xff]
        %v3545 = vld [vmem:[#allocation5 + $0x728] sm:$0xff]
        %v3546 = vld [vmem:[#allocation5 + $0x730] sm:$0xff]
        %v3547 = vld [vmem:[#allocation5 + $0x738] sm:$0xff]
        %v3548 = vld [vmem:[#allocation5 + $0x740] sm:$0xff]
        %v3549 = vld [vmem:[#allocation5 + $0x748] sm:$0xff]
        %v3550 = vld [vmem:[#allocation5 + $0x750] sm:$0xff]
        %v3551 = vld [vmem:[#allocation5 + $0x758] sm:$0xff]
        %v3552 = vld [vmem:[#allocation5 + $0x760] sm:$0xff]
        %v3553 = vld [vmem:[#allocation5 + $0x768] sm:$0xff]
        %v3554 = vld [vmem:[#allocation5 + $0x770] sm:$0xff]
        %v3555 = vld [vmem:[#allocation5 + $0x778] sm:$0xff]
        %v3556 = vld [vmem:[#allocation5 + $0x780] sm:$0xff]
        %v3557 = vld [vmem:[#allocation5 + $0x788] sm:$0xff]
        %v3558 = vld [vmem:[#allocation5 + $0x790] sm:$0xff]
        %v3559 = vld [vmem:[#allocation5 + $0x798] sm:$0xff]
        %v3560 = vld [vmem:[#allocation5 + $0x7a0] sm:$0xff]
        %v3561 = vld [vmem:[#allocation5 + $0x7a8] sm:$0xff]
        %v3562 = vld [vmem:[#allocation5 + $0x7b0] sm:$0xff]
        %v3563 = vld [vmem:[#allocation5 + $0x7b8] sm:$0xff]
        %v3564 = vld [vmem:[#allocation5 + $0x7c0] sm:$0xff]
        %v3565 = vld [vmem:[#allocation5 + $0x7c8] sm:$0xff]
        %v3566 = vld [vmem:[#allocation5 + $0x7d0] sm:$0xff]
        %v3567 = vld [vmem:[#allocation5 + $0x7d8] sm:$0xff]
        %v3568 = vld [vmem:[#allocation5 + $0x7e0] sm:$0xff]
        %v3569 = vld [vmem:[#allocation5 + $0x7e8] sm:$0xff]
        %v3570 = vld [vmem:[#allocation5 + $0x7f0] sm:$0xff]
        %v3571 = vld [vmem:[#allocation5 + $0x7f8] sm:$0xff]
        %v3572 = vld [vmem:[#allocation5 + $0x800] sm:$0xff]
        %v3573 = vld [vmem:[#allocation5 + $0x808] sm:$0xff]
        %v3574 = vld [vmem:[#allocation5 + $0x810] sm:$0xff]
        %v3575 = vld [vmem:[#allocation5 + $0x818] sm:$0xff]
        %v3576 = vld [vmem:[#allocation5 + $0x820] sm:$0xff]
        %v3577 = vld [vmem:[#allocation5 + $0x828] sm:$0xff]
        %v3578 = vld [vmem:[#allocation5 + $0x830] sm:$0xff]
        %v3579 = vld [vmem:[#allocation5 + $0x838] sm:$0xff]
        %v3580 = vld [vmem:[#allocation5 + $0x840] sm:$0xff]
        %v3581 = vld [vmem:[#allocation5 + $0x848] sm:$0xff]
        %v3582 = vld [vmem:[#allocation5 + $0x850] sm:$0xff]
        %v3583 = vld [vmem:[#allocation5 + $0x858] sm:$0xff]
        %v3584 = vld [vmem:[#allocation5 + $0x860] sm:$0xff]
        %v3585 = vld [vmem:[#allocation5 + $0x868] sm:$0xff]
        %v3586 = vld [vmem:[#allocation5 + $0x870] sm:$0xff]
        %v3587 = vld [vmem:[#allocation5 + $0x878] sm:$0xff]
        %v3588 = vld [vmem:[#allocation5 + $0x880] sm:$0xff]
        %v3589 = vld [vmem:[#allocation5 + $0x888] sm:$0xff]
        %v3590 = vld [vmem:[#allocation5 + $0x890] sm:$0xff]
        %v3591 = vld [vmem:[#allocation5 + $0x898] sm:$0xff]
        %v3592 = vld [vmem:[#allocation5 + $0x8a0] sm:$0xff]
        %v3593 = vld [vmem:[#allocation5 + $0x8a8] sm:$0xff]
        %v3594 = vld [vmem:[#allocation5 + $0x8b0] sm:$0xff]
        %v3595 = vld [vmem:[#allocation5 + $0x8b8] sm:$0xff]
        %v3596 = vld [vmem:[#allocation5 + $0x8c0] sm:$0xff]
        %v3597 = vld [vmem:[#allocation5 + $0x8c8] sm:$0xff]
        %v3598 = vld [vmem:[#allocation5 + $0x8d0] sm:$0xff]
        %v3599 = vld [vmem:[#allocation5 + $0x8d8] sm:$0xff]
        %v3600 = vld [vmem:[#allocation5 + $0x8e0] sm:$0xff]
        %v3601 = vld [vmem:[#allocation5 + $0x8e8] sm:$0xff]
        %v3602 = vld [vmem:[#allocation5 + $0x8f0] sm:$0xff]
        %v3603 = vld [vmem:[#allocation5 + $0x8f8] sm:$0xff]
        %v3604 = vld [vmem:[%s4] sm:$0xff]
        %3606 = vset.pattern.permute.xlu0 0
        %3607 = vperm.xlu0 %3606, %v3604
        %v3608 = vpop.permute.xlu0 %3607
        %v3611 = vsel %vm1567, %v3315, 0
        %3613 = vmatpush.msra.mxu0 %v3556
        %3614 = vmatpush.msra.mxu0 %v3540
        %3615 = vmatpush.msra.mxu0 %v3524
        %3616 = vmatpush.msra.mxu0 %v3508
        %3617 = vmatpush.msra.mxu0 %v3492
        %3618 = vmatpush.msra.mxu0 %v3476
        %3619 = vmatpush.msra.mxu0 %v3460
        %3620 = vmatpush.msra.mxu0 %v3444
        %3621 = vmatpush.msra.mxu0 %v3428
        %3622 = vmatpush.msra.mxu0 %v3412
        %3623 = vmatpush.msra.mxu0 %v3396
        %3624 = vmatpush.msra.mxu0 %v3380
        %3625 = vmatpush.msra.mxu0 %v3364
        %3626 = vmatpush.msra.mxu0 %v3348
        %3627 = vmatpush.msra.mxu0 %v3332
        %3628 = vmatpush.msra.mxu0 %v3316
        %3629 = vmatmul.f32.gmra.mxu0 %v3314
        %v3630 = vpop.f32.mrf.mxu0
        %v3631 = vadd.f32 %v3608, %v3630
        %3632 = vdwg.mxu0
        %3633 = vmatpush.msra.mxu0 0.0
        %3634 = vmatpush.msra.mxu0 0.0
        %3635 = vmatpush.msra.mxu0 0.0
        %3636 = vmatpush.msra.mxu0 0.0
        %3637 = vmatpush.msra.mxu0 0.0
        %3638 = vmatpush.msra.mxu0 0.0
        %3639 = vmatpush.msra.mxu0 0.0
        %3640 = vmatpush.msra.mxu0 0.0
        %3641 = vmatpush.msra.mxu0 0.0
        %3642 = vmatpush.msra.mxu0 0.0
        %3643 = vmatpush.msra.mxu0 0.0
        %3644 = vmatpush.msra.mxu0 0.0
        %3645 = vmatpush.msra.mxu0 0.0
        %3646 = vmatpush.msra.mxu0 0.0
        %3647 = vmatpush.msra.mxu0 %v3588
        %3648 = vmatpush.msra.mxu0 %v3572
        %3649 = vmatmul.f32.gmra.mxu0 %v3611
        %v3650 = vpop.f32.mrf.mxu0
        %v3651 = vadd.f32 %v3631, %v3650
        %3652 = vdwg.mxu0
        %3653 = vmatpush.msra.mxu0 %v3557
        %3654 = vmatpush.msra.mxu0 %v3541
        %3655 = vmatpush.msra.mxu0 %v3525
        %3656 = vmatpush.msra.mxu0 %v3509
        %3657 = vmatpush.msra.mxu0 %v3493
        %3658 = vmatpush.msra.mxu0 %v3477
        %3659 = vmatpush.msra.mxu0 %v3461
        %3660 = vmatpush.msra.mxu0 %v3445
        %3661 = vmatpush.msra.mxu0 %v3429
        %3662 = vmatpush.msra.mxu0 %v3413
        %3663 = vmatpush.msra.mxu0 %v3397
        %3664 = vmatpush.msra.mxu0 %v3381
        %3665 = vmatpush.msra.mxu0 %v3365
        %3666 = vmatpush.msra.mxu0 %v3349
        %3667 = vmatpush.msra.mxu0 %v3333
        %3668 = vmatpush.msra.mxu0 %v3317
        %3669 = vmatmul.f32.gmra.mxu0 %v3314
        %v3670 = vpop.f32.mrf.mxu0
        %v3671 = vadd.f32 %v3608, %v3670
        %3672 = vdwg.mxu0
        %3673 = vmatpush.msra.mxu0 0.0
        %3674 = vmatpush.msra.mxu0 0.0
        %3675 = vmatpush.msra.mxu0 0.0
        %3676 = vmatpush.msra.mxu0 0.0
        %3677 = vmatpush.msra.mxu0 0.0
        %3678 = vmatpush.msra.mxu0 0.0
        %3679 = vmatpush.msra.mxu0 0.0
        %3680 = vmatpush.msra.mxu0 0.0
        %3681 = vmatpush.msra.mxu0 0.0
        %3682 = vmatpush.msra.mxu0 0.0
        %3683 = vmatpush.msra.mxu0 0.0
        %3684 = vmatpush.msra.mxu0 0.0
        %3685 = vmatpush.msra.mxu0 0.0
        %3686 = vmatpush.msra.mxu0 0.0
        %3687 = vmatpush.msra.mxu0 %v3589
        %3688 = vmatpush.msra.mxu0 %v3573
        %3689 = vmatmul.f32.gmra.mxu0 %v3611
        %v3690 = vpop.f32.mrf.mxu0
        %v3691 = vadd.f32 %v3671, %v3690
        %3692 = vdwg.mxu0
        %3693 = vmatpush.msra.mxu0 %v3558
        %3694 = vmatpush.msra.mxu0 %v3542
        %3695 = vmatpush.msra.mxu0 %v3526
        %3696 = vmatpush.msra.mxu0 %v3510
        %3697 = vmatpush.msra.mxu0 %v3494
        %3698 = vmatpush.msra.mxu0 %v3478
        %3699 = vmatpush.msra.mxu0 %v3462
        %3700 = vmatpush.msra.mxu0 %v3446
        %3701 = vmatpush.msra.mxu0 %v3430
        %3702 = vmatpush.msra.mxu0 %v3414
        %3703 = vmatpush.msra.mxu0 %v3398
        %3704 = vmatpush.msra.mxu0 %v3382
        %3705 = vmatpush.msra.mxu0 %v3366
        %3706 = vmatpush.msra.mxu0 %v3350
        %3707 = vmatpush.msra.mxu0 %v3334
        %3708 = vmatpush.msra.mxu0 %v3318
        %3709 = vmatmul.f32.gmra.mxu0 %v3314
        %v3710 = vpop.f32.mrf.mxu0
        %v3711 = vadd.f32 %v3608, %v3710
        %3712 = vdwg.mxu0
        %3713 = vmatpush.msra.mxu0 0.0
        %3714 = vmatpush.msra.mxu0 0.0
        %3715 = vmatpush.msra.mxu0 0.0
        %3716 = vmatpush.msra.mxu0 0.0
        %3717 = vmatpush.msra.mxu0 0.0
        %3718 = vmatpush.msra.mxu0 0.0
        %3719 = vmatpush.msra.mxu0 0.0
        %3720 = vmatpush.msra.mxu0 0.0
        %3721 = vmatpush.msra.mxu0 0.0
        %3722 = vmatpush.msra.mxu0 0.0
        %3723 = vmatpush.msra.mxu0 0.0
        %3724 = vmatpush.msra.mxu0 0.0
        %3725 = vmatpush.msra.mxu0 0.0
        %3726 = vmatpush.msra.mxu0 0.0
        %3727 = vmatpush.msra.mxu0 %v3590
        %3728 = vmatpush.msra.mxu0 %v3574
        %3729 = vmatmul.f32.gmra.mxu0 %v3611
        %v3730 = vpop.f32.mrf.mxu0
        %v3731 = vadd.f32 %v3711, %v3730
        %3732 = vdwg.mxu0
        %3733 = vmatpush.msra.mxu0 %v3559
        %3734 = vmatpush.msra.mxu0 %v3543
        %3735 = vmatpush.msra.mxu0 %v3527
        %3736 = vmatpush.msra.mxu0 %v3511
        %3737 = vmatpush.msra.mxu0 %v3495
        %3738 = vmatpush.msra.mxu0 %v3479
        %3739 = vmatpush.msra.mxu0 %v3463
        %3740 = vmatpush.msra.mxu0 %v3447
        %3741 = vmatpush.msra.mxu0 %v3431
        %3742 = vmatpush.msra.mxu0 %v3415
        %3743 = vmatpush.msra.mxu0 %v3399
        %3744 = vmatpush.msra.mxu0 %v3383
        %3745 = vmatpush.msra.mxu0 %v3367
        %3746 = vmatpush.msra.mxu0 %v3351
        %3747 = vmatpush.msra.mxu0 %v3335
        %3748 = vmatpush.msra.mxu0 %v3319
        %3749 = vmatmul.f32.gmra.mxu0 %v3314
        %v3750 = vpop.f32.mrf.mxu0
        %v3751 = vadd.f32 %v3608, %v3750
        %3752 = vdwg.mxu0
        %3753 = vmatpush.msra.mxu0 0.0
        %3754 = vmatpush.msra.mxu0 0.0
        %3755 = vmatpush.msra.mxu0 0.0
        %3756 = vmatpush.msra.mxu0 0.0
        %3757 = vmatpush.msra.mxu0 0.0
        %3758 = vmatpush.msra.mxu0 0.0
        %3759 = vmatpush.msra.mxu0 0.0
        %3760 = vmatpush.msra.mxu0 0.0
        %3761 = vmatpush.msra.mxu0 0.0
        %3762 = vmatpush.msra.mxu0 0.0
        %3763 = vmatpush.msra.mxu0 0.0
        %3764 = vmatpush.msra.mxu0 0.0
        %3765 = vmatpush.msra.mxu0 0.0
        %3766 = vmatpush.msra.mxu0 0.0
        %3767 = vmatpush.msra.mxu0 %v3591
        %3768 = vmatpush.msra.mxu0 %v3575
        %3769 = vmatmul.f32.gmra.mxu0 %v3611
        %v3770 = vpop.f32.mrf.mxu0
        %v3771 = vadd.f32 %v3751, %v3770
        %3772 = vdwg.mxu0
        %3773 = vmatpush.msra.mxu0 %v3560
        %3774 = vmatpush.msra.mxu0 %v3544
        %3775 = vmatpush.msra.mxu0 %v3528
        %3776 = vmatpush.msra.mxu0 %v3512
        %3777 = vmatpush.msra.mxu0 %v3496
        %3778 = vmatpush.msra.mxu0 %v3480
        %3779 = vmatpush.msra.mxu0 %v3464
        %3780 = vmatpush.msra.mxu0 %v3448
        %3781 = vmatpush.msra.mxu0 %v3432
        %3782 = vmatpush.msra.mxu0 %v3416
        %3783 = vmatpush.msra.mxu0 %v3400
        %3784 = vmatpush.msra.mxu0 %v3384
        %3785 = vmatpush.msra.mxu0 %v3368
        %3786 = vmatpush.msra.mxu0 %v3352
        %3787 = vmatpush.msra.mxu0 %v3336
        %3788 = vmatpush.msra.mxu0 %v3320
        %3789 = vmatmul.f32.gmra.mxu0 %v3314
        %v3790 = vpop.f32.mrf.mxu0
        %v3791 = vadd.f32 %v3608, %v3790
        %3792 = vdwg.mxu0
        %3793 = vmatpush.msra.mxu0 0.0
        %3794 = vmatpush.msra.mxu0 0.0
        %3795 = vmatpush.msra.mxu0 0.0
        %3796 = vmatpush.msra.mxu0 0.0
        %3797 = vmatpush.msra.mxu0 0.0
        %3798 = vmatpush.msra.mxu0 0.0
        %3799 = vmatpush.msra.mxu0 0.0
        %3800 = vmatpush.msra.mxu0 0.0
        %3801 = vmatpush.msra.mxu0 0.0
        %3802 = vmatpush.msra.mxu0 0.0
        %3803 = vmatpush.msra.mxu0 0.0
        %3804 = vmatpush.msra.mxu0 0.0
        %3805 = vmatpush.msra.mxu0 0.0
        %3806 = vmatpush.msra.mxu0 0.0
        %3807 = vmatpush.msra.mxu0 %v3592
        %3808 = vmatpush.msra.mxu0 %v3576
        %3809 = vmatmul.f32.gmra.mxu0 %v3611
        %v3810 = vpop.f32.mrf.mxu0
        %v3811 = vadd.f32 %v3791, %v3810
        %3812 = vdwg.mxu0
        %3813 = vmatpush.msra.mxu0 %v3561
        %3814 = vmatpush.msra.mxu0 %v3545
        %3815 = vmatpush.msra.mxu0 %v3529
        %3816 = vmatpush.msra.mxu0 %v3513
        %3817 = vmatpush.msra.mxu0 %v3497
        %3818 = vmatpush.msra.mxu0 %v3481
        %3819 = vmatpush.msra.mxu0 %v3465
        %3820 = vmatpush.msra.mxu0 %v3449
        %3821 = vmatpush.msra.mxu0 %v3433
        %3822 = vmatpush.msra.mxu0 %v3417
        %3823 = vmatpush.msra.mxu0 %v3401
        %3824 = vmatpush.msra.mxu0 %v3385
        %3825 = vmatpush.msra.mxu0 %v3369
        %3826 = vmatpush.msra.mxu0 %v3353
        %3827 = vmatpush.msra.mxu0 %v3337
        %3828 = vmatpush.msra.mxu0 %v3321
        %3829 = vmatmul.f32.gmra.mxu0 %v3314
        %v3830 = vpop.f32.mrf.mxu0
        %v3831 = vadd.f32 %v3608, %v3830
        %3832 = vdwg.mxu0
        %3833 = vmatpush.msra.mxu0 0.0
        %3834 = vmatpush.msra.mxu0 0.0
        %3835 = vmatpush.msra.mxu0 0.0
        %3836 = vmatpush.msra.mxu0 0.0
        %3837 = vmatpush.msra.mxu0 0.0
        %3838 = vmatpush.msra.mxu0 0.0
        %3839 = vmatpush.msra.mxu0 0.0
        %3840 = vmatpush.msra.mxu0 0.0
        %3841 = vmatpush.msra.mxu0 0.0
        %3842 = vmatpush.msra.mxu0 0.0
        %3843 = vmatpush.msra.mxu0 0.0
        %3844 = vmatpush.msra.mxu0 0.0
        %3845 = vmatpush.msra.mxu0 0.0
        %3846 = vmatpush.msra.mxu0 0.0
        %3847 = vmatpush.msra.mxu0 %v3593
        %3848 = vmatpush.msra.mxu0 %v3577
        %3849 = vmatmul.f32.gmra.mxu0 %v3611
        %v3850 = vpop.f32.mrf.mxu0
        %v3851 = vadd.f32 %v3831, %v3850
        %3852 = vdwg.mxu0
        %3853 = vmatpush.msra.mxu0 %v3562
        %3854 = vmatpush.msra.mxu0 %v3546
        %3855 = vmatpush.msra.mxu0 %v3530
        %3856 = vmatpush.msra.mxu0 %v3514
        %3857 = vmatpush.msra.mxu0 %v3498
        %3858 = vmatpush.msra.mxu0 %v3482
        %3859 = vmatpush.msra.mxu0 %v3466
        %3860 = vmatpush.msra.mxu0 %v3450
        %3861 = vmatpush.msra.mxu0 %v3434
        %3862 = vmatpush.msra.mxu0 %v3418
        %3863 = vmatpush.msra.mxu0 %v3402
        %3864 = vmatpush.msra.mxu0 %v3386
        %3865 = vmatpush.msra.mxu0 %v3370
        %3866 = vmatpush.msra.mxu0 %v3354
        %3867 = vmatpush.msra.mxu0 %v3338
        %3868 = vmatpush.msra.mxu0 %v3322
        %3869 = vmatmul.f32.gmra.mxu0 %v3314
        %v3870 = vpop.f32.mrf.mxu0
        %v3871 = vadd.f32 %v3608, %v3870
        %3872 = vdwg.mxu0
        %3873 = vmatpush.msra.mxu0 0.0
        %3874 = vmatpush.msra.mxu0 0.0
        %3875 = vmatpush.msra.mxu0 0.0
        %3876 = vmatpush.msra.mxu0 0.0
        %3877 = vmatpush.msra.mxu0 0.0
        %3878 = vmatpush.msra.mxu0 0.0
        %3879 = vmatpush.msra.mxu0 0.0
        %3880 = vmatpush.msra.mxu0 0.0
        %3881 = vmatpush.msra.mxu0 0.0
        %3882 = vmatpush.msra.mxu0 0.0
        %3883 = vmatpush.msra.mxu0 0.0
        %3884 = vmatpush.msra.mxu0 0.0
        %3885 = vmatpush.msra.mxu0 0.0
        %3886 = vmatpush.msra.mxu0 0.0
        %3887 = vmatpush.msra.mxu0 %v3594
        %3888 = vmatpush.msra.mxu0 %v3578
        %3889 = vmatmul.f32.gmra.mxu0 %v3611
        %v3890 = vpop.f32.mrf.mxu0
        %v3891 = vadd.f32 %v3871, %v3890
        %3892 = vdwg.mxu0
        %3893 = vmatpush.msra.mxu0 %v3563
        %3894 = vmatpush.msra.mxu0 %v3547
        %3895 = vmatpush.msra.mxu0 %v3531
        %3896 = vmatpush.msra.mxu0 %v3515
        %3897 = vmatpush.msra.mxu0 %v3499
        %3898 = vmatpush.msra.mxu0 %v3483
        %3899 = vmatpush.msra.mxu0 %v3467
        %3900 = vmatpush.msra.mxu0 %v3451
        %3901 = vmatpush.msra.mxu0 %v3435
        %3902 = vmatpush.msra.mxu0 %v3419
        %3903 = vmatpush.msra.mxu0 %v3403
        %3904 = vmatpush.msra.mxu0 %v3387
        %3905 = vmatpush.msra.mxu0 %v3371
        %3906 = vmatpush.msra.mxu0 %v3355
        %3907 = vmatpush.msra.mxu0 %v3339
        %3908 = vmatpush.msra.mxu0 %v3323
        %3909 = vmatmul.f32.gmra.mxu0 %v3314
        %v3910 = vpop.f32.mrf.mxu0
        %v3911 = vadd.f32 %v3608, %v3910
        %3912 = vdwg.mxu0
        %3913 = vmatpush.msra.mxu0 0.0
        %3914 = vmatpush.msra.mxu0 0.0
        %3915 = vmatpush.msra.mxu0 0.0
        %3916 = vmatpush.msra.mxu0 0.0
        %3917 = vmatpush.msra.mxu0 0.0
        %3918 = vmatpush.msra.mxu0 0.0
        %3919 = vmatpush.msra.mxu0 0.0
        %3920 = vmatpush.msra.mxu0 0.0
        %3921 = vmatpush.msra.mxu0 0.0
        %3922 = vmatpush.msra.mxu0 0.0
        %3923 = vmatpush.msra.mxu0 0.0
        %3924 = vmatpush.msra.mxu0 0.0
        %3925 = vmatpush.msra.mxu0 0.0
        %3926 = vmatpush.msra.mxu0 0.0
        %3927 = vmatpush.msra.mxu0 %v3595
        %3928 = vmatpush.msra.mxu0 %v3579
        %3929 = vmatmul.f32.gmra.mxu0 %v3611
        %v3930 = vpop.f32.mrf.mxu0
        %v3931 = vadd.f32 %v3911, %v3930
        %3932 = vdwg.mxu0
        %3933 = vmatpush.msra.mxu0 %v3564
        %3934 = vmatpush.msra.mxu0 %v3548
        %3935 = vmatpush.msra.mxu0 %v3532
        %3936 = vmatpush.msra.mxu0 %v3516
        %3937 = vmatpush.msra.mxu0 %v3500
        %3938 = vmatpush.msra.mxu0 %v3484
        %3939 = vmatpush.msra.mxu0 %v3468
        %3940 = vmatpush.msra.mxu0 %v3452
        %3941 = vmatpush.msra.mxu0 %v3436
        %3942 = vmatpush.msra.mxu0 %v3420
        %3943 = vmatpush.msra.mxu0 %v3404
        %3944 = vmatpush.msra.mxu0 %v3388
        %3945 = vmatpush.msra.mxu0 %v3372
        %3946 = vmatpush.msra.mxu0 %v3356
        %3947 = vmatpush.msra.mxu0 %v3340
        %3948 = vmatpush.msra.mxu0 %v3324
        %3949 = vmatmul.f32.gmra.mxu0 %v3314
        %v3950 = vpop.f32.mrf.mxu0
        %v3951 = vadd.f32 %v3608, %v3950
        %3952 = vdwg.mxu0
        %3953 = vmatpush.msra.mxu0 0.0
        %3954 = vmatpush.msra.mxu0 0.0
        %3955 = vmatpush.msra.mxu0 0.0
        %3956 = vmatpush.msra.mxu0 0.0
        %3957 = vmatpush.msra.mxu0 0.0
        %3958 = vmatpush.msra.mxu0 0.0
        %3959 = vmatpush.msra.mxu0 0.0
        %3960 = vmatpush.msra.mxu0 0.0
        %3961 = vmatpush.msra.mxu0 0.0
        %3962 = vmatpush.msra.mxu0 0.0
        %3963 = vmatpush.msra.mxu0 0.0
        %3964 = vmatpush.msra.mxu0 0.0
        %3965 = vmatpush.msra.mxu0 0.0
        %3966 = vmatpush.msra.mxu0 0.0
        %3967 = vmatpush.msra.mxu0 %v3596
        %3968 = vmatpush.msra.mxu0 %v3580
        %3969 = vmatmul.f32.gmra.mxu0 %v3611
        %v3970 = vpop.f32.mrf.mxu0
        %v3971 = vadd.f32 %v3951, %v3970
        %3972 = vdwg.mxu0
        %3973 = vmatpush.msra.mxu0 %v3565
        %3974 = vmatpush.msra.mxu0 %v3549
        %3975 = vmatpush.msra.mxu0 %v3533
        %3976 = vmatpush.msra.mxu0 %v3517
        %3977 = vmatpush.msra.mxu0 %v3501
        %3978 = vmatpush.msra.mxu0 %v3485
        %3979 = vmatpush.msra.mxu0 %v3469
        %3980 = vmatpush.msra.mxu0 %v3453
        %3981 = vmatpush.msra.mxu0 %v3437
        %3982 = vmatpush.msra.mxu0 %v3421
        %3983 = vmatpush.msra.mxu0 %v3405
        %3984 = vmatpush.msra.mxu0 %v3389
        %3985 = vmatpush.msra.mxu0 %v3373
        %3986 = vmatpush.msra.mxu0 %v3357
        %3987 = vmatpush.msra.mxu0 %v3341
        %3988 = vmatpush.msra.mxu0 %v3325
        %3989 = vmatmul.f32.gmra.mxu0 %v3314
        %v3990 = vpop.f32.mrf.mxu0
        %v3991 = vadd.f32 %v3608, %v3990
        %3992 = vdwg.mxu0
        %3993 = vmatpush.msra.mxu0 0.0
        %3994 = vmatpush.msra.mxu0 0.0
        %3995 = vmatpush.msra.mxu0 0.0
        %3996 = vmatpush.msra.mxu0 0.0
        %3997 = vmatpush.msra.mxu0 0.0
        %3998 = vmatpush.msra.mxu0 0.0
        %3999 = vmatpush.msra.mxu0 0.0
        %4000 = vmatpush.msra.mxu0 0.0
        %4001 = vmatpush.msra.mxu0 0.0
        %4002 = vmatpush.msra.mxu0 0.0
        %4003 = vmatpush.msra.mxu0 0.0
        %4004 = vmatpush.msra.mxu0 0.0
        %4005 = vmatpush.msra.mxu0 0.0
        %4006 = vmatpush.msra.mxu0 0.0
        %4007 = vmatpush.msra.mxu0 %v3597
        %4008 = vmatpush.msra.mxu0 %v3581
        %4009 = vmatmul.f32.gmra.mxu0 %v3611
        %v4010 = vpop.f32.mrf.mxu0
        %v4011 = vadd.f32 %v3991, %v4010
        %4012 = vdwg.mxu0
        %4013 = vmatpush.msra.mxu0 %v3566
        %4014 = vmatpush.msra.mxu0 %v3550
        %4015 = vmatpush.msra.mxu0 %v3534
        %4016 = vmatpush.msra.mxu0 %v3518
        %4017 = vmatpush.msra.mxu0 %v3502
        %4018 = vmatpush.msra.mxu0 %v3486
        %4019 = vmatpush.msra.mxu0 %v3470
        %4020 = vmatpush.msra.mxu0 %v3454
        %4021 = vmatpush.msra.mxu0 %v3438
        %4022 = vmatpush.msra.mxu0 %v3422
        %4023 = vmatpush.msra.mxu0 %v3406
        %4024 = vmatpush.msra.mxu0 %v3390
        %4025 = vmatpush.msra.mxu0 %v3374
        %4026 = vmatpush.msra.mxu0 %v3358
        %4027 = vmatpush.msra.mxu0 %v3342
        %4028 = vmatpush.msra.mxu0 %v3326
        %4029 = vmatmul.f32.gmra.mxu0 %v3314
        %v4030 = vpop.f32.mrf.mxu0
        %v4031 = vadd.f32 %v3608, %v4030
        %4032 = vdwg.mxu0
        %4033 = vmatpush.msra.mxu0 0.0
        %4034 = vmatpush.msra.mxu0 0.0
        %4035 = vmatpush.msra.mxu0 0.0
        %4036 = vmatpush.msra.mxu0 0.0
        %4037 = vmatpush.msra.mxu0 0.0
        %4038 = vmatpush.msra.mxu0 0.0
        %4039 = vmatpush.msra.mxu0 0.0
        %4040 = vmatpush.msra.mxu0 0.0
        %4041 = vmatpush.msra.mxu0 0.0
        %4042 = vmatpush.msra.mxu0 0.0
        %4043 = vmatpush.msra.mxu0 0.0
        %4044 = vmatpush.msra.mxu0 0.0
        %4045 = vmatpush.msra.mxu0 0.0
        %4046 = vmatpush.msra.mxu0 0.0
        %4047 = vmatpush.msra.mxu0 %v3598
        %4048 = vmatpush.msra.mxu0 %v3582
        %4049 = vmatmul.f32.gmra.mxu0 %v3611
        %v4050 = vpop.f32.mrf.mxu0
        %v4051 = vadd.f32 %v4031, %v4050
        %4052 = vdwg.mxu0
        %4053 = vmatpush.msra.mxu0 %v3567
        %4054 = vmatpush.msra.mxu0 %v3551
        %4055 = vmatpush.msra.mxu0 %v3535
        %4056 = vmatpush.msra.mxu0 %v3519
        %4057 = vmatpush.msra.mxu0 %v3503
        %4058 = vmatpush.msra.mxu0 %v3487
        %4059 = vmatpush.msra.mxu0 %v3471
        %4060 = vmatpush.msra.mxu0 %v3455
        %4061 = vmatpush.msra.mxu0 %v3439
        %4062 = vmatpush.msra.mxu0 %v3423
        %4063 = vmatpush.msra.mxu0 %v3407
        %4064 = vmatpush.msra.mxu0 %v3391
        %4065 = vmatpush.msra.mxu0 %v3375
        %4066 = vmatpush.msra.mxu0 %v3359
        %4067 = vmatpush.msra.mxu0 %v3343
        %4068 = vmatpush.msra.mxu0 %v3327
        %4069 = vmatmul.f32.gmra.mxu0 %v3314
        %v4070 = vpop.f32.mrf.mxu0
        %v4071 = vadd.f32 %v3608, %v4070
        %4072 = vdwg.mxu0
        %4073 = vmatpush.msra.mxu0 0.0
        %4074 = vmatpush.msra.mxu0 0.0
        %4075 = vmatpush.msra.mxu0 0.0
        %4076 = vmatpush.msra.mxu0 0.0
        %4077 = vmatpush.msra.mxu0 0.0
        %4078 = vmatpush.msra.mxu0 0.0
        %4079 = vmatpush.msra.mxu0 0.0
        %4080 = vmatpush.msra.mxu0 0.0
        %4081 = vmatpush.msra.mxu0 0.0
        %4082 = vmatpush.msra.mxu0 0.0
        %4083 = vmatpush.msra.mxu0 0.0
        %4084 = vmatpush.msra.mxu0 0.0
        %4085 = vmatpush.msra.mxu0 0.0
        %4086 = vmatpush.msra.mxu0 0.0
        %4087 = vmatpush.msra.mxu0 %v3599
        %4088 = vmatpush.msra.mxu0 %v3583
        %4089 = vmatmul.f32.gmra.mxu0 %v3611
        %v4090 = vpop.f32.mrf.mxu0
        %v4091 = vadd.f32 %v4071, %v4090
        %4092 = vdwg.mxu0
        %4093 = vmatpush.msra.mxu0 %v3568
        %4094 = vmatpush.msra.mxu0 %v3552
        %4095 = vmatpush.msra.mxu0 %v3536
        %4096 = vmatpush.msra.mxu0 %v3520
        %4097 = vmatpush.msra.mxu0 %v3504
        %4098 = vmatpush.msra.mxu0 %v3488
        %4099 = vmatpush.msra.mxu0 %v3472
        %4100 = vmatpush.msra.mxu0 %v3456
        %4101 = vmatpush.msra.mxu0 %v3440
        %4102 = vmatpush.msra.mxu0 %v3424
        %4103 = vmatpush.msra.mxu0 %v3408
        %4104 = vmatpush.msra.mxu0 %v3392
        %4105 = vmatpush.msra.mxu0 %v3376
        %4106 = vmatpush.msra.mxu0 %v3360
        %4107 = vmatpush.msra.mxu0 %v3344
        %4108 = vmatpush.msra.mxu0 %v3328
        %4109 = vmatmul.f32.gmra.mxu0 %v3314
        %v4110 = vpop.f32.mrf.mxu0
        %v4111 = vadd.f32 %v3608, %v4110
        %4112 = vdwg.mxu0
        %4113 = vmatpush.msra.mxu0 0.0
        %4114 = vmatpush.msra.mxu0 0.0
        %4115 = vmatpush.msra.mxu0 0.0
        %4116 = vmatpush.msra.mxu0 0.0
        %4117 = vmatpush.msra.mxu0 0.0
        %4118 = vmatpush.msra.mxu0 0.0
        %4119 = vmatpush.msra.mxu0 0.0
        %4120 = vmatpush.msra.mxu0 0.0
        %4121 = vmatpush.msra.mxu0 0.0
        %4122 = vmatpush.msra.mxu0 0.0
        %4123 = vmatpush.msra.mxu0 0.0
        %4124 = vmatpush.msra.mxu0 0.0
        %4125 = vmatpush.msra.mxu0 0.0
        %4126 = vmatpush.msra.mxu0 0.0
        %4127 = vmatpush.msra.mxu0 %v3600
        %4128 = vmatpush.msra.mxu0 %v3584
        %4129 = vmatmul.f32.gmra.mxu0 %v3611
        %v4130 = vpop.f32.mrf.mxu0
        %v4131 = vadd.f32 %v4111, %v4130
        %4132 = vdwg.mxu0
        %4133 = vmatpush.msra.mxu0 %v3569
        %4134 = vmatpush.msra.mxu0 %v3553
        %4135 = vmatpush.msra.mxu0 %v3537
        %4136 = vmatpush.msra.mxu0 %v3521
        %4137 = vmatpush.msra.mxu0 %v3505
        %4138 = vmatpush.msra.mxu0 %v3489
        %4139 = vmatpush.msra.mxu0 %v3473
        %4140 = vmatpush.msra.mxu0 %v3457
        %4141 = vmatpush.msra.mxu0 %v3441
        %4142 = vmatpush.msra.mxu0 %v3425
        %4143 = vmatpush.msra.mxu0 %v3409
        %4144 = vmatpush.msra.mxu0 %v3393
        %4145 = vmatpush.msra.mxu0 %v3377
        %4146 = vmatpush.msra.mxu0 %v3361
        %4147 = vmatpush.msra.mxu0 %v3345
        %4148 = vmatpush.msra.mxu0 %v3329
        %4149 = vmatmul.f32.gmra.mxu0 %v3314
        %v4150 = vpop.f32.mrf.mxu0
        %v4151 = vadd.f32 %v3608, %v4150
        %4152 = vdwg.mxu0
        %4153 = vmatpush.msra.mxu0 0.0
        %4154 = vmatpush.msra.mxu0 0.0
        %4155 = vmatpush.msra.mxu0 0.0
        %4156 = vmatpush.msra.mxu0 0.0
        %4157 = vmatpush.msra.mxu0 0.0
        %4158 = vmatpush.msra.mxu0 0.0
        %4159 = vmatpush.msra.mxu0 0.0
        %4160 = vmatpush.msra.mxu0 0.0
        %4161 = vmatpush.msra.mxu0 0.0
        %4162 = vmatpush.msra.mxu0 0.0
        %4163 = vmatpush.msra.mxu0 0.0
        %4164 = vmatpush.msra.mxu0 0.0
        %4165 = vmatpush.msra.mxu0 0.0
        %4166 = vmatpush.msra.mxu0 0.0
        %4167 = vmatpush.msra.mxu0 %v3601
        %4168 = vmatpush.msra.mxu0 %v3585
        %4169 = vmatmul.f32.gmra.mxu0 %v3611
        %v4170 = vpop.f32.mrf.mxu0
        %v4171 = vadd.f32 %v4151, %v4170
        %4172 = vdwg.mxu0
        %4173 = vmatpush.msra.mxu0 %v3570
        %4174 = vmatpush.msra.mxu0 %v3554
        %4175 = vmatpush.msra.mxu0 %v3538
        %4176 = vmatpush.msra.mxu0 %v3522
        %4177 = vmatpush.msra.mxu0 %v3506
        %4178 = vmatpush.msra.mxu0 %v3490
        %4179 = vmatpush.msra.mxu0 %v3474
        %4180 = vmatpush.msra.mxu0 %v3458
        %4181 = vmatpush.msra.mxu0 %v3442
        %4182 = vmatpush.msra.mxu0 %v3426
        %4183 = vmatpush.msra.mxu0 %v3410
        %4184 = vmatpush.msra.mxu0 %v3394
        %4185 = vmatpush.msra.mxu0 %v3378
        %4186 = vmatpush.msra.mxu0 %v3362
        %4187 = vmatpush.msra.mxu0 %v3346
        %4188 = vmatpush.msra.mxu0 %v3330
        %4189 = vmatmul.f32.gmra.mxu0 %v3314
        %v4190 = vpop.f32.mrf.mxu0
        %v4191 = vadd.f32 %v3608, %v4190
        %4192 = vdwg.mxu0
        %4193 = vmatpush.msra.mxu0 0.0
        %4194 = vmatpush.msra.mxu0 0.0
        %4195 = vmatpush.msra.mxu0 0.0
        %4196 = vmatpush.msra.mxu0 0.0
        %4197 = vmatpush.msra.mxu0 0.0
        %4198 = vmatpush.msra.mxu0 0.0
        %4199 = vmatpush.msra.mxu0 0.0
        %4200 = vmatpush.msra.mxu0 0.0
        %4201 = vmatpush.msra.mxu0 0.0
        %4202 = vmatpush.msra.mxu0 0.0
        %4203 = vmatpush.msra.mxu0 0.0
        %4204 = vmatpush.msra.mxu0 0.0
        %4205 = vmatpush.msra.mxu0 0.0
        %4206 = vmatpush.msra.mxu0 0.0
        %4207 = vmatpush.msra.mxu0 %v3602
        %4208 = vmatpush.msra.mxu0 %v3586
        %4209 = vmatmul.f32.gmra.mxu0 %v3611
        %v4210 = vpop.f32.mrf.mxu0
        %v4211 = vadd.f32 %v4191, %v4210
        %4212 = vdwg.mxu0
        %4213 = vmatpush.msra.mxu0 %v3571
        %4214 = vmatpush.msra.mxu0 %v3555
        %4215 = vmatpush.msra.mxu0 %v3539
        %4216 = vmatpush.msra.mxu0 %v3523
        %4217 = vmatpush.msra.mxu0 %v3507
        %4218 = vmatpush.msra.mxu0 %v3491
        %4219 = vmatpush.msra.mxu0 %v3475
        %4220 = vmatpush.msra.mxu0 %v3459
        %4221 = vmatpush.msra.mxu0 %v3443
        %4222 = vmatpush.msra.mxu0 %v3427
        %4223 = vmatpush.msra.mxu0 %v3411
        %4224 = vmatpush.msra.mxu0 %v3395
        %4225 = vmatpush.msra.mxu0 %v3379
        %4226 = vmatpush.msra.mxu0 %v3363
        %4227 = vmatpush.msra.mxu0 %v3347
        %4228 = vmatpush.msra.mxu0 %v3331
        %4229 = vmatmul.f32.gmra.mxu0 %v3314
        %v4230 = vpop.f32.mrf.mxu0
        %v4231 = vadd.f32 %v3608, %v4230
        %4232 = vdwg.mxu0
        %4233 = vmatpush.msra.mxu0 0.0
        %4234 = vmatpush.msra.mxu0 0.0
        %4235 = vmatpush.msra.mxu0 0.0
        %4236 = vmatpush.msra.mxu0 0.0
        %4237 = vmatpush.msra.mxu0 0.0
        %4238 = vmatpush.msra.mxu0 0.0
        %4239 = vmatpush.msra.mxu0 0.0
        %4240 = vmatpush.msra.mxu0 0.0
        %4241 = vmatpush.msra.mxu0 0.0
        %4242 = vmatpush.msra.mxu0 0.0
        %4243 = vmatpush.msra.mxu0 0.0
        %4244 = vmatpush.msra.mxu0 0.0
        %4245 = vmatpush.msra.mxu0 0.0
        %4246 = vmatpush.msra.mxu0 0.0
        %4247 = vmatpush.msra.mxu0 %v3603
        %4248 = vmatpush.msra.mxu0 %v3587
        %4249 = vmatmul.f32.gmra.mxu0 %v3611
        %v4250 = vpop.f32.mrf.mxu0
        %v4251 = vadd.f32 %v4231, %v4250
        %4252 = vdwg.mxu0
        %vm4253 = vcmp.ge.f32.partialorder %v3651, 0.0
        %vm4254 = vcmp.ge.f32.partialorder %v3691, 0.0
        %vm4255 = vcmp.ge.f32.partialorder %v3731, 0.0
        %vm4256 = vcmp.ge.f32.partialorder %v3771, 0.0
        %vm4257 = vcmp.ge.f32.partialorder %v3811, 0.0
        %vm4258 = vcmp.ge.f32.partialorder %v3851, 0.0
        %vm4259 = vcmp.ge.f32.partialorder %v3891, 0.0
        %vm4260 = vcmp.ge.f32.partialorder %v3931, 0.0
        %vm4261 = vcmp.ge.f32.partialorder %v3971, 0.0
        %vm4262 = vcmp.ge.f32.partialorder %v4011, 0.0
        %vm4263 = vcmp.ge.f32.partialorder %v4051, 0.0
        %vm4264 = vcmp.ge.f32.partialorder %v4091, 0.0
        %vm4265 = vcmp.ge.f32.partialorder %v4131, 0.0
        %vm4266 = vcmp.ge.f32.partialorder %v4171, 0.0
        %vm4267 = vcmp.ge.f32.partialorder %v4211, 0.0
        %vm4268 = vcmp.ge.f32.partialorder %v4251, 0.0
        %v4269 = vmul.f32 %v3651, 0.2
        %v4270 = vmul.f32 %v3691, 0.2
        %v4271 = vmul.f32 %v3731, 0.2
        %v4272 = vmul.f32 %v3771, 0.2
        %v4273 = vmul.f32 %v3811, 0.2
        %v4274 = vmul.f32 %v3851, 0.2
        %v4275 = vmul.f32 %v3891, 0.2
        %v4276 = vmul.f32 %v3931, 0.2
        %v4277 = vmul.f32 %v3971, 0.2
        %v4278 = vmul.f32 %v4011, 0.2
        %v4279 = vmul.f32 %v4051, 0.2
        %v4280 = vmul.f32 %v4091, 0.2
        %v4281 = vmul.f32 %v4131, 0.2
        %v4282 = vmul.f32 %v4171, 0.2
        %v4283 = vmul.f32 %v4211, 0.2
        %v4284 = vmul.f32 %v4251, 0.2
        %v4285 = vsel %vm4253, %v3651, %v4269
        %v4286 = vsel %vm4254, %v3691, %v4270
        %v4287 = vsel %vm4255, %v3731, %v4271
        %v4288 = vsel %vm4256, %v3771, %v4272
        %v4289 = vsel %vm4257, %v3811, %v4273
        %v4290 = vsel %vm4258, %v3851, %v4274
        %v4291 = vsel %vm4259, %v3891, %v4275
        %v4292 = vsel %vm4260, %v3931, %v4276
        %v4293 = vsel %vm4261, %v3971, %v4277
        %v4294 = vsel %vm4262, %v4011, %v4278
        %v4295 = vsel %vm4263, %v4051, %v4279
        %v4296 = vsel %vm4264, %v4091, %v4280
        %v4297 = vsel %vm4265, %v4131, %v4281
        %v4298 = vsel %vm4266, %v4171, %v4282
        %v4299 = vsel %vm4267, %v4211, %v4283
        %v4300 = vsel %vm4268, %v4251, %v4284
        %v4301 = vadd.f32 %v4285, %v1627
        %v4302 = vadd.f32 %v4286, %v1679
        %v4303 = vadd.f32 %v4287, %v1731
        %v4304 = vadd.f32 %v4288, %v1783
        %v4305 = vadd.f32 %v4289, %v1835
        %v4306 = vadd.f32 %v4290, %v1887
        %v4307 = vadd.f32 %v4291, %v1939
        %v4308 = vadd.f32 %v4292, %v1991
        %v4309 = vadd.f32 %v4293, %v2043
        %v4310 = vadd.f32 %v4294, %v2095
        %v4311 = vadd.f32 %v4295, %v2147
        %v4312 = vadd.f32 %v4296, %v2199
        %v4313 = vadd.f32 %v4297, %v2251
        %v4314 = vadd.f32 %v4298, %v2303
        %v4315 = vadd.f32 %v4299, %v2355
        %v4316 = vadd.f32 %v4300, %v2407
        %4318 = vst [vmem:[%s261] ss:$16 sm:$0x3] %v4301
        %4319 = vst [vmem:[%s261] ss:$16 sm:$0xc] %v4301
        %4320 = vst [vmem:[%s261] ss:$16 sm:$0x30] %v4301
        %4321 = vst [vmem:[%s261] ss:$16 sm:$0xc0] %v4301
        %s4323 = scalar_lea.vmem %s261, 1 [#allocation11]
        %4324 = vst [vmem:[%s4323] ss:$16 sm:$0x3] %v4302
        %4325 = vst [vmem:[%s4323] ss:$16 sm:$0xc] %v4302
        %4326 = vst [vmem:[%s4323] ss:$16 sm:$0x30] %v4302
        %4327 = vst [vmem:[%s4323] ss:$16 sm:$0xc0] %v4302
        %s4329 = scalar_lea.vmem %s261, 2 [#allocation11]
        %4330 = vst [vmem:[%s4329] ss:$16 sm:$0x3] %v4303
        %4331 = vst [vmem:[%s4329] ss:$16 sm:$0xc] %v4303
        %4332 = vst [vmem:[%s4329] ss:$16 sm:$0x30] %v4303
        %4333 = vst [vmem:[%s4329] ss:$16 sm:$0xc0] %v4303
        %s4335 = scalar_lea.vmem %s261, 3 [#allocation11]
        %4336 = vst [vmem:[%s4335] ss:$16 sm:$0x3] %v4304
        %4337 = vst [vmem:[%s4335] ss:$16 sm:$0xc] %v4304
        %4338 = vst [vmem:[%s4335] ss:$16 sm:$0x30] %v4304
        %4339 = vst [vmem:[%s4335] ss:$16 sm:$0xc0] %v4304
        %s4341 = scalar_lea.vmem %s261, 4 [#allocation11]
        %4342 = vst [vmem:[%s4341] ss:$16 sm:$0x3] %v4305
        %4343 = vst [vmem:[%s4341] ss:$16 sm:$0xc] %v4305
        %4344 = vst [vmem:[%s4341] ss:$16 sm:$0x30] %v4305
        %4345 = vst [vmem:[%s4341] ss:$16 sm:$0xc0] %v4305
        %s4347 = scalar_lea.vmem %s261, 5 [#allocation11]
        %4348 = vst [vmem:[%s4347] ss:$16 sm:$0x3] %v4306
        %4349 = vst [vmem:[%s4347] ss:$16 sm:$0xc] %v4306
        %4350 = vst [vmem:[%s4347] ss:$16 sm:$0x30] %v4306
        %4351 = vst [vmem:[%s4347] ss:$16 sm:$0xc0] %v4306
        %s4353 = scalar_lea.vmem %s261, 6 [#allocation11]
        %4354 = vst [vmem:[%s4353] ss:$16 sm:$0x3] %v4307
        %4355 = vst [vmem:[%s4353] ss:$16 sm:$0xc] %v4307
        %4356 = vst [vmem:[%s4353] ss:$16 sm:$0x30] %v4307
        %4357 = vst [vmem:[%s4353] ss:$16 sm:$0xc0] %v4307
        %s4359 = scalar_lea.vmem %s261, 7 [#allocation11]
        %4360 = vst [vmem:[%s4359] ss:$16 sm:$0x3] %v4308
        %4361 = vst [vmem:[%s4359] ss:$16 sm:$0xc] %v4308
        %4362 = vst [vmem:[%s4359] ss:$16 sm:$0x30] %v4308
        %4363 = vst [vmem:[%s4359] ss:$16 sm:$0xc0] %v4308
        %s4365 = scalar_lea.vmem %s261, 8 [#allocation11]
        %4366 = vst [vmem:[%s4365] ss:$16 sm:$0x3] %v4309
        %4367 = vst [vmem:[%s4365] ss:$16 sm:$0xc] %v4309
        %4368 = vst [vmem:[%s4365] ss:$16 sm:$0x30] %v4309
        %4369 = vst [vmem:[%s4365] ss:$16 sm:$0xc0] %v4309
        %s4371 = scalar_lea.vmem %s261, 9 [#allocation11]
        %4372 = vst [vmem:[%s4371] ss:$16 sm:$0x3] %v4310
        %4373 = vst [vmem:[%s4371] ss:$16 sm:$0xc] %v4310
        %4374 = vst [vmem:[%s4371] ss:$16 sm:$0x30] %v4310
        %4375 = vst [vmem:[%s4371] ss:$16 sm:$0xc0] %v4310
        %s4377 = scalar_lea.vmem %s261, 10 [#allocation11]
        %4378 = vst [vmem:[%s4377] ss:$16 sm:$0x3] %v4311
        %4379 = vst [vmem:[%s4377] ss:$16 sm:$0xc] %v4311
        %4380 = vst [vmem:[%s4377] ss:$16 sm:$0x30] %v4311
        %4381 = vst [vmem:[%s4377] ss:$16 sm:$0xc0] %v4311
        %s4383 = scalar_lea.vmem %s261, 11 [#allocation11]
        %4384 = vst [vmem:[%s4383] ss:$16 sm:$0x3] %v4312
        %4385 = vst [vmem:[%s4383] ss:$16 sm:$0xc] %v4312
        %4386 = vst [vmem:[%s4383] ss:$16 sm:$0x30] %v4312
        %4387 = vst [vmem:[%s4383] ss:$16 sm:$0xc0] %v4312
        %s4389 = scalar_lea.vmem %s261, 12 [#allocation11]
        %4390 = vst [vmem:[%s4389] ss:$16 sm:$0x3] %v4313
        %4391 = vst [vmem:[%s4389] ss:$16 sm:$0xc] %v4313
        %4392 = vst [vmem:[%s4389] ss:$16 sm:$0x30] %v4313
        %4393 = vst [vmem:[%s4389] ss:$16 sm:$0xc0] %v4313
        %s4395 = scalar_lea.vmem %s261, 13 [#allocation11]
        %4396 = vst [vmem:[%s4395] ss:$16 sm:$0x3] %v4314
        %4397 = vst [vmem:[%s4395] ss:$16 sm:$0xc] %v4314
        %4398 = vst [vmem:[%s4395] ss:$16 sm:$0x30] %v4314
        %4399 = vst [vmem:[%s4395] ss:$16 sm:$0xc0] %v4314
        %s4401 = scalar_lea.vmem %s261, 14 [#allocation11]
        %4402 = vst [vmem:[%s4401] ss:$16 sm:$0x3] %v4315
        %4403 = vst [vmem:[%s4401] ss:$16 sm:$0xc] %v4315
        %4404 = vst [vmem:[%s4401] ss:$16 sm:$0x30] %v4315
        %4405 = vst [vmem:[%s4401] ss:$16 sm:$0xc0] %v4315
        %s4407 = scalar_lea.vmem %s261, 15 [#allocation11]
        %4408 = vst [vmem:[%s4407] ss:$16 sm:$0x3] %v4316
        %4409 = vst [vmem:[%s4407] ss:$16 sm:$0xc] %v4316
        %4410 = vst [vmem:[%s4407] ss:$16 sm:$0x30] %v4316
        %4411 = vst [vmem:[%s4407] ss:$16 sm:$0xc0] %v4316
        %s4412 = sand.u32 %s141, 1
        %s4413 = scalar_lea.sflag [#allocation8], %s4412
        %s4414 = sand.u32 %s141, 1
        %s4415 = smul.addr %s4414, 128
        %s4416 = scalar_lea.vmem [#allocation11], %s4415
        // Predicated region
        $region49: #{tpu_custom_call.1} parent=39 // pred_check
          %p4417 = pneg %p151
        $region50: #{tpu_custom_call.1} parent=39 // pred_check_branch
          %4419 = sbr.rel (%p4417) target = $region52
        $region51: #{tpu_custom_call.1} parent=39 // pred_region
          %4421 = vsyncadd %s4413, 0
          %s4422 = smul.addr %s23, 16
          %s4423 = smul.addr %s4422, 8
          %s4424 = scalar_lea.hbm %s5, %s4423
          %s4425 = sshll.u32 %s4416, 4
          %s4426 = int_to_ptr.vmem [resolvable:$true] %s4425
          %s4427 = sshll.u32 %s4424, 4
          %s4428 = int_to_ptr.hbm [resolvable:$true] %s4427
          %4433 = dma.vmem_to_hbm [thread:$0]  %s4426, 2048, %s4428, %s4413, 128, 128, 8
        $region52: #{tpu_custom_call.1} parent=39 // pred_fallthru
          _
      $region40: #{tpu_custom_call.1} parent=5 // pred_fallthru
        _
      %p4434 = scmp.le.s32.totalorder 2, %s18
      // Predicated region
      $region53: #{tpu_custom_call.1} parent=5 // pred_check
        %p4435 = pneg %p4434
      $region54: #{tpu_custom_call.1} parent=5 // pred_check_branch
        %4437 = sbr.rel (%p4435) target = $region56
      $region55: #{tpu_custom_call.1} parent=5 // pred_region
        %s4438 = ssub.s32 %s18, 2
        // Predicated region
        $region57: #{tpu_custom_call.1} parent=55 // pred_check
          %p4439 = pneg %p157
        $region58: #{tpu_custom_call.1} parent=55 // pred_check_branch
          %4441 = sbr.rel (%p4439) target = $region60
        $region59: #{tpu_custom_call.1} parent=55 // pred_region
          %s4442 = sand.u32 %s142, 1
          %s4443 = scalar_lea.sflag [#allocation8], %s4442
          %s4444 = sand.u32 %s142, 1
          %s4445 = smul.addr %s4444, 128
          %s4446 = scalar_lea.vmem [#allocation11], %s4445
          %4448 = dma.done %s4443, 2048
        $region60: #{tpu_custom_call.1} parent=55 // pred_fallthru
          _
      $region56: #{tpu_custom_call.1} parent=5 // pred_fallthru
        _
    $region6: #{tpu_custom_call.1} parent=1 // loop_footer
      %s22 = sadd.s32 1, %s18
    $region7: #{tpu_custom_call.1} parent=1 // loop_footer_branch
      %17 = sbr.rel target = $region3
    $region8: #{tpu_custom_call.1} parent=1 // loop_exit
      _
    %4449 = vsyncpa [#allocation7], 1
    %s4450 = scalar_lea.sflag [#allocation7], 1
    %4451 = vsyncpa %s4450, 1
    %4452 = vsyncpa [#allocation10], 1
    %4453 = vsyncpa [#allocation8], 1
    %s4454 = scalar_lea.sflag [#allocation8], 1
    %4455 = vsyncpa %s4454, 1

</llo_original>
